<compile_context>
chip_gen: v7x
topology: tpu7x:2x2x1
jax: 0.10.0
libtpu: 0.0.40
codegen_flags: <defaults>
</compile_context>

<pallas_src>
import numpy as np
import jax
import jax.numpy as jnp
from jax import lax
from jax.experimental import pallas as pl
from jax.experimental.pallas import tpu as pltpu

D_MODEL = 24
H = 12
D_V = D_MODEL // H


def mha_kernel(qkv_ref, wq_ref, bq_ref, woh_ref, bo_ref, o_ref):
    # One grid step = one batch element.
    n = o_ref.shape[1]
    x_in = qkv_ref[0]                                   # (3n, d_model): rows = [Q; K; V]
    wq = wq_ref[...]                                    # (d_model, d_model), (in, out)
    bq = bq_ref[...]                                    # (1, d_model)

    # --- fused Q/K/V projection: a single MXU matmul (all three share w_Q,
    #     matching the reference module).
    proj = jnp.dot(x_in, wq, preferred_element_type=jnp.float32) + bq   # (3n, d_model)

    # --- split heads once and go head-major: 12 static lane slices + a
    #     leading-dim stack (no tiled-dim reshape/transpose in-kernel).
    heads = jnp.stack(
        [proj[:, h * D_V:(h + 1) * D_V] for h in range(H)], axis=0)     # (H, 3n, d_v)
    q_h = heads[:, 0 * n:1 * n, :]                      # (H, n, d_v)  sublane slices
    k_h = heads[:, 1 * n:2 * n, :]
    v_h = heads[:, 2 * n:3 * n, :]

    # --- additive causal bias (0 / -1e30), built once per grid step (cheap
    #     VPU work that hides under the MXU projection).
    row = lax.broadcasted_iota(jnp.int32, (n, n), 0)
    col = lax.broadcasted_iota(jnp.int32, (n, n), 1)
    bias = jnp.where(col > row, -1e30, 0.0).astype(jnp.float32)         # np.triu(ones, k=1)

    # --- batched scaled-dot-product attention over all heads at once.
    #     Scale applied to q_h (smaller than the (H, n, n) score tensor).
    scale = jnp.float32(1.0 / np.sqrt(D_V))             # d_k = d_v after head split
    s = jnp.einsum('hnd,hmd->hnm', q_h * scale, k_h,
                   preferred_element_type=jnp.float32)                  # (H, n, n)
    s = s + bias[None, :, :]
    m = jnp.max(s, axis=-1, keepdims=True)
    p = jnp.exp(s - m)                                                   # unnormalized probs
    denom = jnp.sum(p, axis=-1, keepdims=True)                           # (H, n, 1)
    ctx = jnp.einsum('hnm,hmd->hnd', p, v_h,
                     preferred_element_type=jnp.float32)                 # (H, n, d_v)
    # Normalize AFTER the context matmul (same math, touches the smaller
    # (H, n, d_v) tensor); EUP reciprocal keeps the VALU slot free.
    ctx = ctx * pl.reciprocal(denom, approx=True)

    # --- output projection folded per head:
    #     out = sum_h ctx_h @ w_O[h*d_v:(h+1)*d_v, :] + b_O
    #     (head-batched matmul + leading-dim reduction; no scratch, no masked stores)
    out = jnp.einsum('hnd,hdk->hnk', ctx, woh_ref[...],
                     preferred_element_type=jnp.float32)                 # (H, n, d_model)
    out = jnp.sum(out, axis=0) + bo_ref[...]                             # (n, d_model)
    o_ref[0] = out


def multi_head_attention(Q, K, V, wq, bq, wo, bo):
    B, n, d = Q.shape
    assert d == D_MODEL

    # Layout plumbing in the wrapper (cheap XLA ops, keeps the kernel lane/
    # sublane friendly): stack Q/K/V along the row axis for the fused
    # projection, and pre-split w_O by head for the batched output projection.
    qkv = jnp.concatenate([Q, K, V], axis=1)            # (B, 3n, d)
    wo_heads = wo.reshape(H, D_V, d)                    # (H, d_v, d): wo_heads[h,dv,:] = wo[h*d_v+dv,:]

    act_spec = pl.BlockSpec((1, 3 * n, d), lambda b: (b, 0, 0))
    out_spec = pl.BlockSpec((1, n, d), lambda b: (b, 0, 0))
    w_spec = pl.BlockSpec((d, d), lambda b: (0, 0))
    b_spec = pl.BlockSpec((1, d), lambda b: (0, 0))
    woh_spec = pl.BlockSpec((H, D_V, d), lambda b: (0, 0, 0))

    return pl.pallas_call(
        mha_kernel,
        out_shape=jax.ShapeDtypeStruct((B, n, d), jnp.float32),
        grid_spec=pltpu.PrefetchScalarGridSpec(
            num_scalar_prefetch=0,
            grid=(B,),
            in_specs=[act_spec, w_spec, b_spec, woh_spec, b_spec],
            out_specs=out_spec,
        ),
        compiler_params=pltpu.CompilerParams(
            dimension_semantics=("parallel",)),          # dual-TC on v7x
    )(qkv, wq, bq.reshape(1, d), wo_heads, bo.reshape(1, d))


def reference(Q, K, V, wq, bq, wo, bo):
    # Pure-JAX re-implementation of the PyTorch forward for verification.
    def proj(x):
        return x @ wq + bq
    query, key, value = proj(Q), proj(K), proj(V)
    B, n, d = Q.shape
    qh = query.reshape(B, n, H, D_V).transpose(0, 2, 1, 3)
    kh = key.reshape(B, n, H, D_V).transpose(0, 2, 1, 3)
    vh = value.reshape(B, n, H, D_V).transpose(0, 2, 1, 3)
    s = jnp.einsum('bhnd,bhmd->bhnm', qh, kh) / np.sqrt(D_V)
    mask = np.triu(np.ones((n, n)), k=1).astype(bool)
    s = jnp.where(mask, -np.inf, s)
    attn = jax.nn.softmax(s, axis=-1)
    x = jnp.einsum('bhnm,bhmd->bhnd', attn, vh)
    x = x.transpose(0, 2, 1, 3).reshape(B, n, d)
    return x @ wo + bo


if __name__ == "__main__":
    B, n = 2, 8
    key0 = jax.random.PRNGKey(0)
    k_q, k_k, k_v, k_wq, k_bq, k_wo, k_bo = jax.random.split(key0, 7)

    Q = jax.random.normal(k_q, (B, n, D_MODEL), dtype=jnp.float32)
    K = jax.random.normal(k_k, (B, n, D_MODEL), dtype=jnp.float32)
    V = jax.random.normal(k_v, (B, n, D_MODEL), dtype=jnp.float32)

    # Deterministic parameter init (nn.Linear-like scale), (in, out) layout.
    lim = 1.0 / np.sqrt(D_MODEL)
    wq = jax.random.uniform(k_wq, (D_MODEL, D_MODEL), jnp.float32, -lim, lim)
    bq = jax.random.uniform(k_bq, (D_MODEL,), jnp.float32, -lim, lim)
    wo = jax.random.uniform(k_wo, (D_MODEL, D_MODEL), jnp.float32, -lim, lim)
    bo = jax.random.uniform(k_bo, (D_MODEL,), jnp.float32, -lim, lim)

    out = multi_head_attention(Q, K, V, wq, bq, wo, bo)
    out = jax.block_until_ready(out)

    ref = reference(Q, K, V, wq, bq, wo, bo)
    np.testing.assert_allclose(np.asarray(out), np.asarray(ref),
                               rtol=1e-2, atol=1e-2)
    print("KERNEL_OK")
</pallas_src>

<mosaic_0001>
module attributes {stable_mosaic.version = 11 : i64} {
  func.func @mha_kernel(%arg0: i32, %arg1: memref<1x24x24xf32, #tpu.memory_space<vmem>>, %arg2: memref<24x24xf32, #tpu.memory_space<vmem>>, %arg3: memref<1x24xf32, #tpu.memory_space<vmem>>, %arg4: memref<12x2x24xf32, #tpu.memory_space<vmem>>, %arg5: memref<1x24xf32, #tpu.memory_space<vmem>>, %arg6: memref<1x8x24xf32, #tpu.memory_space<vmem>>) attributes {dimension_semantics = [#tpu.dimension_semantics<parallel>], iteration_bounds = array<i64: 2>, scalar_prefetch = 0 : i64, scratch_operands = 0 : i64, tpu.core_type = #tpu.core_type<tc>, window_params = [{transform_indices = @transform_0, window_bounds = array<i64: 1, 24, 24>}, {pipeline_mode = #tpu.pipeline_mode<synchronous>, transform_indices = @transform_1, window_bounds = array<i64: 24, 24>}, {pipeline_mode = #tpu.pipeline_mode<synchronous>, transform_indices = @transform_2, window_bounds = array<i64: 1, 24>}, {pipeline_mode = #tpu.pipeline_mode<synchronous>, transform_indices = @transform_3, window_bounds = array<i64: 12, 2, 24>}, {pipeline_mode = #tpu.pipeline_mode<synchronous>, transform_indices = @transform_4, window_bounds = array<i64: 1, 24>}, {transform_indices = @transform_5, window_bounds = array<i64: 1, 8, 24>}]} {
    %c0 = arith.constant 0 : index
    %c0_0 = arith.constant 0 : index
    %c0_1 = arith.constant 0 : index
    %0 = vector.load %arg1[%c0, %c0_0, %c0_1] : memref<1x24x24xf32, #tpu.memory_space<vmem>>, vector<1x24x24xf32>
    %1 = vector.shape_cast %0 : vector<1x24x24xf32> to vector<24x24xf32>
    %c0_2 = arith.constant 0 : index
    %c0_3 = arith.constant 0 : index
    %2 = vector.load %arg2[%c0_2, %c0_3] : memref<24x24xf32, #tpu.memory_space<vmem>>, vector<24x24xf32>
    %c0_4 = arith.constant 0 : index
    %c0_5 = arith.constant 0 : index
    %3 = vector.load %arg3[%c0_4, %c0_5] : memref<1x24xf32, #tpu.memory_space<vmem>>, vector<1x24xf32>
    %cst = arith.constant dense<0.000000e+00> : vector<24x24xf32>
    %4 = tpu.matmul %1, %2, %cst {dimension_numbers = #tpu.dot_dimension_numbers<[1], [0], [0], [1], [0, 0, 1, 1], [], []>} : vector<24x24xf32>, vector<24x24xf32>, vector<24x24xf32> -> vector<24x24xf32>
    %5 = vector.broadcast %3 : vector<1x24xf32> to vector<24x24xf32>
    %6 = arith.addf %4, %5 : vector<24x24xf32>
    %7 = vector.extract_strided_slice %6 {offsets = [0, 0], sizes = [24, 2], strides = [1, 1]} : vector<24x24xf32> to vector<24x2xf32>
    %8 = vector.extract_strided_slice %6 {offsets = [0, 2], sizes = [24, 2], strides = [1, 1]} : vector<24x24xf32> to vector<24x2xf32>
    %9 = vector.extract_strided_slice %6 {offsets = [0, 4], sizes = [24, 2], strides = [1, 1]} : vector<24x24xf32> to vector<24x2xf32>
    %10 = vector.extract_strided_slice %6 {offsets = [0, 6], sizes = [24, 2], strides = [1, 1]} : vector<24x24xf32> to vector<24x2xf32>
    %11 = vector.extract_strided_slice %6 {offsets = [0, 8], sizes = [24, 2], strides = [1, 1]} : vector<24x24xf32> to vector<24x2xf32>
    %12 = vector.extract_strided_slice %6 {offsets = [0, 10], sizes = [24, 2], strides = [1, 1]} : vector<24x24xf32> to vector<24x2xf32>
    %13 = vector.extract_strided_slice %6 {offsets = [0, 12], sizes = [24, 2], strides = [1, 1]} : vector<24x24xf32> to vector<24x2xf32>
    %14 = vector.extract_strided_slice %6 {offsets = [0, 14], sizes = [24, 2], strides = [1, 1]} : vector<24x24xf32> to vector<24x2xf32>
    %15 = vector.extract_strided_slice %6 {offsets = [0, 16], sizes = [24, 2], strides = [1, 1]} : vector<24x24xf32> to vector<24x2xf32>
    %16 = vector.extract_strided_slice %6 {offsets = [0, 18], sizes = [24, 2], strides = [1, 1]} : vector<24x24xf32> to vector<24x2xf32>
    %17 = vector.extract_strided_slice %6 {offsets = [0, 20], sizes = [24, 2], strides = [1, 1]} : vector<24x24xf32> to vector<24x2xf32>
    %18 = vector.extract_strided_slice %6 {offsets = [0, 22], sizes = [24, 2], strides = [1, 1]} : vector<24x24xf32> to vector<24x2xf32>
    %19 = vector.shape_cast %7 : vector<24x2xf32> to vector<1x24x2xf32>
    %20 = vector.shape_cast %8 : vector<24x2xf32> to vector<1x24x2xf32>
    %21 = vector.shape_cast %9 : vector<24x2xf32> to vector<1x24x2xf32>
    %22 = vector.shape_cast %10 : vector<24x2xf32> to vector<1x24x2xf32>
    %23 = vector.shape_cast %11 : vector<24x2xf32> to vector<1x24x2xf32>
    %24 = vector.shape_cast %12 : vector<24x2xf32> to vector<1x24x2xf32>
    %25 = vector.shape_cast %13 : vector<24x2xf32> to vector<1x24x2xf32>
    %26 = vector.shape_cast %14 : vector<24x2xf32> to vector<1x24x2xf32>
    %27 = vector.shape_cast %15 : vector<24x2xf32> to vector<1x24x2xf32>
    %28 = vector.shape_cast %16 : vector<24x2xf32> to vector<1x24x2xf32>
    %29 = vector.shape_cast %17 : vector<24x2xf32> to vector<1x24x2xf32>
    %30 = vector.shape_cast %18 : vector<24x2xf32> to vector<1x24x2xf32>
    %31 = tpu.concatenate %19, %20, %21, %22, %23, %24, %25, %26, %27, %28, %29, %30 in 0 : vector<1x24x2xf32>, vector<1x24x2xf32>, vector<1x24x2xf32>, vector<1x24x2xf32>, vector<1x24x2xf32>, vector<1x24x2xf32>, vector<1x24x2xf32>, vector<1x24x2xf32>, vector<1x24x2xf32>, vector<1x24x2xf32>, vector<1x24x2xf32>, vector<1x24x2xf32> -> vector<12x24x2xf32>
    %32 = vector.extract_strided_slice %31 {offsets = [0, 0, 0], sizes = [12, 8, 2], strides = [1, 1, 1]} : vector<12x24x2xf32> to vector<12x8x2xf32>
    %33 = vector.extract_strided_slice %31 {offsets = [0, 8, 0], sizes = [12, 8, 2], strides = [1, 1, 1]} : vector<12x24x2xf32> to vector<12x8x2xf32>
    %34 = vector.extract_strided_slice %31 {offsets = [0, 16, 0], sizes = [12, 8, 2], strides = [1, 1, 1]} : vector<12x24x2xf32> to vector<12x8x2xf32>
    %35 = tpu.iota {dimensions = array<i32: 0>} : vector<8x8xi32>
    %36 = tpu.iota {dimensions = array<i32: 1>} : vector<8x8xi32>
    %37 = arith.cmpi sgt, %36, %35 : vector<8x8xi32>
    %cst_6 = arith.constant -1.000000e+30 : f32
    %cst_7 = arith.constant 0.000000e+00 : f32
    %38 = vector.broadcast %cst_6 : f32 to vector<8x8xf32>
    %39 = vector.broadcast %cst_7 : f32 to vector<8x8xf32>
    %40 = arith.select %37, %38, %39 : vector<8x8xi1>, vector<8x8xf32>
    %cst_8 = arith.constant 0.707106769 : f32
    %41 = vector.broadcast %cst_8 : f32 to vector<12x8x2xf32>
    %42 = arith.mulf %32, %41 : vector<12x8x2xf32>
    "tpu.trace_start"() <{level = 10 : i32, message = "hnd,hmd->hnm"}> : () -> ()
    %cst_9 = arith.constant dense<0.000000e+00> : vector<12x8x8xf32>
    %43 = tpu.matmul %42, %33, %cst_9 {dimension_numbers = #tpu.dot_dimension_numbers<[2], [2], [1], [1], [0, 0, 0, 1, 1, 1], [0], [0]>} : vector<12x8x2xf32>, vector<12x8x2xf32>, vector<12x8x8xf32> -> vector<12x8x8xf32>
    "tpu.trace_stop"() : () -> ()
    %44 = vector.shape_cast %40 : vector<8x8xf32> to vector<1x8x8xf32>
    %45 = vector.broadcast %44 : vector<1x8x8xf32> to vector<12x8x8xf32>
    %46 = arith.addf %43, %45 : vector<12x8x8xf32>
    %cst_10 = arith.constant dense<0xFF800000> : vector<12x8xf32>
    %47 = vector.multi_reduction <maximumf>, %46, %cst_10 [2] : vector<12x8x8xf32> to vector<12x8xf32>
    %48 = vector.shape_cast %47 : vector<12x8xf32> to vector<12x8x1xf32>
    %49 = vector.broadcast %48 : vector<12x8x1xf32> to vector<12x8x8xf32>
    %50 = arith.subf %46, %49 : vector<12x8x8xf32>
    %51 = math.exp %50 : vector<12x8x8xf32>
    %cst_11 = arith.constant dense<0.000000e+00> : vector<12x8xf32>
    %52 = vector.multi_reduction <add>, %51, %cst_11 [2] : vector<12x8x8xf32> to vector<12x8xf32>
    %53 = vector.shape_cast %52 : vector<12x8xf32> to vector<12x8x1xf32>
    "tpu.trace_start"() <{level = 10 : i32, message = "hnm,hmd->hnd"}> : () -> ()
    %cst_12 = arith.constant dense<0.000000e+00> : vector<12x8x2xf32>
    %54 = tpu.matmul %51, %34, %cst_12 {dimension_numbers = #tpu.dot_dimension_numbers<[2], [1], [1], [2], [0, 0, 0, 1, 1, 2], [0], [0]>} : vector<12x8x8xf32>, vector<12x8x2xf32>, vector<12x8x2xf32> -> vector<12x8x2xf32>
    "tpu.trace_stop"() : () -> ()
    %55 = tpu.reciprocal %53 {approx = true} : vector<12x8x1xf32> -> vector<12x8x1xf32>
    %56 = vector.broadcast %55 : vector<12x8x1xf32> to vector<12x8x2xf32>
    %57 = arith.mulf %54, %56 : vector<12x8x2xf32>
    %c0_13 = arith.constant 0 : index
    %c0_14 = arith.constant 0 : index
    %c0_15 = arith.constant 0 : index
    %58 = vector.load %arg4[%c0_13, %c0_14, %c0_15] : memref<12x2x24xf32, #tpu.memory_space<vmem>>, vector<12x2x24xf32>
    "tpu.trace_start"() <{level = 10 : i32, message = "hnd,hdk->hnk"}> : () -> ()
    %cst_16 = arith.constant dense<0.000000e+00> : vector<12x8x24xf32>
    %59 = tpu.matmul %57, %58, %cst_16 {dimension_numbers = #tpu.dot_dimension_numbers<[2], [1], [1], [2], [0, 0, 0, 1, 1, 2], [0], [0]>} : vector<12x8x2xf32>, vector<12x2x24xf32>, vector<12x8x24xf32> -> vector<12x8x24xf32>
    "tpu.trace_stop"() : () -> ()
    %cst_17 = arith.constant dense<0.000000e+00> : vector<8x24xf32>
    %60 = vector.multi_reduction <add>, %59, %cst_17 [0] : vector<12x8x24xf32> to vector<8x24xf32>
    %c0_18 = arith.constant 0 : index
    %c0_19 = arith.constant 0 : index
    %61 = vector.load %arg5[%c0_18, %c0_19] : memref<1x24xf32, #tpu.memory_space<vmem>>, vector<1x24xf32>
    %62 = vector.broadcast %61 : vector<1x24xf32> to vector<8x24xf32>
    %63 = arith.addf %60, %62 : vector<8x24xf32>
    %c0_20 = arith.constant 0 : index
    %c0_21 = arith.constant 0 : index
    %c0_22 = arith.constant 0 : index
    %64 = vector.load %arg6[%c0_20, %c0_21, %c0_22] : memref<1x8x24xf32, #tpu.memory_space<vmem>>, vector<1x8x24xf32>
    %65 = vector.shape_cast %64 : vector<1x8x24xf32> to vector<8x24xf32>
    %66 = vector.shape_cast %63 : vector<8x24xf32> to vector<1x8x24xf32>
    tpu.vector_store %arg6[%c0_20, %c0_21, %c0_22], %66 {strides = array<i32>} : memref<1x8x24xf32, #tpu.memory_space<vmem>>, vector<1x8x24xf32>,
    return
  }
  func.func @transform_0(%arg0: i32) -> (i32, i32, i32) {
    %c0_i32 = arith.constant 0 : i32
    %c0_i32_0 = arith.constant 0 : i32
    %c0_i32_1 = arith.constant 0 : i32
    return %arg0, %c0_i32, %c0_i32_0 : i32, i32, i32
  }
  func.func @transform_1(%arg0: i32) -> (i32, i32) {
    %c0_i32 = arith.constant 0 : i32
    %c0_i32_0 = arith.constant 0 : i32
    %c0_i32_1 = arith.constant 0 : i32
    return %c0_i32, %c0_i32_0 : i32, i32
  }
  func.func @transform_2(%arg0: i32) -> (i32, i32) {
    %c0_i32 = arith.constant 0 : i32
    %c0_i32_0 = arith.constant 0 : i32
    %c0_i32_1 = arith.constant 0 : i32
    return %c0_i32, %c0_i32_0 : i32, i32
  }
  func.func @transform_3(%arg0: i32) -> (i32, i32, i32) {
    %c0_i32 = arith.constant 0 : i32
    %c0_i32_0 = arith.constant 0 : i32
    %c0_i32_1 = arith.constant 0 : i32
    %c0_i32_2 = arith.constant 0 : i32
    return %c0_i32, %c0_i32_0, %c0_i32_1 : i32, i32, i32
  }
  func.func @transform_4(%arg0: i32) -> (i32, i32) {
    %c0_i32 = arith.constant 0 : i32
    %c0_i32_0 = arith.constant 0 : i32
    %c0_i32_1 = arith.constant 0 : i32
    return %c0_i32, %c0_i32_0 : i32, i32
  }
  func.func @transform_5(%arg0: i32) -> (i32, i32, i32) {
    %c0_i32 = arith.constant 0 : i32
    %c0_i32_0 = arith.constant 0 : i32
    %c0_i32_1 = arith.constant 0 : i32
    return %arg0, %c0_i32, %c0_i32_0 : i32, i32, i32
  }
}

</mosaic_0001>

<llo_original>
// kernel: tpu_custom_call.1
$region0: #{tpu_custom_call.1}
  #allocation0 [shape = 'u32[]', space=smem, size = 0x4, offset = 0x4, fixed_abs, tag = 'smem constant byte address 0x4 - core index']
  #allocation1 [shape = 'u32[144,128]{1,0:T(1,128)}', space=vmem, size = 0x12000, scoped, tag = 'internal scratch']
  %s0 = inlined_call_operand.hbm [shape: f32[2,24,24], index: 0, kind: input, shape index: {}]
  %s1 = inlined_call_operand.hbm [shape: f32[24,24], index: 1, kind: input, shape index: {}]
  %s2 = inlined_call_operand.vmem [shape: f32[1,24], index: 2, kind: input, shape index: {}]
  %s3 = inlined_call_operand.hbm [shape: f32[12,2,24], index: 3, kind: input, shape index: {}]
  %s4 = inlined_call_operand.vmem [shape: f32[1,24], index: 4, kind: input, shape index: {}]
  %s5 = inlined_call_operand.hbm [shape: f32[2,8,24], index: 5, kind: output, shape index: {}]
  %s6 = sld [smem:[#allocation0]]
  $region65: #{tpu_custom_call.1} parent=0
    _
  %s8 = ssub.s32 1, %s6
  %s9 = scalar_select 0, %s8, %s6
  $region1: #{tpu_custom_call.1} parent=0
    #allocation2 [shape = 'u8[24576]{0}', space=vmem, size = 0x6000, scoped, tag = 'input window, operand 0']
    #allocation3 [shape = 's32[2]{0}', space=sflag, size = 0x8, scoped, tag = 'scoped memory for tpu_custom_call.1']
    #allocation4 [shape = 's32[2]{0}', space=sflag, size = 0x8, scoped, tag = 'scoped memory for tpu_custom_call.1']
    #allocation5 [shape = 'u8[12288]{0}', space=vmem, size = 0x3000, scoped, tag = 'input window, operand 1, single buffered']
    #allocation6 [shape = 's32[1]{0}', space=sflag, size = 0x4, scoped, tag = 'scoped memory for tpu_custom_call.1']
    #allocation7 [shape = 'u8[12288]{0}', space=vmem, size = 0x3000, scoped, tag = 'input window, operand 3, single buffered']
    #allocation8 [shape = 'u8[8192]{0}', space=vmem, size = 0x2000, scoped, tag = 'output window, operand 0']
    %10 = vsyncpa [#allocation3], 0
    %s11 = scalar_lea.sflag [#allocation3], 1
    %12 = vsyncpa %s11, 0
    %13 = vsyncpa [#allocation6], 0
    %14 = vsyncpa [#allocation4], 0
    %s15 = scalar_lea.sflag [#allocation4], 1
    %16 = vsyncpa %s15, 0
    loop: start=0, step=1, limit=4
    $region2: #{tpu_custom_call.1} parent=1 // loop_pre_header
      _
    $region3: #{tpu_custom_call.1} parent=1 // loop_header
      %s18 = sphi 0, %s22
      %p19 = scmp.ge.s32.totalorder %s18, 4
      %s28 = sphi 0, %s30
      %s31 = sphi 0, %s28
      %s32 = sphi 0, %s31
      %s48 = sphi 0, %s32
      %s52 = sphi 0, %s52
      %s54 = sphi 0, %s52
      %s55 = sphi 0, %s54
      %s69 = sphi 0, %s55
      %s73 = sphi 0, %s73
      %s75 = sphi 0, %s73
      %s76 = sphi 0, %s75
      %s90 = sphi 0, %s76
      %s94 = sphi 0, %s94
      %s96 = sphi 0, %s94
      %s97 = sphi 0, %s96
      %s111 = sphi 0, %s97
      %s115 = sphi 0, %s115
      %s117 = sphi 0, %s115
      %s118 = sphi 0, %s117
      %s132 = sphi 0, %s118
      %s138 = sphi 0, %s140
      %s141 = sphi 0, %s138
      %s142 = sphi 0, %s141
      %s158 = sphi 0, %s142
    $region4: #{tpu_custom_call.1} parent=1 // loop_header_branch
      %21 = sbr.rel (%p19) target = $region8
    $region5: #{tpu_custom_call.1} parent=1 // loop_body
      %s23 = ssub.s32 %s18, 1
      %s24 = ssub.s32 %s18, 2
      %s25 = sadd.s32 %s18, 1
      %s26 = ssub.s32 %s18, %s25
      %p27 = scmp.eq.s32.totalorder %s26, 0
      %s29 = sadd.s32 %s28, 1
      %s30 = scalar_select %p27, %s28, %s29
      %p33 = pneg %p27
      %p34 = scmp.eq.s32.totalorder %s18, 1
      %p35 = por %p33, %p34
      %p36 = scmp.ne.s32.totalorder %s28, %s31
      %p37 = scmp.eq.s32.totalorder %s18, 0
      %p38 = por %p36, %p37
      %p39 = scmp.ne.s32.totalorder %s28, %s31
      %p40 = scmp.eq.s32.totalorder %s23, 1
      %p41 = por %p39, %p40
      %p42 = scmp.ne.s32.totalorder %s31, %s32
      %p43 = scmp.eq.s32.totalorder %s23, 0
      %p44 = por %p42, %p43
      %p45 = scmp.ne.s32.totalorder %s31, %s32
      %p46 = scmp.eq.s32.totalorder %s24, 1
      %p47 = por %p45, %p46
      %p49 = scmp.ne.s32.totalorder %s32, %s48
      %p50 = scmp.eq.s32.totalorder %s24, 0
      %p51 = por %p49, %p50
      %s53 = sadd.s32 %s52, 1
      %p56 = scmp.eq.s32.totalorder %s18, 1
      %p57 = scmp.ne.s32.totalorder %s52, %s54
      %p58 = scmp.eq.s32.totalorder %s18, 0
      %p59 = por %p57, %p58
      %p60 = scmp.ne.s32.totalorder %s52, %s54
      %p61 = scmp.eq.s32.totalorder %s23, 1
      %p62 = por %p60, %p61
      %p63 = scmp.ne.s32.totalorder %s54, %s55
      %p64 = scmp.eq.s32.totalorder %s23, 0
      %p65 = por %p63, %p64
      %p66 = scmp.ne.s32.totalorder %s54, %s55
      %p67 = scmp.eq.s32.totalorder %s24, 1
      %p68 = por %p66, %p67
      %p70 = scmp.ne.s32.totalorder %s55, %s69
      %p71 = scmp.eq.s32.totalorder %s24, 0
      %p72 = por %p70, %p71
      %s74 = sadd.s32 %s73, 1
      %p77 = scmp.eq.s32.totalorder %s18, 1
      %p78 = scmp.ne.s32.totalorder %s73, %s75
      %p79 = scmp.eq.s32.totalorder %s18, 0
      %p80 = por %p78, %p79
      %p81 = scmp.ne.s32.totalorder %s73, %s75
      %p82 = scmp.eq.s32.totalorder %s23, 1
      %p83 = por %p81, %p82
      %p84 = scmp.ne.s32.totalorder %s75, %s76
      %p85 = scmp.eq.s32.totalorder %s23, 0
      %p86 = por %p84, %p85
      %p87 = scmp.ne.s32.totalorder %s75, %s76
      %p88 = scmp.eq.s32.totalorder %s24, 1
      %p89 = por %p87, %p88
      %p91 = scmp.ne.s32.totalorder %s76, %s90
      %p92 = scmp.eq.s32.totalorder %s24, 0
      %p93 = por %p91, %p92
      %s95 = sadd.s32 %s94, 1
      %p98 = scmp.eq.s32.totalorder %s18, 1
      %p99 = scmp.ne.s32.totalorder %s94, %s96
      %p100 = scmp.eq.s32.totalorder %s18, 0
      %p101 = por %p99, %p100
      %p102 = scmp.ne.s32.totalorder %s94, %s96
      %p103 = scmp.eq.s32.totalorder %s23, 1
      %p104 = por %p102, %p103
      %p105 = scmp.ne.s32.totalorder %s96, %s97
      %p106 = scmp.eq.s32.totalorder %s23, 0
      %p107 = por %p105, %p106
      %p108 = scmp.ne.s32.totalorder %s96, %s97
      %p109 = scmp.eq.s32.totalorder %s24, 1
      %p110 = por %p108, %p109
      %p112 = scmp.ne.s32.totalorder %s97, %s111
      %p113 = scmp.eq.s32.totalorder %s24, 0
      %p114 = por %p112, %p113
      %s116 = sadd.s32 %s115, 1
      %p119 = scmp.eq.s32.totalorder %s18, 1
      %p120 = scmp.ne.s32.totalorder %s115, %s117
      %p121 = scmp.eq.s32.totalorder %s18, 0
      %p122 = por %p120, %p121
      %p123 = scmp.ne.s32.totalorder %s115, %s117
      %p124 = scmp.eq.s32.totalorder %s23, 1
      %p125 = por %p123, %p124
      %p126 = scmp.ne.s32.totalorder %s117, %s118
      %p127 = scmp.eq.s32.totalorder %s23, 0
      %p128 = por %p126, %p127
      %p129 = scmp.ne.s32.totalorder %s117, %s118
      %p130 = scmp.eq.s32.totalorder %s24, 1
      %p131 = por %p129, %p130
      %p133 = scmp.ne.s32.totalorder %s118, %s132
      %p134 = scmp.eq.s32.totalorder %s24, 0
      %p135 = por %p133, %p134
      %s136 = ssub.s32 %s18, %s25
      %p137 = scmp.eq.s32.totalorder %s136, 0
      %s139 = sadd.s32 %s138, 1
      %s140 = scalar_select %p137, %s138, %s139
      %p143 = pneg %p137
      %p144 = scmp.eq.s32.totalorder %s18, 1
      %p145 = por %p143, %p144
      %p146 = scmp.ne.s32.totalorder %s138, %s141
      %p147 = scmp.eq.s32.totalorder %s18, 0
      %p148 = por %p146, %p147
      %p149 = scmp.ne.s32.totalorder %s138, %s141
      %p150 = scmp.eq.s32.totalorder %s23, 1
      %p151 = por %p149, %p150
      %p152 = scmp.ne.s32.totalorder %s141, %s142
      %p153 = scmp.eq.s32.totalorder %s23, 0
      %p154 = por %p152, %p153
      %p155 = scmp.ne.s32.totalorder %s141, %s142
      %p156 = scmp.eq.s32.totalorder %s24, 1
      %p157 = por %p155, %p156
      %p159 = scmp.ne.s32.totalorder %s142, %s158
      %p160 = scmp.eq.s32.totalorder %s24, 0
      %p161 = por %p159, %p160
      %p162 = scmp.le.s32.totalorder 1, %s18
      %p163 = scmp.lt.s32.totalorder %s18, 3
      %p164 = pnand %p162, %p163
      %p165 = pneg %p164
      // Predicated region
      $region9: #{tpu_custom_call.1} parent=5 // pred_check
        _
      $region10: #{tpu_custom_call.1} parent=5 // pred_check_branch
        %167 = sbr.rel (%p164) target = $region12
      $region11: #{tpu_custom_call.1} parent=5 // pred_region
        %s168 = ssub.s32 %s18, 1
        // Predicated region
        $region13: #{tpu_custom_call.1} parent=11 // pred_check
          %p169 = pneg %p65
        $region14: #{tpu_custom_call.1} parent=11 // pred_check_branch
          %171 = sbr.rel (%p169) target = $region16
        $region15: #{tpu_custom_call.1} parent=11 // pred_region
          %s173 = ssub.s32 384, 384
          %174 = vsyncadd [#allocation6], %s173
          %s175 = sshll.u32 [#allocation5], 4
          %s176 = int_to_ptr.vmem [resolvable:$true] %s175
          %181 = dma.hbm_to_vmem [thread:$0]  %s1, 384, %s176, [#allocation6], 128, 128, 8
        $region16: #{tpu_custom_call.1} parent=11 // pred_fallthru
          _
        // Predicated region
        $region17: #{tpu_custom_call.1} parent=11 // pred_check
          %p182 = pneg %p86
        $region18: #{tpu_custom_call.1} parent=11 // pred_check_branch
          %184 = sbr.rel (%p182) target = $region20
        $region19: #{tpu_custom_call.1} parent=11 // pred_region
          _
        $region20: #{tpu_custom_call.1} parent=11 // pred_fallthru
          _
        // Predicated region
        $region21: #{tpu_custom_call.1} parent=11 // pred_check
          %p185 = pneg %p107
        $region22: #{tpu_custom_call.1} parent=11 // pred_check_branch
          %187 = sbr.rel (%p185) target = $region24
        $region23: #{tpu_custom_call.1} parent=11 // pred_region
          %s189 = ssub.s32 384, 384
          %190 = vsyncadd [#allocation6], %s189
          %s191 = sshll.u32 [#allocation7], 4
          %s192 = int_to_ptr.vmem [resolvable:$true] %s191
          %197 = dma.hbm_to_vmem [thread:$0]  %s3, 384, %s192, [#allocation6], 32, 32, 2
        $region24: #{tpu_custom_call.1} parent=11 // pred_fallthru
          _
        // Predicated region
        $region25: #{tpu_custom_call.1} parent=11 // pred_check
          %p198 = pneg %p128
        $region26: #{tpu_custom_call.1} parent=11 // pred_check_branch
          %200 = sbr.rel (%p198) target = $region28
        $region27: #{tpu_custom_call.1} parent=11 // pred_region
          _
        $region28: #{tpu_custom_call.1} parent=11 // pred_fallthru
          _
      $region12: #{tpu_custom_call.1} parent=5 // pred_fallthru
        _
      %p201 = scmp.lt.s32.totalorder %s18, 2
      // Predicated region
      $region29: #{tpu_custom_call.1} parent=5 // pred_check
        %p202 = pneg %p201
      $region30: #{tpu_custom_call.1} parent=5 // pred_check_branch
        %204 = sbr.rel (%p202) target = $region32
      $region31: #{tpu_custom_call.1} parent=5 // pred_region
        // Predicated region
        $region33: #{tpu_custom_call.1} parent=31 // pred_check
          %p205 = pneg %p38
        $region34: #{tpu_custom_call.1} parent=31 // pred_check_branch
          %207 = sbr.rel (%p205) target = $region36
        $region35: #{tpu_custom_call.1} parent=31 // pred_region
          %s208 = sand.u32 %s28, 1
          %s209 = scalar_lea.sflag [#allocation3], %s208
          %s210 = sand.u32 %s28, 1
          %s211 = smul.addr %s210, 24
          %s212 = scalar_lea.vmem [#allocation2], %s211
          %s214 = ssub.s32 384, 384
          %215 = vsyncadd %s209, %s214
          %s216 = smul.addr %s18, 3
          %s217 = smul.addr %s216, 128
          %s218 = scalar_lea.hbm %s0, %s217
          %s219 = sshll.u32 %s212, 4
          %s220 = int_to_ptr.vmem [resolvable:$true] %s219
          %225 = dma.hbm_to_vmem [thread:$0]  %s218, 384, %s220, %s209, 128, 128, 8
        $region36: #{tpu_custom_call.1} parent=31 // pred_fallthru
          _
      $region32: #{tpu_custom_call.1} parent=5 // pred_fallthru
        _
      %p226 = scmp.le.s32.totalorder 1, %s18
      %p227 = scmp.lt.s32.totalorder %s18, 3
      %p228 = pnand %p226, %p227
      %p229 = pneg %p228
      // Predicated region
      $region37: #{tpu_custom_call.1} parent=5 // pred_check
        _
      $region38: #{tpu_custom_call.1} parent=5 // pred_check_branch
        %231 = sbr.rel (%p228) target = $region40
      $region39: #{tpu_custom_call.1} parent=5 // pred_region
        %s232 = ssub.s32 %s18, 1
        %s233 = sand.u32 %s31, 1
        %s234 = scalar_lea.sflag [#allocation3], %s233
        %s235 = sand.u32 %s31, 1
        %s236 = smul.addr %s235, 24
        %s237 = scalar_lea.vmem [#allocation2], %s236
        // Predicated region
        $region41: #{tpu_custom_call.1} parent=39 // pred_check
          %p238 = pneg %p44
        $region42: #{tpu_custom_call.1} parent=39 // pred_check_branch
          %240 = sbr.rel (%p238) target = $region44
        $region43: #{tpu_custom_call.1} parent=39 // pred_region
          %241 = dma.done %s234, 384
        $region44: #{tpu_custom_call.1} parent=39 // pred_fallthru
          _
        // Predicated region
        $region45: #{tpu_custom_call.1} parent=39 // pred_check
          %p242 = pneg %p65
        $region46: #{tpu_custom_call.1} parent=39 // pred_check_branch
          %244 = sbr.rel (%p242) target = $region48
        $region47: #{tpu_custom_call.1} parent=39 // pred_region
          %245 = dma.done [#allocation6], 384
        $region48: #{tpu_custom_call.1} parent=39 // pred_fallthru
          _
        // Predicated region
        $region49: #{tpu_custom_call.1} parent=39 // pred_check
          %p246 = pneg %p107
        $region50: #{tpu_custom_call.1} parent=39 // pred_check_branch
          %248 = sbr.rel (%p246) target = $region52
        $region51: #{tpu_custom_call.1} parent=39 // pred_region
          %249 = dma.done [#allocation6], 384
        $region52: #{tpu_custom_call.1} parent=39 // pred_fallthru
          _
        %s250 = sand.u32 %s31, 1
        %s251 = scalar_lea.sflag [#allocation3], %s250
        %s252 = sand.u32 %s31, 1
        %s253 = smul.addr %s252, 24
        %s254 = scalar_lea.vmem [#allocation2], %s253
        %p255 = pneg %p44
        %p256 = pneg %p41
        %p257 = pneg %p65
        %p258 = pneg %p62
        %p259 = pneg %p86
        %p260 = pneg %p83
        %p261 = pneg %p107
        %p262 = pneg %p104
        %p263 = pneg %p128
        %p264 = pneg %p125
        %p265 = pneg %p154
        %p266 = pneg %p151
        %s267 = sand.u32 %s141, 1
        %s268 = scalar_lea.sflag [#allocation4], %s267
        %s269 = sand.u32 %s141, 1
        %s270 = smul.addr %s269, 8
        %s271 = scalar_lea.vmem [#allocation8], %s270
        %v272 = vld [vmem:[%s237] sm:$0xff]
        %v273 = vld [vmem:[%s237 + $0x8] sm:$0xff]
        %v274 = vld [vmem:[%s237 + $0x10] sm:$0xff]
        %v275 = vld [vmem:[#allocation5] sm:$0xff]
        %v276 = vld [vmem:[#allocation5 + $0x8] sm:$0xff]
        %v277 = vld [vmem:[#allocation5 + $0x10] sm:$0xff]
        %v278 = vld [vmem:[%s2] sm:$0x1]
        %v280 = vlaneseq
        %v281 = vshrl.u32 %v280, 7
        %v282 = vsub.s32 0, %v281
        %v283 = vrot.slane %v278, %v282
        %vm285 = vcmask 195584
        %v287 = vsel %vm285, %v272, 0
        %v290 = vsel %vm285, %v273, 0
        %v293 = vsel %vm285, %v274, 0
        %295 = vmatprep.subr.mxu0 0.0
        %296 = vmatpush1.msra.mxu0 %v275
        %297 = vmatprep.subr.mxu0 0.0
        %298 = vmatpush1.msra.mxu0 %v276
        %299 = vmatprep.subr.mxu0 0.0
        %300 = vmatpush1.msra.mxu0 %v277
        %301 = vmatprep.subr.mxu0 0.0
        %302 = vmatpush1.msra.mxu0 0.0
        %303 = vmatprep.subr.mxu0 0.0
        %304 = vmatpush1.msra.mxu0 0.0
        %305 = vmatprep.subr.mxu0 0.0
        %306 = vmatpush1.msra.mxu0 0.0
        %307 = vmatprep.subr.mxu0 0.0
        %308 = vmatpush1.msra.mxu0 0.0
        %309 = vmatprep.subr.mxu0 0.0
        %310 = vmatpush1.msra.mxu0 0.0
        %311 = vmatprep.subr.mxu0 0.0
        %312 = vmatpush1.msra.mxu0 0.0
        %313 = vmatprep.subr.mxu0 0.0
        %314 = vmatpush1.msra.mxu0 0.0
        %315 = vmatprep.subr.mxu0 0.0
        %316 = vmatpush1.msra.mxu0 0.0
        %317 = vmatprep.subr.mxu0 0.0
        %318 = vmatpush1.msra.mxu0 0.0
        %319 = vmatprep.subr.mxu0 0.0
        %320 = vmatpush1.msra.mxu0 0.0
        %321 = vmatprep.subr.mxu0 0.0
        %322 = vmatpush1.msra.mxu0 0.0
        %323 = vmatprep.subr.mxu0 0.0
        %324 = vmatpush1.msra.mxu0 0.0
        %325 = vmatprep.subr.mxu0 0.0
        %326 = vmatpush1.msra.mxu0 0.0
        %327 = vmatprep.subr.mxu0 0.0
        %328 = vmatpush1.msra.mxu0 0.0
        %329 = vmatprep.subr.mxu0 0.0
        %330 = vmatpush1.msra.mxu0 0.0
        %331 = vmatprep.subr.mxu0 0.0
        %332 = vmatpush1.msra.mxu0 0.0
        %333 = vmatprep.subr.mxu0 0.0
        %334 = vmatpush1.msra.mxu0 0.0
        %335 = vmatprep.subr.mxu0 0.0
        %336 = vmatpush1.msra.mxu0 0.0
        %337 = vmatprep.subr.mxu0 0.0
        %338 = vmatpush1.msra.mxu0 0.0
        %339 = vmatprep.subr.mxu0 0.0
        %340 = vmatpush1.msra.mxu0 0.0
        %341 = vmatprep.subr.mxu0 0.0
        %342 = vmatpush1.msra.mxu0 0.0
        %343 = vmatprep.subr.mxu0 0.0
        %344 = vmatpush1.msra.mxu0 0.0
        %345 = vmatprep.subr.mxu0 0.0
        %346 = vmatpush1.msra.mxu0 0.0
        %347 = vmatprep.subr.mxu0 0.0
        %348 = vmatpush1.msra.mxu0 0.0
        %349 = vmatprep.subr.mxu0 0.0
        %350 = vmatpush1.msra.mxu0 0.0
        %351 = vmatprep.subr.mxu0 0.0
        %352 = vmatpush1.msra.mxu0 0.0
        %353 = vmatprep.subr.mxu0 0.0
        %354 = vmatpush1.msra.mxu0 0.0
        %355 = vmatprep.subr.mxu0 0.0
        %356 = vmatpush1.msra.mxu0 0.0
        %357 = vmatprep.subr.mxu0 0.0
        %358 = vmatpush1.msra.mxu0 0.0
        %359 = vmatprep.mubr.f32.mxu0 0.0
        %360 = vmatmul.mubr.f32.gmra.mrb[0].mxu0 %v287
        %v361 = vpop.f32.mrb[0].mxu0
        %v362 = vadd.f32 %v283, %v361
        %v363 = vpop.f32.mrb[0].mxu0
        %364 = vmatprep.mubr.f32.mxu0 0.0
        %365 = vmatmul.mubr.f32.gmra.mrb[0].mxu0 %v290
        %v366 = vpop.f32.mrb[0].mxu0
        %v367 = vadd.f32 %v283, %v366
        %v368 = vpop.f32.mrb[0].mxu0
        %369 = vmatprep.mubr.f32.mxu0 0.0
        %370 = vmatmul.mubr.f32.gmra.mrb[0].mxu0 %v293
        %v371 = vpop.f32.mrb[0].mxu0
        %v372 = vadd.f32 %v283, %v371
        %v373 = vpop.f32.mrb[0].mxu0
        %374 = vdwg.mxu0
        %378 = vrot.lane.b32.xlu0 %v362, 126
        %v379 = vpop.permute.xlu0 %378
        %380 = vrot.lane.b32.xlu0 %v367, 126
        %v381 = vpop.permute.xlu0 %380
        %382 = vrot.lane.b32.xlu0 %v372, 126
        %v383 = vpop.permute.xlu0 %382
        %386 = vrot.lane.b32.xlu0 %v362, 124
        %v387 = vpop.permute.xlu0 %386
        %388 = vrot.lane.b32.xlu0 %v367, 124
        %v389 = vpop.permute.xlu0 %388
        %390 = vrot.lane.b32.xlu0 %v372, 124
        %v391 = vpop.permute.xlu0 %390
        %394 = vrot.lane.b32.xlu0 %v362, 122
        %v395 = vpop.permute.xlu0 %394
        %396 = vrot.lane.b32.xlu0 %v367, 122
        %v397 = vpop.permute.xlu0 %396
        %398 = vrot.lane.b32.xlu0 %v372, 122
        %v399 = vpop.permute.xlu0 %398
        %402 = vrot.lane.b32.xlu0 %v362, 120
        %v403 = vpop.permute.xlu0 %402
        %404 = vrot.lane.b32.xlu0 %v367, 120
        %v405 = vpop.permute.xlu0 %404
        %406 = vrot.lane.b32.xlu0 %v372, 120
        %v407 = vpop.permute.xlu0 %406
        %410 = vrot.lane.b32.xlu0 %v362, 118
        %v411 = vpop.permute.xlu0 %410
        %412 = vrot.lane.b32.xlu0 %v367, 118
        %v413 = vpop.permute.xlu0 %412
        %414 = vrot.lane.b32.xlu0 %v372, 118
        %v415 = vpop.permute.xlu0 %414
        %418 = vrot.lane.b32.xlu0 %v362, 116
        %v419 = vpop.permute.xlu0 %418
        %420 = vrot.lane.b32.xlu0 %v367, 116
        %v421 = vpop.permute.xlu0 %420
        %422 = vrot.lane.b32.xlu0 %v372, 116
        %v423 = vpop.permute.xlu0 %422
        %426 = vrot.lane.b32.xlu0 %v362, 114
        %v427 = vpop.permute.xlu0 %426
        %428 = vrot.lane.b32.xlu0 %v367, 114
        %v429 = vpop.permute.xlu0 %428
        %430 = vrot.lane.b32.xlu0 %v372, 114
        %v431 = vpop.permute.xlu0 %430
        %434 = vrot.lane.b32.xlu0 %v362, 112
        %v435 = vpop.permute.xlu0 %434
        %436 = vrot.lane.b32.xlu0 %v367, 112
        %v437 = vpop.permute.xlu0 %436
        %438 = vrot.lane.b32.xlu0 %v372, 112
        %v439 = vpop.permute.xlu0 %438
        %442 = vrot.lane.b32.xlu0 %v362, 110
        %v443 = vpop.permute.xlu0 %442
        %444 = vrot.lane.b32.xlu0 %v367, 110
        %v445 = vpop.permute.xlu0 %444
        %446 = vrot.lane.b32.xlu0 %v372, 110
        %v447 = vpop.permute.xlu0 %446
        %450 = vrot.lane.b32.xlu0 %v362, 108
        %v451 = vpop.permute.xlu0 %450
        %452 = vrot.lane.b32.xlu0 %v367, 108
        %v453 = vpop.permute.xlu0 %452
        %454 = vrot.lane.b32.xlu0 %v372, 108
        %v455 = vpop.permute.xlu0 %454
        %458 = vrot.lane.b32.xlu0 %v362, 106
        %v459 = vpop.permute.xlu0 %458
        %460 = vrot.lane.b32.xlu0 %v367, 106
        %v461 = vpop.permute.xlu0 %460
        %462 = vrot.lane.b32.xlu0 %v372, 106
        %v463 = vpop.permute.xlu0 %462
        %v466 = vlaneseq
        %v467 = vshrl.u32 %v466, 7
        %v468 = vlaneseq
        %v469 = vand.u32 %v468, 127
        %vm470 = vcmp.gt.s32.totalorder %v469, %v467
        %v471 = vsel %vm470, -1e+30, 0.0
        %v472 = vmul.f32 %v362, 0.70710677
        %v473 = vmul.f32 %v379, 0.70710677
        %v474 = vmul.f32 %v387, 0.70710677
        %v475 = vmul.f32 %v395, 0.70710677
        %v476 = vmul.f32 %v403, 0.70710677
        %v477 = vmul.f32 %v411, 0.70710677
        %v478 = vmul.f32 %v419, 0.70710677
        %v479 = vmul.f32 %v427, 0.70710677
        %v480 = vmul.f32 %v435, 0.70710677
        %v481 = vmul.f32 %v443, 0.70710677
        %v482 = vmul.f32 %v451, 0.70710677
        %v483 = vmul.f32 %v459, 0.70710677
        %vm484 = vcmask 15360
        %v486 = vsel %vm484, %v472, 0
        %v488 = vsel %vm484, %v367, 0
        %490 = vmatprep.subr.mxu0 0.0
        %491 = vmatpush1.xpose.msra.mxu0 %v488
        %492 = vmatprep.subr.mxu0 0.0
        %493 = vmatpush1.xpose.msra.mxu0 0.0
        %494 = vmatprep.subr.mxu0 0.0
        %495 = vmatpush1.xpose.msra.mxu0 0.0
        %496 = vmatprep.subr.mxu0 0.0
        %497 = vmatpush1.xpose.msra.mxu0 0.0
        %498 = vmatprep.subr.mxu0 0.0
        %499 = vmatpush1.xpose.msra.mxu0 0.0
        %500 = vmatprep.subr.mxu0 0.0
        %501 = vmatpush1.xpose.msra.mxu0 0.0
        %502 = vmatprep.subr.mxu0 0.0
        %503 = vmatpush1.xpose.msra.mxu0 0.0
        %504 = vmatprep.subr.mxu0 0.0
        %505 = vmatpush1.xpose.msra.mxu0 0.0
        %506 = vmatprep.subr.mxu0 0.0
        %507 = vmatpush1.xpose.msra.mxu0 0.0
        %508 = vmatprep.subr.mxu0 0.0
        %509 = vmatpush1.xpose.msra.mxu0 0.0
        %510 = vmatprep.subr.mxu0 0.0
        %511 = vmatpush1.xpose.msra.mxu0 0.0
        %512 = vmatprep.subr.mxu0 0.0
        %513 = vmatpush1.xpose.msra.mxu0 0.0
        %514 = vmatprep.subr.mxu0 0.0
        %515 = vmatpush1.xpose.msra.mxu0 0.0
        %516 = vmatprep.subr.mxu0 0.0
        %517 = vmatpush1.xpose.msra.mxu0 0.0
        %518 = vmatprep.subr.mxu0 0.0
        %519 = vmatpush1.xpose.msra.mxu0 0.0
        %520 = vmatprep.subr.mxu0 0.0
        %521 = vmatpush1.xpose.msra.mxu0 0.0
        %522 = vmatprep.subr.mxu0 0.0
        %523 = vmatpush1.xpose.msra.mxu0 0.0
        %524 = vmatprep.subr.mxu0 0.0
        %525 = vmatpush1.xpose.msra.mxu0 0.0
        %526 = vmatprep.subr.mxu0 0.0
        %527 = vmatpush1.xpose.msra.mxu0 0.0
        %528 = vmatprep.subr.mxu0 0.0
        %529 = vmatpush1.xpose.msra.mxu0 0.0
        %530 = vmatprep.subr.mxu0 0.0
        %531 = vmatpush1.xpose.msra.mxu0 0.0
        %532 = vmatprep.subr.mxu0 0.0
        %533 = vmatpush1.xpose.msra.mxu0 0.0
        %534 = vmatprep.subr.mxu0 0.0
        %535 = vmatpush1.xpose.msra.mxu0 0.0
        %536 = vmatprep.subr.mxu0 0.0
        %537 = vmatpush1.xpose.msra.mxu0 0.0
        %538 = vmatprep.subr.mxu0 0.0
        %539 = vmatpush1.xpose.msra.mxu0 0.0
        %540 = vmatprep.subr.mxu0 0.0
        %541 = vmatpush1.xpose.msra.mxu0 0.0
        %542 = vmatprep.subr.mxu0 0.0
        %543 = vmatpush1.xpose.msra.mxu0 0.0
        %544 = vmatprep.subr.mxu0 0.0
        %545 = vmatpush1.xpose.msra.mxu0 0.0
        %546 = vmatprep.subr.mxu0 0.0
        %547 = vmatpush1.xpose.msra.mxu0 0.0
        %548 = vmatprep.subr.mxu0 0.0
        %549 = vmatpush1.xpose.msra.mxu0 0.0
        %550 = vmatprep.subr.mxu0 0.0
        %551 = vmatpush1.xpose.msra.mxu0 0.0
        %552 = vmatprep.subr.mxu0 0.0
        %553 = vmatpush1.xpose.msra.mxu0 0.0
        %554 = vmatprep.mubr.f32.mxu0 0.0
        %555 = vmatmul.mubr.f32.gmra.mrb[0].mxu0 %v486
        %v556 = vpop.f32.mrb[0].mxu0
        %v557 = vadd.f32 %v471, %v556
        %v558 = vpop.f32.mrb[0].mxu0
        %559 = vdwg.mxu0
        %v561 = vsel %vm484, %v473, 0
        %v563 = vsel %vm484, %v381, 0
        %565 = vmatprep.subr.mxu0 0.0
        %566 = vmatpush1.xpose.msra.mxu0 %v563
        %567 = vmatprep.subr.mxu0 0.0
        %568 = vmatpush1.xpose.msra.mxu0 0.0
        %569 = vmatprep.subr.mxu0 0.0
        %570 = vmatpush1.xpose.msra.mxu0 0.0
        %571 = vmatprep.subr.mxu0 0.0
        %572 = vmatpush1.xpose.msra.mxu0 0.0
        %573 = vmatprep.subr.mxu0 0.0
        %574 = vmatpush1.xpose.msra.mxu0 0.0
        %575 = vmatprep.subr.mxu0 0.0
        %576 = vmatpush1.xpose.msra.mxu0 0.0
        %577 = vmatprep.subr.mxu0 0.0
        %578 = vmatpush1.xpose.msra.mxu0 0.0
        %579 = vmatprep.subr.mxu0 0.0
        %580 = vmatpush1.xpose.msra.mxu0 0.0
        %581 = vmatprep.subr.mxu0 0.0
        %582 = vmatpush1.xpose.msra.mxu0 0.0
        %583 = vmatprep.subr.mxu0 0.0
        %584 = vmatpush1.xpose.msra.mxu0 0.0
        %585 = vmatprep.subr.mxu0 0.0
        %586 = vmatpush1.xpose.msra.mxu0 0.0
        %587 = vmatprep.subr.mxu0 0.0
        %588 = vmatpush1.xpose.msra.mxu0 0.0
        %589 = vmatprep.subr.mxu0 0.0
        %590 = vmatpush1.xpose.msra.mxu0 0.0
        %591 = vmatprep.subr.mxu0 0.0
        %592 = vmatpush1.xpose.msra.mxu0 0.0
        %593 = vmatprep.subr.mxu0 0.0
        %594 = vmatpush1.xpose.msra.mxu0 0.0
        %595 = vmatprep.subr.mxu0 0.0
        %596 = vmatpush1.xpose.msra.mxu0 0.0
        %597 = vmatprep.subr.mxu0 0.0
        %598 = vmatpush1.xpose.msra.mxu0 0.0
        %599 = vmatprep.subr.mxu0 0.0
        %600 = vmatpush1.xpose.msra.mxu0 0.0
        %601 = vmatprep.subr.mxu0 0.0
        %602 = vmatpush1.xpose.msra.mxu0 0.0
        %603 = vmatprep.subr.mxu0 0.0
        %604 = vmatpush1.xpose.msra.mxu0 0.0
        %605 = vmatprep.subr.mxu0 0.0
        %606 = vmatpush1.xpose.msra.mxu0 0.0
        %607 = vmatprep.subr.mxu0 0.0
        %608 = vmatpush1.xpose.msra.mxu0 0.0
        %609 = vmatprep.subr.mxu0 0.0
        %610 = vmatpush1.xpose.msra.mxu0 0.0
        %611 = vmatprep.subr.mxu0 0.0
        %612 = vmatpush1.xpose.msra.mxu0 0.0
        %613 = vmatprep.subr.mxu0 0.0
        %614 = vmatpush1.xpose.msra.mxu0 0.0
        %615 = vmatprep.subr.mxu0 0.0
        %616 = vmatpush1.xpose.msra.mxu0 0.0
        %617 = vmatprep.subr.mxu0 0.0
        %618 = vmatpush1.xpose.msra.mxu0 0.0
        %619 = vmatprep.subr.mxu0 0.0
        %620 = vmatpush1.xpose.msra.mxu0 0.0
        %621 = vmatprep.subr.mxu0 0.0
        %622 = vmatpush1.xpose.msra.mxu0 0.0
        %623 = vmatprep.subr.mxu0 0.0
        %624 = vmatpush1.xpose.msra.mxu0 0.0
        %625 = vmatprep.subr.mxu0 0.0
        %626 = vmatpush1.xpose.msra.mxu0 0.0
        %627 = vmatprep.subr.mxu0 0.0
        %628 = vmatpush1.xpose.msra.mxu0 0.0
        %629 = vmatprep.mubr.f32.mxu0 0.0
        %630 = vmatmul.mubr.f32.gmra.mrb[0].mxu0 %v561
        %v631 = vpop.f32.mrb[0].mxu0
        %v632 = vadd.f32 %v471, %v631
        %v633 = vpop.f32.mrb[0].mxu0
        %634 = vdwg.mxu0
        %v636 = vsel %vm484, %v474, 0
        %v638 = vsel %vm484, %v389, 0
        %640 = vmatprep.subr.mxu0 0.0
        %641 = vmatpush1.xpose.msra.mxu0 %v638
        %642 = vmatprep.subr.mxu0 0.0
        %643 = vmatpush1.xpose.msra.mxu0 0.0
        %644 = vmatprep.subr.mxu0 0.0
        %645 = vmatpush1.xpose.msra.mxu0 0.0
        %646 = vmatprep.subr.mxu0 0.0
        %647 = vmatpush1.xpose.msra.mxu0 0.0
        %648 = vmatprep.subr.mxu0 0.0
        %649 = vmatpush1.xpose.msra.mxu0 0.0
        %650 = vmatprep.subr.mxu0 0.0
        %651 = vmatpush1.xpose.msra.mxu0 0.0
        %652 = vmatprep.subr.mxu0 0.0
        %653 = vmatpush1.xpose.msra.mxu0 0.0
        %654 = vmatprep.subr.mxu0 0.0
        %655 = vmatpush1.xpose.msra.mxu0 0.0
        %656 = vmatprep.subr.mxu0 0.0
        %657 = vmatpush1.xpose.msra.mxu0 0.0
        %658 = vmatprep.subr.mxu0 0.0
        %659 = vmatpush1.xpose.msra.mxu0 0.0
        %660 = vmatprep.subr.mxu0 0.0
        %661 = vmatpush1.xpose.msra.mxu0 0.0
        %662 = vmatprep.subr.mxu0 0.0
        %663 = vmatpush1.xpose.msra.mxu0 0.0
        %664 = vmatprep.subr.mxu0 0.0
        %665 = vmatpush1.xpose.msra.mxu0 0.0
        %666 = vmatprep.subr.mxu0 0.0
        %667 = vmatpush1.xpose.msra.mxu0 0.0
        %668 = vmatprep.subr.mxu0 0.0
        %669 = vmatpush1.xpose.msra.mxu0 0.0
        %670 = vmatprep.subr.mxu0 0.0
        %671 = vmatpush1.xpose.msra.mxu0 0.0
        %672 = vmatprep.subr.mxu0 0.0
        %673 = vmatpush1.xpose.msra.mxu0 0.0
        %674 = vmatprep.subr.mxu0 0.0
        %675 = vmatpush1.xpose.msra.mxu0 0.0
        %676 = vmatprep.subr.mxu0 0.0
        %677 = vmatpush1.xpose.msra.mxu0 0.0
        %678 = vmatprep.subr.mxu0 0.0
        %679 = vmatpush1.xpose.msra.mxu0 0.0
        %680 = vmatprep.subr.mxu0 0.0
        %681 = vmatpush1.xpose.msra.mxu0 0.0
        %682 = vmatprep.subr.mxu0 0.0
        %683 = vmatpush1.xpose.msra.mxu0 0.0
        %684 = vmatprep.subr.mxu0 0.0
        %685 = vmatpush1.xpose.msra.mxu0 0.0
        %686 = vmatprep.subr.mxu0 0.0
        %687 = vmatpush1.xpose.msra.mxu0 0.0
        %688 = vmatprep.subr.mxu0 0.0
        %689 = vmatpush1.xpose.msra.mxu0 0.0
        %690 = vmatprep.subr.mxu0 0.0
        %691 = vmatpush1.xpose.msra.mxu0 0.0
        %692 = vmatprep.subr.mxu0 0.0
        %693 = vmatpush1.xpose.msra.mxu0 0.0
        %694 = vmatprep.subr.mxu0 0.0
        %695 = vmatpush1.xpose.msra.mxu0 0.0
        %696 = vmatprep.subr.mxu0 0.0
        %697 = vmatpush1.xpose.msra.mxu0 0.0
        %698 = vmatprep.subr.mxu0 0.0
        %699 = vmatpush1.xpose.msra.mxu0 0.0
        %700 = vmatprep.subr.mxu0 0.0
        %701 = vmatpush1.xpose.msra.mxu0 0.0
        %702 = vmatprep.subr.mxu0 0.0
        %703 = vmatpush1.xpose.msra.mxu0 0.0
        %704 = vmatprep.mubr.f32.mxu0 0.0
        %705 = vmatmul.mubr.f32.gmra.mrb[0].mxu0 %v636
        %v706 = vpop.f32.mrb[0].mxu0
        %v707 = vadd.f32 %v471, %v706
        %v708 = vpop.f32.mrb[0].mxu0
        %709 = vdwg.mxu0
        %v711 = vsel %vm484, %v475, 0
        %v713 = vsel %vm484, %v397, 0
        %715 = vmatprep.subr.mxu0 0.0
        %716 = vmatpush1.xpose.msra.mxu0 %v713
        %717 = vmatprep.subr.mxu0 0.0
        %718 = vmatpush1.xpose.msra.mxu0 0.0
        %719 = vmatprep.subr.mxu0 0.0
        %720 = vmatpush1.xpose.msra.mxu0 0.0
        %721 = vmatprep.subr.mxu0 0.0
        %722 = vmatpush1.xpose.msra.mxu0 0.0
        %723 = vmatprep.subr.mxu0 0.0
        %724 = vmatpush1.xpose.msra.mxu0 0.0
        %725 = vmatprep.subr.mxu0 0.0
        %726 = vmatpush1.xpose.msra.mxu0 0.0
        %727 = vmatprep.subr.mxu0 0.0
        %728 = vmatpush1.xpose.msra.mxu0 0.0
        %729 = vmatprep.subr.mxu0 0.0
        %730 = vmatpush1.xpose.msra.mxu0 0.0
        %731 = vmatprep.subr.mxu0 0.0
        %732 = vmatpush1.xpose.msra.mxu0 0.0
        %733 = vmatprep.subr.mxu0 0.0
        %734 = vmatpush1.xpose.msra.mxu0 0.0
        %735 = vmatprep.subr.mxu0 0.0
        %736 = vmatpush1.xpose.msra.mxu0 0.0
        %737 = vmatprep.subr.mxu0 0.0
        %738 = vmatpush1.xpose.msra.mxu0 0.0
        %739 = vmatprep.subr.mxu0 0.0
        %740 = vmatpush1.xpose.msra.mxu0 0.0
        %741 = vmatprep.subr.mxu0 0.0
        %742 = vmatpush1.xpose.msra.mxu0 0.0
        %743 = vmatprep.subr.mxu0 0.0
        %744 = vmatpush1.xpose.msra.mxu0 0.0
        %745 = vmatprep.subr.mxu0 0.0
        %746 = vmatpush1.xpose.msra.mxu0 0.0
        %747 = vmatprep.subr.mxu0 0.0
        %748 = vmatpush1.xpose.msra.mxu0 0.0
        %749 = vmatprep.subr.mxu0 0.0
        %750 = vmatpush1.xpose.msra.mxu0 0.0
        %751 = vmatprep.subr.mxu0 0.0
        %752 = vmatpush1.xpose.msra.mxu0 0.0
        %753 = vmatprep.subr.mxu0 0.0
        %754 = vmatpush1.xpose.msra.mxu0 0.0
        %755 = vmatprep.subr.mxu0 0.0
        %756 = vmatpush1.xpose.msra.mxu0 0.0
        %757 = vmatprep.subr.mxu0 0.0
        %758 = vmatpush1.xpose.msra.mxu0 0.0
        %759 = vmatprep.subr.mxu0 0.0
        %760 = vmatpush1.xpose.msra.mxu0 0.0
        %761 = vmatprep.subr.mxu0 0.0
        %762 = vmatpush1.xpose.msra.mxu0 0.0
        %763 = vmatprep.subr.mxu0 0.0
        %764 = vmatpush1.xpose.msra.mxu0 0.0
        %765 = vmatprep.subr.mxu0 0.0
        %766 = vmatpush1.xpose.msra.mxu0 0.0
        %767 = vmatprep.subr.mxu0 0.0
        %768 = vmatpush1.xpose.msra.mxu0 0.0
        %769 = vmatprep.subr.mxu0 0.0
        %770 = vmatpush1.xpose.msra.mxu0 0.0
        %771 = vmatprep.subr.mxu0 0.0
        %772 = vmatpush1.xpose.msra.mxu0 0.0
        %773 = vmatprep.subr.mxu0 0.0
        %774 = vmatpush1.xpose.msra.mxu0 0.0
        %775 = vmatprep.subr.mxu0 0.0
        %776 = vmatpush1.xpose.msra.mxu0 0.0
        %777 = vmatprep.subr.mxu0 0.0
        %778 = vmatpush1.xpose.msra.mxu0 0.0
        %779 = vmatprep.mubr.f32.mxu0 0.0
        %780 = vmatmul.mubr.f32.gmra.mrb[0].mxu0 %v711
        %v781 = vpop.f32.mrb[0].mxu0
        %v782 = vadd.f32 %v471, %v781
        %v783 = vpop.f32.mrb[0].mxu0
        %784 = vdwg.mxu0
        %v786 = vsel %vm484, %v476, 0
        %v788 = vsel %vm484, %v405, 0
        %790 = vmatprep.subr.mxu0 0.0
        %791 = vmatpush1.xpose.msra.mxu0 %v788
        %792 = vmatprep.subr.mxu0 0.0
        %793 = vmatpush1.xpose.msra.mxu0 0.0
        %794 = vmatprep.subr.mxu0 0.0
        %795 = vmatpush1.xpose.msra.mxu0 0.0
        %796 = vmatprep.subr.mxu0 0.0
        %797 = vmatpush1.xpose.msra.mxu0 0.0
        %798 = vmatprep.subr.mxu0 0.0
        %799 = vmatpush1.xpose.msra.mxu0 0.0
        %800 = vmatprep.subr.mxu0 0.0
        %801 = vmatpush1.xpose.msra.mxu0 0.0
        %802 = vmatprep.subr.mxu0 0.0
        %803 = vmatpush1.xpose.msra.mxu0 0.0
        %804 = vmatprep.subr.mxu0 0.0
        %805 = vmatpush1.xpose.msra.mxu0 0.0
        %806 = vmatprep.subr.mxu0 0.0
        %807 = vmatpush1.xpose.msra.mxu0 0.0
        %808 = vmatprep.subr.mxu0 0.0
        %809 = vmatpush1.xpose.msra.mxu0 0.0
        %810 = vmatprep.subr.mxu0 0.0
        %811 = vmatpush1.xpose.msra.mxu0 0.0
        %812 = vmatprep.subr.mxu0 0.0
        %813 = vmatpush1.xpose.msra.mxu0 0.0
        %814 = vmatprep.subr.mxu0 0.0
        %815 = vmatpush1.xpose.msra.mxu0 0.0
        %816 = vmatprep.subr.mxu0 0.0
        %817 = vmatpush1.xpose.msra.mxu0 0.0
        %818 = vmatprep.subr.mxu0 0.0
        %819 = vmatpush1.xpose.msra.mxu0 0.0
        %820 = vmatprep.subr.mxu0 0.0
        %821 = vmatpush1.xpose.msra.mxu0 0.0
        %822 = vmatprep.subr.mxu0 0.0
        %823 = vmatpush1.xpose.msra.mxu0 0.0
        %824 = vmatprep.subr.mxu0 0.0
        %825 = vmatpush1.xpose.msra.mxu0 0.0
        %826 = vmatprep.subr.mxu0 0.0
        %827 = vmatpush1.xpose.msra.mxu0 0.0
        %828 = vmatprep.subr.mxu0 0.0
        %829 = vmatpush1.xpose.msra.mxu0 0.0
        %830 = vmatprep.subr.mxu0 0.0
        %831 = vmatpush1.xpose.msra.mxu0 0.0
        %832 = vmatprep.subr.mxu0 0.0
        %833 = vmatpush1.xpose.msra.mxu0 0.0
        %834 = vmatprep.subr.mxu0 0.0
        %835 = vmatpush1.xpose.msra.mxu0 0.0
        %836 = vmatprep.subr.mxu0 0.0
        %837 = vmatpush1.xpose.msra.mxu0 0.0
        %838 = vmatprep.subr.mxu0 0.0
        %839 = vmatpush1.xpose.msra.mxu0 0.0
        %840 = vmatprep.subr.mxu0 0.0
        %841 = vmatpush1.xpose.msra.mxu0 0.0
        %842 = vmatprep.subr.mxu0 0.0
        %843 = vmatpush1.xpose.msra.mxu0 0.0
        %844 = vmatprep.subr.mxu0 0.0
        %845 = vmatpush1.xpose.msra.mxu0 0.0
        %846 = vmatprep.subr.mxu0 0.0
        %847 = vmatpush1.xpose.msra.mxu0 0.0
        %848 = vmatprep.subr.mxu0 0.0
        %849 = vmatpush1.xpose.msra.mxu0 0.0
        %850 = vmatprep.subr.mxu0 0.0
        %851 = vmatpush1.xpose.msra.mxu0 0.0
        %852 = vmatprep.subr.mxu0 0.0
        %853 = vmatpush1.xpose.msra.mxu0 0.0
        %854 = vmatprep.mubr.f32.mxu0 0.0
        %855 = vmatmul.mubr.f32.gmra.mrb[0].mxu0 %v786
        %v856 = vpop.f32.mrb[0].mxu0
        %v857 = vadd.f32 %v471, %v856
        %v858 = vpop.f32.mrb[0].mxu0
        %859 = vdwg.mxu0
        %v861 = vsel %vm484, %v477, 0
        %v863 = vsel %vm484, %v413, 0
        %865 = vmatprep.subr.mxu0 0.0
        %866 = vmatpush1.xpose.msra.mxu0 %v863
        %867 = vmatprep.subr.mxu0 0.0
        %868 = vmatpush1.xpose.msra.mxu0 0.0
        %869 = vmatprep.subr.mxu0 0.0
        %870 = vmatpush1.xpose.msra.mxu0 0.0
        %871 = vmatprep.subr.mxu0 0.0
        %872 = vmatpush1.xpose.msra.mxu0 0.0
        %873 = vmatprep.subr.mxu0 0.0
        %874 = vmatpush1.xpose.msra.mxu0 0.0
        %875 = vmatprep.subr.mxu0 0.0
        %876 = vmatpush1.xpose.msra.mxu0 0.0
        %877 = vmatprep.subr.mxu0 0.0
        %878 = vmatpush1.xpose.msra.mxu0 0.0
        %879 = vmatprep.subr.mxu0 0.0
        %880 = vmatpush1.xpose.msra.mxu0 0.0
        %881 = vmatprep.subr.mxu0 0.0
        %882 = vmatpush1.xpose.msra.mxu0 0.0
        %883 = vmatprep.subr.mxu0 0.0
        %884 = vmatpush1.xpose.msra.mxu0 0.0
        %885 = vmatprep.subr.mxu0 0.0
        %886 = vmatpush1.xpose.msra.mxu0 0.0
        %887 = vmatprep.subr.mxu0 0.0
        %888 = vmatpush1.xpose.msra.mxu0 0.0
        %889 = vmatprep.subr.mxu0 0.0
        %890 = vmatpush1.xpose.msra.mxu0 0.0
        %891 = vmatprep.subr.mxu0 0.0
        %892 = vmatpush1.xpose.msra.mxu0 0.0
        %893 = vmatprep.subr.mxu0 0.0
        %894 = vmatpush1.xpose.msra.mxu0 0.0
        %895 = vmatprep.subr.mxu0 0.0
        %896 = vmatpush1.xpose.msra.mxu0 0.0
        %897 = vmatprep.subr.mxu0 0.0
        %898 = vmatpush1.xpose.msra.mxu0 0.0
        %899 = vmatprep.subr.mxu0 0.0
        %900 = vmatpush1.xpose.msra.mxu0 0.0
        %901 = vmatprep.subr.mxu0 0.0
        %902 = vmatpush1.xpose.msra.mxu0 0.0
        %903 = vmatprep.subr.mxu0 0.0
        %904 = vmatpush1.xpose.msra.mxu0 0.0
        %905 = vmatprep.subr.mxu0 0.0
        %906 = vmatpush1.xpose.msra.mxu0 0.0
        %907 = vmatprep.subr.mxu0 0.0
        %908 = vmatpush1.xpose.msra.mxu0 0.0
        %909 = vmatprep.subr.mxu0 0.0
        %910 = vmatpush1.xpose.msra.mxu0 0.0
        %911 = vmatprep.subr.mxu0 0.0
        %912 = vmatpush1.xpose.msra.mxu0 0.0
        %913 = vmatprep.subr.mxu0 0.0
        %914 = vmatpush1.xpose.msra.mxu0 0.0
        %915 = vmatprep.subr.mxu0 0.0
        %916 = vmatpush1.xpose.msra.mxu0 0.0
        %917 = vmatprep.subr.mxu0 0.0
        %918 = vmatpush1.xpose.msra.mxu0 0.0
        %919 = vmatprep.subr.mxu0 0.0
        %920 = vmatpush1.xpose.msra.mxu0 0.0
        %921 = vmatprep.subr.mxu0 0.0
        %922 = vmatpush1.xpose.msra.mxu0 0.0
        %923 = vmatprep.subr.mxu0 0.0
        %924 = vmatpush1.xpose.msra.mxu0 0.0
        %925 = vmatprep.subr.mxu0 0.0
        %926 = vmatpush1.xpose.msra.mxu0 0.0
        %927 = vmatprep.subr.mxu0 0.0
        %928 = vmatpush1.xpose.msra.mxu0 0.0
        %929 = vmatprep.mubr.f32.mxu0 0.0
        %930 = vmatmul.mubr.f32.gmra.mrb[0].mxu0 %v861
        %v931 = vpop.f32.mrb[0].mxu0
        %v932 = vadd.f32 %v471, %v931
        %v933 = vpop.f32.mrb[0].mxu0
        %934 = vdwg.mxu0
        %v936 = vsel %vm484, %v478, 0
        %v938 = vsel %vm484, %v421, 0
        %940 = vmatprep.subr.mxu0 0.0
        %941 = vmatpush1.xpose.msra.mxu0 %v938
        %942 = vmatprep.subr.mxu0 0.0
        %943 = vmatpush1.xpose.msra.mxu0 0.0
        %944 = vmatprep.subr.mxu0 0.0
        %945 = vmatpush1.xpose.msra.mxu0 0.0
        %946 = vmatprep.subr.mxu0 0.0
        %947 = vmatpush1.xpose.msra.mxu0 0.0
        %948 = vmatprep.subr.mxu0 0.0
        %949 = vmatpush1.xpose.msra.mxu0 0.0
        %950 = vmatprep.subr.mxu0 0.0
        %951 = vmatpush1.xpose.msra.mxu0 0.0
        %952 = vmatprep.subr.mxu0 0.0
        %953 = vmatpush1.xpose.msra.mxu0 0.0
        %954 = vmatprep.subr.mxu0 0.0
        %955 = vmatpush1.xpose.msra.mxu0 0.0
        %956 = vmatprep.subr.mxu0 0.0
        %957 = vmatpush1.xpose.msra.mxu0 0.0
        %958 = vmatprep.subr.mxu0 0.0
        %959 = vmatpush1.xpose.msra.mxu0 0.0
        %960 = vmatprep.subr.mxu0 0.0
        %961 = vmatpush1.xpose.msra.mxu0 0.0
        %962 = vmatprep.subr.mxu0 0.0
        %963 = vmatpush1.xpose.msra.mxu0 0.0
        %964 = vmatprep.subr.mxu0 0.0
        %965 = vmatpush1.xpose.msra.mxu0 0.0
        %966 = vmatprep.subr.mxu0 0.0
        %967 = vmatpush1.xpose.msra.mxu0 0.0
        %968 = vmatprep.subr.mxu0 0.0
        %969 = vmatpush1.xpose.msra.mxu0 0.0
        %970 = vmatprep.subr.mxu0 0.0
        %971 = vmatpush1.xpose.msra.mxu0 0.0
        %972 = vmatprep.subr.mxu0 0.0
        %973 = vmatpush1.xpose.msra.mxu0 0.0
        %974 = vmatprep.subr.mxu0 0.0
        %975 = vmatpush1.xpose.msra.mxu0 0.0
        %976 = vmatprep.subr.mxu0 0.0
        %977 = vmatpush1.xpose.msra.mxu0 0.0
        %978 = vmatprep.subr.mxu0 0.0
        %979 = vmatpush1.xpose.msra.mxu0 0.0
        %980 = vmatprep.subr.mxu0 0.0
        %981 = vmatpush1.xpose.msra.mxu0 0.0
        %982 = vmatprep.subr.mxu0 0.0
        %983 = vmatpush1.xpose.msra.mxu0 0.0
        %984 = vmatprep.subr.mxu0 0.0
        %985 = vmatpush1.xpose.msra.mxu0 0.0
        %986 = vmatprep.subr.mxu0 0.0
        %987 = vmatpush1.xpose.msra.mxu0 0.0
        %988 = vmatprep.subr.mxu0 0.0
        %989 = vmatpush1.xpose.msra.mxu0 0.0
        %990 = vmatprep.subr.mxu0 0.0
        %991 = vmatpush1.xpose.msra.mxu0 0.0
        %992 = vmatprep.subr.mxu0 0.0
        %993 = vmatpush1.xpose.msra.mxu0 0.0
        %994 = vmatprep.subr.mxu0 0.0
        %995 = vmatpush1.xpose.msra.mxu0 0.0
        %996 = vmatprep.subr.mxu0 0.0
        %997 = vmatpush1.xpose.msra.mxu0 0.0
        %998 = vmatprep.subr.mxu0 0.0
        %999 = vmatpush1.xpose.msra.mxu0 0.0
        %1000 = vmatprep.subr.mxu0 0.0
        %1001 = vmatpush1.xpose.msra.mxu0 0.0
        %1002 = vmatprep.subr.mxu0 0.0
        %1003 = vmatpush1.xpose.msra.mxu0 0.0
        %1004 = vmatprep.mubr.f32.mxu0 0.0
        %1005 = vmatmul.mubr.f32.gmra.mrb[0].mxu0 %v936
        %v1006 = vpop.f32.mrb[0].mxu0
        %v1007 = vadd.f32 %v471, %v1006
        %v1008 = vpop.f32.mrb[0].mxu0
        %1009 = vdwg.mxu0
        %v1011 = vsel %vm484, %v479, 0
        %v1013 = vsel %vm484, %v429, 0
        %1015 = vmatprep.subr.mxu0 0.0
        %1016 = vmatpush1.xpose.msra.mxu0 %v1013
        %1017 = vmatprep.subr.mxu0 0.0
        %1018 = vmatpush1.xpose.msra.mxu0 0.0
        %1019 = vmatprep.subr.mxu0 0.0
        %1020 = vmatpush1.xpose.msra.mxu0 0.0
        %1021 = vmatprep.subr.mxu0 0.0
        %1022 = vmatpush1.xpose.msra.mxu0 0.0
        %1023 = vmatprep.subr.mxu0 0.0
        %1024 = vmatpush1.xpose.msra.mxu0 0.0
        %1025 = vmatprep.subr.mxu0 0.0
        %1026 = vmatpush1.xpose.msra.mxu0 0.0
        %1027 = vmatprep.subr.mxu0 0.0
        %1028 = vmatpush1.xpose.msra.mxu0 0.0
        %1029 = vmatprep.subr.mxu0 0.0
        %1030 = vmatpush1.xpose.msra.mxu0 0.0
        %1031 = vmatprep.subr.mxu0 0.0
        %1032 = vmatpush1.xpose.msra.mxu0 0.0
        %1033 = vmatprep.subr.mxu0 0.0
        %1034 = vmatpush1.xpose.msra.mxu0 0.0
        %1035 = vmatprep.subr.mxu0 0.0
        %1036 = vmatpush1.xpose.msra.mxu0 0.0
        %1037 = vmatprep.subr.mxu0 0.0
        %1038 = vmatpush1.xpose.msra.mxu0 0.0
        %1039 = vmatprep.subr.mxu0 0.0
        %1040 = vmatpush1.xpose.msra.mxu0 0.0
        %1041 = vmatprep.subr.mxu0 0.0
        %1042 = vmatpush1.xpose.msra.mxu0 0.0
        %1043 = vmatprep.subr.mxu0 0.0
        %1044 = vmatpush1.xpose.msra.mxu0 0.0
        %1045 = vmatprep.subr.mxu0 0.0
        %1046 = vmatpush1.xpose.msra.mxu0 0.0
        %1047 = vmatprep.subr.mxu0 0.0
        %1048 = vmatpush1.xpose.msra.mxu0 0.0
        %1049 = vmatprep.subr.mxu0 0.0
        %1050 = vmatpush1.xpose.msra.mxu0 0.0
        %1051 = vmatprep.subr.mxu0 0.0
        %1052 = vmatpush1.xpose.msra.mxu0 0.0
        %1053 = vmatprep.subr.mxu0 0.0
        %1054 = vmatpush1.xpose.msra.mxu0 0.0
        %1055 = vmatprep.subr.mxu0 0.0
        %1056 = vmatpush1.xpose.msra.mxu0 0.0
        %1057 = vmatprep.subr.mxu0 0.0
        %1058 = vmatpush1.xpose.msra.mxu0 0.0
        %1059 = vmatprep.subr.mxu0 0.0
        %1060 = vmatpush1.xpose.msra.mxu0 0.0
        %1061 = vmatprep.subr.mxu0 0.0
        %1062 = vmatpush1.xpose.msra.mxu0 0.0
        %1063 = vmatprep.subr.mxu0 0.0
        %1064 = vmatpush1.xpose.msra.mxu0 0.0
        %1065 = vmatprep.subr.mxu0 0.0
        %1066 = vmatpush1.xpose.msra.mxu0 0.0
        %1067 = vmatprep.subr.mxu0 0.0
        %1068 = vmatpush1.xpose.msra.mxu0 0.0
        %1069 = vmatprep.subr.mxu0 0.0
        %1070 = vmatpush1.xpose.msra.mxu0 0.0
        %1071 = vmatprep.subr.mxu0 0.0
        %1072 = vmatpush1.xpose.msra.mxu0 0.0
        %1073 = vmatprep.subr.mxu0 0.0
        %1074 = vmatpush1.xpose.msra.mxu0 0.0
        %1075 = vmatprep.subr.mxu0 0.0
        %1076 = vmatpush1.xpose.msra.mxu0 0.0
        %1077 = vmatprep.subr.mxu0 0.0
        %1078 = vmatpush1.xpose.msra.mxu0 0.0
        %1079 = vmatprep.mubr.f32.mxu0 0.0
        %1080 = vmatmul.mubr.f32.gmra.mrb[0].mxu0 %v1011
        %v1081 = vpop.f32.mrb[0].mxu0
        %v1082 = vadd.f32 %v471, %v1081
        %v1083 = vpop.f32.mrb[0].mxu0
        %1084 = vdwg.mxu0
        %v1086 = vsel %vm484, %v480, 0
        %v1088 = vsel %vm484, %v437, 0
        %1090 = vmatprep.subr.mxu0 0.0
        %1091 = vmatpush1.xpose.msra.mxu0 %v1088
        %1092 = vmatprep.subr.mxu0 0.0
        %1093 = vmatpush1.xpose.msra.mxu0 0.0
        %1094 = vmatprep.subr.mxu0 0.0
        %1095 = vmatpush1.xpose.msra.mxu0 0.0
        %1096 = vmatprep.subr.mxu0 0.0
        %1097 = vmatpush1.xpose.msra.mxu0 0.0
        %1098 = vmatprep.subr.mxu0 0.0
        %1099 = vmatpush1.xpose.msra.mxu0 0.0
        %1100 = vmatprep.subr.mxu0 0.0
        %1101 = vmatpush1.xpose.msra.mxu0 0.0
        %1102 = vmatprep.subr.mxu0 0.0
        %1103 = vmatpush1.xpose.msra.mxu0 0.0
        %1104 = vmatprep.subr.mxu0 0.0
        %1105 = vmatpush1.xpose.msra.mxu0 0.0
        %1106 = vmatprep.subr.mxu0 0.0
        %1107 = vmatpush1.xpose.msra.mxu0 0.0
        %1108 = vmatprep.subr.mxu0 0.0
        %1109 = vmatpush1.xpose.msra.mxu0 0.0
        %1110 = vmatprep.subr.mxu0 0.0
        %1111 = vmatpush1.xpose.msra.mxu0 0.0
        %1112 = vmatprep.subr.mxu0 0.0
        %1113 = vmatpush1.xpose.msra.mxu0 0.0
        %1114 = vmatprep.subr.mxu0 0.0
        %1115 = vmatpush1.xpose.msra.mxu0 0.0
        %1116 = vmatprep.subr.mxu0 0.0
        %1117 = vmatpush1.xpose.msra.mxu0 0.0
        %1118 = vmatprep.subr.mxu0 0.0
        %1119 = vmatpush1.xpose.msra.mxu0 0.0
        %1120 = vmatprep.subr.mxu0 0.0
        %1121 = vmatpush1.xpose.msra.mxu0 0.0
        %1122 = vmatprep.subr.mxu0 0.0
        %1123 = vmatpush1.xpose.msra.mxu0 0.0
        %1124 = vmatprep.subr.mxu0 0.0
        %1125 = vmatpush1.xpose.msra.mxu0 0.0
        %1126 = vmatprep.subr.mxu0 0.0
        %1127 = vmatpush1.xpose.msra.mxu0 0.0
        %1128 = vmatprep.subr.mxu0 0.0
        %1129 = vmatpush1.xpose.msra.mxu0 0.0
        %1130 = vmatprep.subr.mxu0 0.0
        %1131 = vmatpush1.xpose.msra.mxu0 0.0
        %1132 = vmatprep.subr.mxu0 0.0
        %1133 = vmatpush1.xpose.msra.mxu0 0.0
        %1134 = vmatprep.subr.mxu0 0.0
        %1135 = vmatpush1.xpose.msra.mxu0 0.0
        %1136 = vmatprep.subr.mxu0 0.0
        %1137 = vmatpush1.xpose.msra.mxu0 0.0
        %1138 = vmatprep.subr.mxu0 0.0
        %1139 = vmatpush1.xpose.msra.mxu0 0.0
        %1140 = vmatprep.subr.mxu0 0.0
        %1141 = vmatpush1.xpose.msra.mxu0 0.0
        %1142 = vmatprep.subr.mxu0 0.0
        %1143 = vmatpush1.xpose.msra.mxu0 0.0
        %1144 = vmatprep.subr.mxu0 0.0
        %1145 = vmatpush1.xpose.msra.mxu0 0.0
        %1146 = vmatprep.subr.mxu0 0.0
        %1147 = vmatpush1.xpose.msra.mxu0 0.0
        %1148 = vmatprep.subr.mxu0 0.0
        %1149 = vmatpush1.xpose.msra.mxu0 0.0
        %1150 = vmatprep.subr.mxu0 0.0
        %1151 = vmatpush1.xpose.msra.mxu0 0.0
        %1152 = vmatprep.subr.mxu0 0.0
        %1153 = vmatpush1.xpose.msra.mxu0 0.0
        %1154 = vmatprep.mubr.f32.mxu0 0.0
        %1155 = vmatmul.mubr.f32.gmra.mrb[0].mxu0 %v1086
        %v1156 = vpop.f32.mrb[0].mxu0
        %v1157 = vadd.f32 %v471, %v1156
        %v1158 = vpop.f32.mrb[0].mxu0
        %1159 = vdwg.mxu0
        %v1161 = vsel %vm484, %v481, 0
        %v1163 = vsel %vm484, %v445, 0
        %1165 = vmatprep.subr.mxu0 0.0
        %1166 = vmatpush1.xpose.msra.mxu0 %v1163
        %1167 = vmatprep.subr.mxu0 0.0
        %1168 = vmatpush1.xpose.msra.mxu0 0.0
        %1169 = vmatprep.subr.mxu0 0.0
        %1170 = vmatpush1.xpose.msra.mxu0 0.0
        %1171 = vmatprep.subr.mxu0 0.0
        %1172 = vmatpush1.xpose.msra.mxu0 0.0
        %1173 = vmatprep.subr.mxu0 0.0
        %1174 = vmatpush1.xpose.msra.mxu0 0.0
        %1175 = vmatprep.subr.mxu0 0.0
        %1176 = vmatpush1.xpose.msra.mxu0 0.0
        %1177 = vmatprep.subr.mxu0 0.0
        %1178 = vmatpush1.xpose.msra.mxu0 0.0
        %1179 = vmatprep.subr.mxu0 0.0
        %1180 = vmatpush1.xpose.msra.mxu0 0.0
        %1181 = vmatprep.subr.mxu0 0.0
        %1182 = vmatpush1.xpose.msra.mxu0 0.0
        %1183 = vmatprep.subr.mxu0 0.0
        %1184 = vmatpush1.xpose.msra.mxu0 0.0
        %1185 = vmatprep.subr.mxu0 0.0
        %1186 = vmatpush1.xpose.msra.mxu0 0.0
        %1187 = vmatprep.subr.mxu0 0.0
        %1188 = vmatpush1.xpose.msra.mxu0 0.0
        %1189 = vmatprep.subr.mxu0 0.0
        %1190 = vmatpush1.xpose.msra.mxu0 0.0
        %1191 = vmatprep.subr.mxu0 0.0
        %1192 = vmatpush1.xpose.msra.mxu0 0.0
        %1193 = vmatprep.subr.mxu0 0.0
        %1194 = vmatpush1.xpose.msra.mxu0 0.0
        %1195 = vmatprep.subr.mxu0 0.0
        %1196 = vmatpush1.xpose.msra.mxu0 0.0
        %1197 = vmatprep.subr.mxu0 0.0
        %1198 = vmatpush1.xpose.msra.mxu0 0.0
        %1199 = vmatprep.subr.mxu0 0.0
        %1200 = vmatpush1.xpose.msra.mxu0 0.0
        %1201 = vmatprep.subr.mxu0 0.0
        %1202 = vmatpush1.xpose.msra.mxu0 0.0
        %1203 = vmatprep.subr.mxu0 0.0
        %1204 = vmatpush1.xpose.msra.mxu0 0.0
        %1205 = vmatprep.subr.mxu0 0.0
        %1206 = vmatpush1.xpose.msra.mxu0 0.0
        %1207 = vmatprep.subr.mxu0 0.0
        %1208 = vmatpush1.xpose.msra.mxu0 0.0
        %1209 = vmatprep.subr.mxu0 0.0
        %1210 = vmatpush1.xpose.msra.mxu0 0.0
        %1211 = vmatprep.subr.mxu0 0.0
        %1212 = vmatpush1.xpose.msra.mxu0 0.0
        %1213 = vmatprep.subr.mxu0 0.0
        %1214 = vmatpush1.xpose.msra.mxu0 0.0
        %1215 = vmatprep.subr.mxu0 0.0
        %1216 = vmatpush1.xpose.msra.mxu0 0.0
        %1217 = vmatprep.subr.mxu0 0.0
        %1218 = vmatpush1.xpose.msra.mxu0 0.0
        %1219 = vmatprep.subr.mxu0 0.0
        %1220 = vmatpush1.xpose.msra.mxu0 0.0
        %1221 = vmatprep.subr.mxu0 0.0
        %1222 = vmatpush1.xpose.msra.mxu0 0.0
        %1223 = vmatprep.subr.mxu0 0.0
        %1224 = vmatpush1.xpose.msra.mxu0 0.0
        %1225 = vmatprep.subr.mxu0 0.0
        %1226 = vmatpush1.xpose.msra.mxu0 0.0
        %1227 = vmatprep.subr.mxu0 0.0
        %1228 = vmatpush1.xpose.msra.mxu0 0.0
        %1229 = vmatprep.mubr.f32.mxu0 0.0
        %1230 = vmatmul.mubr.f32.gmra.mrb[0].mxu0 %v1161
        %v1231 = vpop.f32.mrb[0].mxu0
        %v1232 = vadd.f32 %v471, %v1231
        %v1233 = vpop.f32.mrb[0].mxu0
        %1234 = vdwg.mxu0
        %v1236 = vsel %vm484, %v482, 0
        %v1238 = vsel %vm484, %v453, 0
        %1240 = vmatprep.subr.mxu0 0.0
        %1241 = vmatpush1.xpose.msra.mxu0 %v1238
        %1242 = vmatprep.subr.mxu0 0.0
        %1243 = vmatpush1.xpose.msra.mxu0 0.0
        %1244 = vmatprep.subr.mxu0 0.0
        %1245 = vmatpush1.xpose.msra.mxu0 0.0
        %1246 = vmatprep.subr.mxu0 0.0
        %1247 = vmatpush1.xpose.msra.mxu0 0.0
        %1248 = vmatprep.subr.mxu0 0.0
        %1249 = vmatpush1.xpose.msra.mxu0 0.0
        %1250 = vmatprep.subr.mxu0 0.0
        %1251 = vmatpush1.xpose.msra.mxu0 0.0
        %1252 = vmatprep.subr.mxu0 0.0
        %1253 = vmatpush1.xpose.msra.mxu0 0.0
        %1254 = vmatprep.subr.mxu0 0.0
        %1255 = vmatpush1.xpose.msra.mxu0 0.0
        %1256 = vmatprep.subr.mxu0 0.0
        %1257 = vmatpush1.xpose.msra.mxu0 0.0
        %1258 = vmatprep.subr.mxu0 0.0
        %1259 = vmatpush1.xpose.msra.mxu0 0.0
        %1260 = vmatprep.subr.mxu0 0.0
        %1261 = vmatpush1.xpose.msra.mxu0 0.0
        %1262 = vmatprep.subr.mxu0 0.0
        %1263 = vmatpush1.xpose.msra.mxu0 0.0
        %1264 = vmatprep.subr.mxu0 0.0
        %1265 = vmatpush1.xpose.msra.mxu0 0.0
        %1266 = vmatprep.subr.mxu0 0.0
        %1267 = vmatpush1.xpose.msra.mxu0 0.0
        %1268 = vmatprep.subr.mxu0 0.0
        %1269 = vmatpush1.xpose.msra.mxu0 0.0
        %1270 = vmatprep.subr.mxu0 0.0
        %1271 = vmatpush1.xpose.msra.mxu0 0.0
        %1272 = vmatprep.subr.mxu0 0.0
        %1273 = vmatpush1.xpose.msra.mxu0 0.0
        %1274 = vmatprep.subr.mxu0 0.0
        %1275 = vmatpush1.xpose.msra.mxu0 0.0
        %1276 = vmatprep.subr.mxu0 0.0
        %1277 = vmatpush1.xpose.msra.mxu0 0.0
        %1278 = vmatprep.subr.mxu0 0.0
        %1279 = vmatpush1.xpose.msra.mxu0 0.0
        %1280 = vmatprep.subr.mxu0 0.0
        %1281 = vmatpush1.xpose.msra.mxu0 0.0
        %1282 = vmatprep.subr.mxu0 0.0
        %1283 = vmatpush1.xpose.msra.mxu0 0.0
        %1284 = vmatprep.subr.mxu0 0.0
        %1285 = vmatpush1.xpose.msra.mxu0 0.0
        %1286 = vmatprep.subr.mxu0 0.0
        %1287 = vmatpush1.xpose.msra.mxu0 0.0
        %1288 = vmatprep.subr.mxu0 0.0
        %1289 = vmatpush1.xpose.msra.mxu0 0.0
        %1290 = vmatprep.subr.mxu0 0.0
        %1291 = vmatpush1.xpose.msra.mxu0 0.0
        %1292 = vmatprep.subr.mxu0 0.0
        %1293 = vmatpush1.xpose.msra.mxu0 0.0
        %1294 = vmatprep.subr.mxu0 0.0
        %1295 = vmatpush1.xpose.msra.mxu0 0.0
        %1296 = vmatprep.subr.mxu0 0.0
        %1297 = vmatpush1.xpose.msra.mxu0 0.0
        %1298 = vmatprep.subr.mxu0 0.0
        %1299 = vmatpush1.xpose.msra.mxu0 0.0
        %1300 = vmatprep.subr.mxu0 0.0
        %1301 = vmatpush1.xpose.msra.mxu0 0.0
        %1302 = vmatprep.subr.mxu0 0.0
        %1303 = vmatpush1.xpose.msra.mxu0 0.0
        %1304 = vmatprep.mubr.f32.mxu0 0.0
        %1305 = vmatmul.mubr.f32.gmra.mrb[0].mxu0 %v1236
        %v1306 = vpop.f32.mrb[0].mxu0
        %v1307 = vadd.f32 %v471, %v1306
        %v1308 = vpop.f32.mrb[0].mxu0
        %1309 = vdwg.mxu0
        %v1311 = vsel %vm484, %v483, 0
        %v1313 = vsel %vm484, %v461, 0
        %1315 = vmatprep.subr.mxu0 0.0
        %1316 = vmatpush1.xpose.msra.mxu0 %v1313
        %1317 = vmatprep.subr.mxu0 0.0
        %1318 = vmatpush1.xpose.msra.mxu0 0.0
        %1319 = vmatprep.subr.mxu0 0.0
        %1320 = vmatpush1.xpose.msra.mxu0 0.0
        %1321 = vmatprep.subr.mxu0 0.0
        %1322 = vmatpush1.xpose.msra.mxu0 0.0
        %1323 = vmatprep.subr.mxu0 0.0
        %1324 = vmatpush1.xpose.msra.mxu0 0.0
        %1325 = vmatprep.subr.mxu0 0.0
        %1326 = vmatpush1.xpose.msra.mxu0 0.0
        %1327 = vmatprep.subr.mxu0 0.0
        %1328 = vmatpush1.xpose.msra.mxu0 0.0
        %1329 = vmatprep.subr.mxu0 0.0
        %1330 = vmatpush1.xpose.msra.mxu0 0.0
        %1331 = vmatprep.subr.mxu0 0.0
        %1332 = vmatpush1.xpose.msra.mxu0 0.0
        %1333 = vmatprep.subr.mxu0 0.0
        %1334 = vmatpush1.xpose.msra.mxu0 0.0
        %1335 = vmatprep.subr.mxu0 0.0
        %1336 = vmatpush1.xpose.msra.mxu0 0.0
        %1337 = vmatprep.subr.mxu0 0.0
        %1338 = vmatpush1.xpose.msra.mxu0 0.0
        %1339 = vmatprep.subr.mxu0 0.0
        %1340 = vmatpush1.xpose.msra.mxu0 0.0
        %1341 = vmatprep.subr.mxu0 0.0
        %1342 = vmatpush1.xpose.msra.mxu0 0.0
        %1343 = vmatprep.subr.mxu0 0.0
        %1344 = vmatpush1.xpose.msra.mxu0 0.0
        %1345 = vmatprep.subr.mxu0 0.0
        %1346 = vmatpush1.xpose.msra.mxu0 0.0
        %1347 = vmatprep.subr.mxu0 0.0
        %1348 = vmatpush1.xpose.msra.mxu0 0.0
        %1349 = vmatprep.subr.mxu0 0.0
        %1350 = vmatpush1.xpose.msra.mxu0 0.0
        %1351 = vmatprep.subr.mxu0 0.0
        %1352 = vmatpush1.xpose.msra.mxu0 0.0
        %1353 = vmatprep.subr.mxu0 0.0
        %1354 = vmatpush1.xpose.msra.mxu0 0.0
        %1355 = vmatprep.subr.mxu0 0.0
        %1356 = vmatpush1.xpose.msra.mxu0 0.0
        %1357 = vmatprep.subr.mxu0 0.0
        %1358 = vmatpush1.xpose.msra.mxu0 0.0
        %1359 = vmatprep.subr.mxu0 0.0
        %1360 = vmatpush1.xpose.msra.mxu0 0.0
        %1361 = vmatprep.subr.mxu0 0.0
        %1362 = vmatpush1.xpose.msra.mxu0 0.0
        %1363 = vmatprep.subr.mxu0 0.0
        %1364 = vmatpush1.xpose.msra.mxu0 0.0
        %1365 = vmatprep.subr.mxu0 0.0
        %1366 = vmatpush1.xpose.msra.mxu0 0.0
        %1367 = vmatprep.subr.mxu0 0.0
        %1368 = vmatpush1.xpose.msra.mxu0 0.0
        %1369 = vmatprep.subr.mxu0 0.0
        %1370 = vmatpush1.xpose.msra.mxu0 0.0
        %1371 = vmatprep.subr.mxu0 0.0
        %1372 = vmatpush1.xpose.msra.mxu0 0.0
        %1373 = vmatprep.subr.mxu0 0.0
        %1374 = vmatpush1.xpose.msra.mxu0 0.0
        %1375 = vmatprep.subr.mxu0 0.0
        %1376 = vmatpush1.xpose.msra.mxu0 0.0
        %1377 = vmatprep.subr.mxu0 0.0
        %1378 = vmatpush1.xpose.msra.mxu0 0.0
        %1379 = vmatprep.mubr.f32.mxu0 0.0
        %1380 = vmatmul.mubr.f32.gmra.mrb[0].mxu0 %v1311
        %v1381 = vpop.f32.mrb[0].mxu0
        %v1382 = vadd.f32 %v471, %v1381
        %v1383 = vpop.f32.mrb[0].mxu0
        %1384 = vdwg.mxu0
        %vm1385 = vcmask 64512
        %v1386 = vsel %vm1385, %v557, -inf
        %1387 = vmax.xlane.f32.xlu0 %v1386
        %v1388 = vpop.xlane.xlu0 %1387
        %v1389 = vsel %vm1385, %v632, -inf
        %1390 = vmax.xlane.f32.xlu0 %v1389
        %v1391 = vpop.xlane.xlu0 %1390
        %v1392 = vsel %vm1385, %v707, -inf
        %1393 = vmax.xlane.f32.xlu0 %v1392
        %v1394 = vpop.xlane.xlu0 %1393
        %v1395 = vsel %vm1385, %v782, -inf
        %1396 = vmax.xlane.f32.xlu0 %v1395
        %v1397 = vpop.xlane.xlu0 %1396
        %v1398 = vsel %vm1385, %v857, -inf
        %1399 = vmax.xlane.f32.xlu0 %v1398
        %v1400 = vpop.xlane.xlu0 %1399
        %v1401 = vsel %vm1385, %v932, -inf
        %1402 = vmax.xlane.f32.xlu0 %v1401
        %v1403 = vpop.xlane.xlu0 %1402
        %v1404 = vsel %vm1385, %v1007, -inf
        %1405 = vmax.xlane.f32.xlu0 %v1404
        %v1406 = vpop.xlane.xlu0 %1405
        %v1407 = vsel %vm1385, %v1082, -inf
        %1408 = vmax.xlane.f32.xlu0 %v1407
        %v1409 = vpop.xlane.xlu0 %1408
        %v1410 = vsel %vm1385, %v1157, -inf
        %1411 = vmax.xlane.f32.xlu0 %v1410
        %v1412 = vpop.xlane.xlu0 %1411
        %v1413 = vsel %vm1385, %v1232, -inf
        %1414 = vmax.xlane.f32.xlu0 %v1413
        %v1415 = vpop.xlane.xlu0 %1414
        %v1416 = vsel %vm1385, %v1307, -inf
        %1417 = vmax.xlane.f32.xlu0 %v1416
        %v1418 = vpop.xlane.xlu0 %1417
        %v1419 = vsel %vm1385, %v1382, -inf
        %1420 = vmax.xlane.f32.xlu0 %v1419
        %v1421 = vpop.xlane.xlu0 %1420
        %v1422 = vsub.f32 %v557, %v1388
        %v1423 = vsub.f32 %v632, %v1391
        %v1424 = vsub.f32 %v707, %v1394
        %v1425 = vsub.f32 %v782, %v1397
        %v1426 = vsub.f32 %v857, %v1400
        %v1427 = vsub.f32 %v932, %v1403
        %v1428 = vsub.f32 %v1007, %v1406
        %v1429 = vsub.f32 %v1082, %v1409
        %v1430 = vsub.f32 %v1157, %v1412
        %v1431 = vsub.f32 %v1232, %v1415
        %v1432 = vsub.f32 %v1307, %v1418
        %v1433 = vsub.f32 %v1382, %v1421
        %v1434 = vmul.f32 %v1422, 1.442695
        %v1435 = vpow.pop %v1434
        %v1436 = vmul.f32 %v1423, 1.442695
        %v1437 = vpow.pop %v1436
        %v1438 = vmul.f32 %v1424, 1.442695
        %v1439 = vpow.pop %v1438
        %v1440 = vmul.f32 %v1425, 1.442695
        %v1441 = vpow.pop %v1440
        %v1442 = vmul.f32 %v1426, 1.442695
        %v1443 = vpow.pop %v1442
        %v1444 = vmul.f32 %v1427, 1.442695
        %v1445 = vpow.pop %v1444
        %v1446 = vmul.f32 %v1428, 1.442695
        %v1447 = vpow.pop %v1446
        %v1448 = vmul.f32 %v1429, 1.442695
        %v1449 = vpow.pop %v1448
        %v1450 = vmul.f32 %v1430, 1.442695
        %v1451 = vpow.pop %v1450
        %v1452 = vmul.f32 %v1431, 1.442695
        %v1453 = vpow.pop %v1452
        %v1454 = vmul.f32 %v1432, 1.442695
        %v1455 = vpow.pop %v1454
        %v1456 = vmul.f32 %v1433, 1.442695
        %v1457 = vpow.pop %v1456
        %v1458 = vsel %vm1385, %v1435, 0.0
        %1459 = vadd.xlane.f32.xlu0 %v1458
        %v1460 = vpop.xlane.xlu0 %1459
        %v1461 = vsel %vm1385, %v1437, 0.0
        %1462 = vadd.xlane.f32.xlu0 %v1461
        %v1463 = vpop.xlane.xlu0 %1462
        %v1464 = vsel %vm1385, %v1439, 0.0
        %1465 = vadd.xlane.f32.xlu0 %v1464
        %v1466 = vpop.xlane.xlu0 %1465
        %v1467 = vsel %vm1385, %v1441, 0.0
        %1468 = vadd.xlane.f32.xlu0 %v1467
        %v1469 = vpop.xlane.xlu0 %1468
        %v1470 = vsel %vm1385, %v1443, 0.0
        %1471 = vadd.xlane.f32.xlu0 %v1470
        %v1472 = vpop.xlane.xlu0 %1471
        %v1473 = vsel %vm1385, %v1445, 0.0
        %1474 = vadd.xlane.f32.xlu0 %v1473
        %v1475 = vpop.xlane.xlu0 %1474
        %v1476 = vsel %vm1385, %v1447, 0.0
        %1477 = vadd.xlane.f32.xlu0 %v1476
        %v1478 = vpop.xlane.xlu0 %1477
        %v1479 = vsel %vm1385, %v1449, 0.0
        %1480 = vadd.xlane.f32.xlu0 %v1479
        %v1481 = vpop.xlane.xlu0 %1480
        %v1482 = vsel %vm1385, %v1451, 0.0
        %1483 = vadd.xlane.f32.xlu0 %v1482
        %v1484 = vpop.xlane.xlu0 %1483
        %v1485 = vsel %vm1385, %v1453, 0.0
        %1486 = vadd.xlane.f32.xlu0 %v1485
        %v1487 = vpop.xlane.xlu0 %1486
        %v1488 = vsel %vm1385, %v1455, 0.0
        %1489 = vadd.xlane.f32.xlu0 %v1488
        %v1490 = vpop.xlane.xlu0 %1489
        %v1491 = vsel %vm1385, %v1457, 0.0
        %1492 = vadd.xlane.f32.xlu0 %v1491
        %v1493 = vpop.xlane.xlu0 %1492
        %v1495 = vsel %vm1385, %v1435, 0
        %1497 = vmatprep.subr.mxu0 0.0
        %1498 = vmatpush1.msra.mxu0 %v372
        %1499 = vmatprep.subr.mxu0 0.0
        %1500 = vmatpush1.msra.mxu0 0.0
        %1501 = vmatprep.subr.mxu0 0.0
        %1502 = vmatpush1.msra.mxu0 0.0
        %1503 = vmatprep.subr.mxu0 0.0
        %1504 = vmatpush1.msra.mxu0 0.0
        %1505 = vmatprep.subr.mxu0 0.0
        %1506 = vmatpush1.msra.mxu0 0.0
        %1507 = vmatprep.subr.mxu0 0.0
        %1508 = vmatpush1.msra.mxu0 0.0
        %1509 = vmatprep.subr.mxu0 0.0
        %1510 = vmatpush1.msra.mxu0 0.0
        %1511 = vmatprep.subr.mxu0 0.0
        %1512 = vmatpush1.msra.mxu0 0.0
        %1513 = vmatprep.subr.mxu0 0.0
        %1514 = vmatpush1.msra.mxu0 0.0
        %1515 = vmatprep.subr.mxu0 0.0
        %1516 = vmatpush1.msra.mxu0 0.0
        %1517 = vmatprep.subr.mxu0 0.0
        %1518 = vmatpush1.msra.mxu0 0.0
        %1519 = vmatprep.subr.mxu0 0.0
        %1520 = vmatpush1.msra.mxu0 0.0
        %1521 = vmatprep.subr.mxu0 0.0
        %1522 = vmatpush1.msra.mxu0 0.0
        %1523 = vmatprep.subr.mxu0 0.0
        %1524 = vmatpush1.msra.mxu0 0.0
        %1525 = vmatprep.subr.mxu0 0.0
        %1526 = vmatpush1.msra.mxu0 0.0
        %1527 = vmatprep.subr.mxu0 0.0
        %1528 = vmatpush1.msra.mxu0 0.0
        %1529 = vmatprep.subr.mxu0 0.0
        %1530 = vmatpush1.msra.mxu0 0.0
        %1531 = vmatprep.subr.mxu0 0.0
        %1532 = vmatpush1.msra.mxu0 0.0
        %1533 = vmatprep.subr.mxu0 0.0
        %1534 = vmatpush1.msra.mxu0 0.0
        %1535 = vmatprep.subr.mxu0 0.0
        %1536 = vmatpush1.msra.mxu0 0.0
        %1537 = vmatprep.subr.mxu0 0.0
        %1538 = vmatpush1.msra.mxu0 0.0
        %1539 = vmatprep.subr.mxu0 0.0
        %1540 = vmatpush1.msra.mxu0 0.0
        %1541 = vmatprep.subr.mxu0 0.0
        %1542 = vmatpush1.msra.mxu0 0.0
        %1543 = vmatprep.subr.mxu0 0.0
        %1544 = vmatpush1.msra.mxu0 0.0
        %1545 = vmatprep.subr.mxu0 0.0
        %1546 = vmatpush1.msra.mxu0 0.0
        %1547 = vmatprep.subr.mxu0 0.0
        %1548 = vmatpush1.msra.mxu0 0.0
        %1549 = vmatprep.subr.mxu0 0.0
        %1550 = vmatpush1.msra.mxu0 0.0
        %1551 = vmatprep.subr.mxu0 0.0
        %1552 = vmatpush1.msra.mxu0 0.0
        %1553 = vmatprep.subr.mxu0 0.0
        %1554 = vmatpush1.msra.mxu0 0.0
        %1555 = vmatprep.subr.mxu0 0.0
        %1556 = vmatpush1.msra.mxu0 0.0
        %1557 = vmatprep.subr.mxu0 0.0
        %1558 = vmatpush1.msra.mxu0 0.0
        %1559 = vmatprep.subr.mxu0 0.0
        %1560 = vmatpush1.msra.mxu0 0.0
        %1561 = vmatprep.mubr.f32.mxu0 0.0
        %1562 = vmatmul.mubr.f32.gmra.mrb[0].mxu0 %v1495
        %v1563 = vpop.f32.mrb[0].mxu0
        %v1564 = vadd.f32 0.0, %v1563
        %v1565 = vpop.f32.mrb[0].mxu0
        %1566 = vdwg.mxu0
        %v1568 = vsel %vm1385, %v1437, 0
        %1570 = vmatprep.subr.mxu0 0.0
        %1571 = vmatpush1.msra.mxu0 %v383
        %1572 = vmatprep.subr.mxu0 0.0
        %1573 = vmatpush1.msra.mxu0 0.0
        %1574 = vmatprep.subr.mxu0 0.0
        %1575 = vmatpush1.msra.mxu0 0.0
        %1576 = vmatprep.subr.mxu0 0.0
        %1577 = vmatpush1.msra.mxu0 0.0
        %1578 = vmatprep.subr.mxu0 0.0
        %1579 = vmatpush1.msra.mxu0 0.0
        %1580 = vmatprep.subr.mxu0 0.0
        %1581 = vmatpush1.msra.mxu0 0.0
        %1582 = vmatprep.subr.mxu0 0.0
        %1583 = vmatpush1.msra.mxu0 0.0
        %1584 = vmatprep.subr.mxu0 0.0
        %1585 = vmatpush1.msra.mxu0 0.0
        %1586 = vmatprep.subr.mxu0 0.0
        %1587 = vmatpush1.msra.mxu0 0.0
        %1588 = vmatprep.subr.mxu0 0.0
        %1589 = vmatpush1.msra.mxu0 0.0
        %1590 = vmatprep.subr.mxu0 0.0
        %1591 = vmatpush1.msra.mxu0 0.0
        %1592 = vmatprep.subr.mxu0 0.0
        %1593 = vmatpush1.msra.mxu0 0.0
        %1594 = vmatprep.subr.mxu0 0.0
        %1595 = vmatpush1.msra.mxu0 0.0
        %1596 = vmatprep.subr.mxu0 0.0
        %1597 = vmatpush1.msra.mxu0 0.0
        %1598 = vmatprep.subr.mxu0 0.0
        %1599 = vmatpush1.msra.mxu0 0.0
        %1600 = vmatprep.subr.mxu0 0.0
        %1601 = vmatpush1.msra.mxu0 0.0
        %1602 = vmatprep.subr.mxu0 0.0
        %1603 = vmatpush1.msra.mxu0 0.0
        %1604 = vmatprep.subr.mxu0 0.0
        %1605 = vmatpush1.msra.mxu0 0.0
        %1606 = vmatprep.subr.mxu0 0.0
        %1607 = vmatpush1.msra.mxu0 0.0
        %1608 = vmatprep.subr.mxu0 0.0
        %1609 = vmatpush1.msra.mxu0 0.0
        %1610 = vmatprep.subr.mxu0 0.0
        %1611 = vmatpush1.msra.mxu0 0.0
        %1612 = vmatprep.subr.mxu0 0.0
        %1613 = vmatpush1.msra.mxu0 0.0
        %1614 = vmatprep.subr.mxu0 0.0
        %1615 = vmatpush1.msra.mxu0 0.0
        %1616 = vmatprep.subr.mxu0 0.0
        %1617 = vmatpush1.msra.mxu0 0.0
        %1618 = vmatprep.subr.mxu0 0.0
        %1619 = vmatpush1.msra.mxu0 0.0
        %1620 = vmatprep.subr.mxu0 0.0
        %1621 = vmatpush1.msra.mxu0 0.0
        %1622 = vmatprep.subr.mxu0 0.0
        %1623 = vmatpush1.msra.mxu0 0.0
        %1624 = vmatprep.subr.mxu0 0.0
        %1625 = vmatpush1.msra.mxu0 0.0
        %1626 = vmatprep.subr.mxu0 0.0
        %1627 = vmatpush1.msra.mxu0 0.0
        %1628 = vmatprep.subr.mxu0 0.0
        %1629 = vmatpush1.msra.mxu0 0.0
        %1630 = vmatprep.subr.mxu0 0.0
        %1631 = vmatpush1.msra.mxu0 0.0
        %1632 = vmatprep.subr.mxu0 0.0
        %1633 = vmatpush1.msra.mxu0 0.0
        %1634 = vmatprep.mubr.f32.mxu0 0.0
        %1635 = vmatmul.mubr.f32.gmra.mrb[0].mxu0 %v1568
        %v1636 = vpop.f32.mrb[0].mxu0
        %v1637 = vadd.f32 0.0, %v1636
        %v1638 = vpop.f32.mrb[0].mxu0
        %1639 = vdwg.mxu0
        %v1641 = vsel %vm1385, %v1439, 0
        %1643 = vmatprep.subr.mxu0 0.0
        %1644 = vmatpush1.msra.mxu0 %v391
        %1645 = vmatprep.subr.mxu0 0.0
        %1646 = vmatpush1.msra.mxu0 0.0
        %1647 = vmatprep.subr.mxu0 0.0
        %1648 = vmatpush1.msra.mxu0 0.0
        %1649 = vmatprep.subr.mxu0 0.0
        %1650 = vmatpush1.msra.mxu0 0.0
        %1651 = vmatprep.subr.mxu0 0.0
        %1652 = vmatpush1.msra.mxu0 0.0
        %1653 = vmatprep.subr.mxu0 0.0
        %1654 = vmatpush1.msra.mxu0 0.0
        %1655 = vmatprep.subr.mxu0 0.0
        %1656 = vmatpush1.msra.mxu0 0.0
        %1657 = vmatprep.subr.mxu0 0.0
        %1658 = vmatpush1.msra.mxu0 0.0
        %1659 = vmatprep.subr.mxu0 0.0
        %1660 = vmatpush1.msra.mxu0 0.0
        %1661 = vmatprep.subr.mxu0 0.0
        %1662 = vmatpush1.msra.mxu0 0.0
        %1663 = vmatprep.subr.mxu0 0.0
        %1664 = vmatpush1.msra.mxu0 0.0
        %1665 = vmatprep.subr.mxu0 0.0
        %1666 = vmatpush1.msra.mxu0 0.0
        %1667 = vmatprep.subr.mxu0 0.0
        %1668 = vmatpush1.msra.mxu0 0.0
        %1669 = vmatprep.subr.mxu0 0.0
        %1670 = vmatpush1.msra.mxu0 0.0
        %1671 = vmatprep.subr.mxu0 0.0
        %1672 = vmatpush1.msra.mxu0 0.0
        %1673 = vmatprep.subr.mxu0 0.0
        %1674 = vmatpush1.msra.mxu0 0.0
        %1675 = vmatprep.subr.mxu0 0.0
        %1676 = vmatpush1.msra.mxu0 0.0
        %1677 = vmatprep.subr.mxu0 0.0
        %1678 = vmatpush1.msra.mxu0 0.0
        %1679 = vmatprep.subr.mxu0 0.0
        %1680 = vmatpush1.msra.mxu0 0.0
        %1681 = vmatprep.subr.mxu0 0.0
        %1682 = vmatpush1.msra.mxu0 0.0
        %1683 = vmatprep.subr.mxu0 0.0
        %1684 = vmatpush1.msra.mxu0 0.0
        %1685 = vmatprep.subr.mxu0 0.0
        %1686 = vmatpush1.msra.mxu0 0.0
        %1687 = vmatprep.subr.mxu0 0.0
        %1688 = vmatpush1.msra.mxu0 0.0
        %1689 = vmatprep.subr.mxu0 0.0
        %1690 = vmatpush1.msra.mxu0 0.0
        %1691 = vmatprep.subr.mxu0 0.0
        %1692 = vmatpush1.msra.mxu0 0.0
        %1693 = vmatprep.subr.mxu0 0.0
        %1694 = vmatpush1.msra.mxu0 0.0
        %1695 = vmatprep.subr.mxu0 0.0
        %1696 = vmatpush1.msra.mxu0 0.0
        %1697 = vmatprep.subr.mxu0 0.0
        %1698 = vmatpush1.msra.mxu0 0.0
        %1699 = vmatprep.subr.mxu0 0.0
        %1700 = vmatpush1.msra.mxu0 0.0
        %1701 = vmatprep.subr.mxu0 0.0
        %1702 = vmatpush1.msra.mxu0 0.0
        %1703 = vmatprep.subr.mxu0 0.0
        %1704 = vmatpush1.msra.mxu0 0.0
        %1705 = vmatprep.subr.mxu0 0.0
        %1706 = vmatpush1.msra.mxu0 0.0
        %1707 = vmatprep.mubr.f32.mxu0 0.0
        %1708 = vmatmul.mubr.f32.gmra.mrb[0].mxu0 %v1641
        %v1709 = vpop.f32.mrb[0].mxu0
        %v1710 = vadd.f32 0.0, %v1709
        %v1711 = vpop.f32.mrb[0].mxu0
        %1712 = vdwg.mxu0
        %v1714 = vsel %vm1385, %v1441, 0
        %1716 = vmatprep.subr.mxu0 0.0
        %1717 = vmatpush1.msra.mxu0 %v399
        %1718 = vmatprep.subr.mxu0 0.0
        %1719 = vmatpush1.msra.mxu0 0.0
        %1720 = vmatprep.subr.mxu0 0.0
        %1721 = vmatpush1.msra.mxu0 0.0
        %1722 = vmatprep.subr.mxu0 0.0
        %1723 = vmatpush1.msra.mxu0 0.0
        %1724 = vmatprep.subr.mxu0 0.0
        %1725 = vmatpush1.msra.mxu0 0.0
        %1726 = vmatprep.subr.mxu0 0.0
        %1727 = vmatpush1.msra.mxu0 0.0
        %1728 = vmatprep.subr.mxu0 0.0
        %1729 = vmatpush1.msra.mxu0 0.0
        %1730 = vmatprep.subr.mxu0 0.0
        %1731 = vmatpush1.msra.mxu0 0.0
        %1732 = vmatprep.subr.mxu0 0.0
        %1733 = vmatpush1.msra.mxu0 0.0
        %1734 = vmatprep.subr.mxu0 0.0
        %1735 = vmatpush1.msra.mxu0 0.0
        %1736 = vmatprep.subr.mxu0 0.0
        %1737 = vmatpush1.msra.mxu0 0.0
        %1738 = vmatprep.subr.mxu0 0.0
        %1739 = vmatpush1.msra.mxu0 0.0
        %1740 = vmatprep.subr.mxu0 0.0
        %1741 = vmatpush1.msra.mxu0 0.0
        %1742 = vmatprep.subr.mxu0 0.0
        %1743 = vmatpush1.msra.mxu0 0.0
        %1744 = vmatprep.subr.mxu0 0.0
        %1745 = vmatpush1.msra.mxu0 0.0
        %1746 = vmatprep.subr.mxu0 0.0
        %1747 = vmatpush1.msra.mxu0 0.0
        %1748 = vmatprep.subr.mxu0 0.0
        %1749 = vmatpush1.msra.mxu0 0.0
        %1750 = vmatprep.subr.mxu0 0.0
        %1751 = vmatpush1.msra.mxu0 0.0
        %1752 = vmatprep.subr.mxu0 0.0
        %1753 = vmatpush1.msra.mxu0 0.0
        %1754 = vmatprep.subr.mxu0 0.0
        %1755 = vmatpush1.msra.mxu0 0.0
        %1756 = vmatprep.subr.mxu0 0.0
        %1757 = vmatpush1.msra.mxu0 0.0
        %1758 = vmatprep.subr.mxu0 0.0
        %1759 = vmatpush1.msra.mxu0 0.0
        %1760 = vmatprep.subr.mxu0 0.0
        %1761 = vmatpush1.msra.mxu0 0.0
        %1762 = vmatprep.subr.mxu0 0.0
        %1763 = vmatpush1.msra.mxu0 0.0
        %1764 = vmatprep.subr.mxu0 0.0
        %1765 = vmatpush1.msra.mxu0 0.0
        %1766 = vmatprep.subr.mxu0 0.0
        %1767 = vmatpush1.msra.mxu0 0.0
        %1768 = vmatprep.subr.mxu0 0.0
        %1769 = vmatpush1.msra.mxu0 0.0
        %1770 = vmatprep.subr.mxu0 0.0
        %1771 = vmatpush1.msra.mxu0 0.0
        %1772 = vmatprep.subr.mxu0 0.0
        %1773 = vmatpush1.msra.mxu0 0.0
        %1774 = vmatprep.subr.mxu0 0.0
        %1775 = vmatpush1.msra.mxu0 0.0
        %1776 = vmatprep.subr.mxu0 0.0
        %1777 = vmatpush1.msra.mxu0 0.0
        %1778 = vmatprep.subr.mxu0 0.0
        %1779 = vmatpush1.msra.mxu0 0.0
        %1780 = vmatprep.mubr.f32.mxu0 0.0
        %1781 = vmatmul.mubr.f32.gmra.mrb[0].mxu0 %v1714
        %v1782 = vpop.f32.mrb[0].mxu0
        %v1783 = vadd.f32 0.0, %v1782
        %v1784 = vpop.f32.mrb[0].mxu0
        %1785 = vdwg.mxu0
        %v1787 = vsel %vm1385, %v1443, 0
        %1789 = vmatprep.subr.mxu0 0.0
        %1790 = vmatpush1.msra.mxu0 %v407
        %1791 = vmatprep.subr.mxu0 0.0
        %1792 = vmatpush1.msra.mxu0 0.0
        %1793 = vmatprep.subr.mxu0 0.0
        %1794 = vmatpush1.msra.mxu0 0.0
        %1795 = vmatprep.subr.mxu0 0.0
        %1796 = vmatpush1.msra.mxu0 0.0
        %1797 = vmatprep.subr.mxu0 0.0
        %1798 = vmatpush1.msra.mxu0 0.0
        %1799 = vmatprep.subr.mxu0 0.0
        %1800 = vmatpush1.msra.mxu0 0.0
        %1801 = vmatprep.subr.mxu0 0.0
        %1802 = vmatpush1.msra.mxu0 0.0
        %1803 = vmatprep.subr.mxu0 0.0
        %1804 = vmatpush1.msra.mxu0 0.0
        %1805 = vmatprep.subr.mxu0 0.0
        %1806 = vmatpush1.msra.mxu0 0.0
        %1807 = vmatprep.subr.mxu0 0.0
        %1808 = vmatpush1.msra.mxu0 0.0
        %1809 = vmatprep.subr.mxu0 0.0
        %1810 = vmatpush1.msra.mxu0 0.0
        %1811 = vmatprep.subr.mxu0 0.0
        %1812 = vmatpush1.msra.mxu0 0.0
        %1813 = vmatprep.subr.mxu0 0.0
        %1814 = vmatpush1.msra.mxu0 0.0
        %1815 = vmatprep.subr.mxu0 0.0
        %1816 = vmatpush1.msra.mxu0 0.0
        %1817 = vmatprep.subr.mxu0 0.0
        %1818 = vmatpush1.msra.mxu0 0.0
        %1819 = vmatprep.subr.mxu0 0.0
        %1820 = vmatpush1.msra.mxu0 0.0
        %1821 = vmatprep.subr.mxu0 0.0
        %1822 = vmatpush1.msra.mxu0 0.0
        %1823 = vmatprep.subr.mxu0 0.0
        %1824 = vmatpush1.msra.mxu0 0.0
        %1825 = vmatprep.subr.mxu0 0.0
        %1826 = vmatpush1.msra.mxu0 0.0
        %1827 = vmatprep.subr.mxu0 0.0
        %1828 = vmatpush1.msra.mxu0 0.0
        %1829 = vmatprep.subr.mxu0 0.0
        %1830 = vmatpush1.msra.mxu0 0.0
        %1831 = vmatprep.subr.mxu0 0.0
        %1832 = vmatpush1.msra.mxu0 0.0
        %1833 = vmatprep.subr.mxu0 0.0
        %1834 = vmatpush1.msra.mxu0 0.0
        %1835 = vmatprep.subr.mxu0 0.0
        %1836 = vmatpush1.msra.mxu0 0.0
        %1837 = vmatprep.subr.mxu0 0.0
        %1838 = vmatpush1.msra.mxu0 0.0
        %1839 = vmatprep.subr.mxu0 0.0
        %1840 = vmatpush1.msra.mxu0 0.0
        %1841 = vmatprep.subr.mxu0 0.0
        %1842 = vmatpush1.msra.mxu0 0.0
        %1843 = vmatprep.subr.mxu0 0.0
        %1844 = vmatpush1.msra.mxu0 0.0
        %1845 = vmatprep.subr.mxu0 0.0
        %1846 = vmatpush1.msra.mxu0 0.0
        %1847 = vmatprep.subr.mxu0 0.0
        %1848 = vmatpush1.msra.mxu0 0.0
        %1849 = vmatprep.subr.mxu0 0.0
        %1850 = vmatpush1.msra.mxu0 0.0
        %1851 = vmatprep.subr.mxu0 0.0
        %1852 = vmatpush1.msra.mxu0 0.0
        %1853 = vmatprep.mubr.f32.mxu0 0.0
        %1854 = vmatmul.mubr.f32.gmra.mrb[0].mxu0 %v1787
        %v1855 = vpop.f32.mrb[0].mxu0
        %v1856 = vadd.f32 0.0, %v1855
        %v1857 = vpop.f32.mrb[0].mxu0
        %1858 = vdwg.mxu0
        %v1860 = vsel %vm1385, %v1445, 0
        %1862 = vmatprep.subr.mxu0 0.0
        %1863 = vmatpush1.msra.mxu0 %v415
        %1864 = vmatprep.subr.mxu0 0.0
        %1865 = vmatpush1.msra.mxu0 0.0
        %1866 = vmatprep.subr.mxu0 0.0
        %1867 = vmatpush1.msra.mxu0 0.0
        %1868 = vmatprep.subr.mxu0 0.0
        %1869 = vmatpush1.msra.mxu0 0.0
        %1870 = vmatprep.subr.mxu0 0.0
        %1871 = vmatpush1.msra.mxu0 0.0
        %1872 = vmatprep.subr.mxu0 0.0
        %1873 = vmatpush1.msra.mxu0 0.0
        %1874 = vmatprep.subr.mxu0 0.0
        %1875 = vmatpush1.msra.mxu0 0.0
        %1876 = vmatprep.subr.mxu0 0.0
        %1877 = vmatpush1.msra.mxu0 0.0
        %1878 = vmatprep.subr.mxu0 0.0
        %1879 = vmatpush1.msra.mxu0 0.0
        %1880 = vmatprep.subr.mxu0 0.0
        %1881 = vmatpush1.msra.mxu0 0.0
        %1882 = vmatprep.subr.mxu0 0.0
        %1883 = vmatpush1.msra.mxu0 0.0
        %1884 = vmatprep.subr.mxu0 0.0
        %1885 = vmatpush1.msra.mxu0 0.0
        %1886 = vmatprep.subr.mxu0 0.0
        %1887 = vmatpush1.msra.mxu0 0.0
        %1888 = vmatprep.subr.mxu0 0.0
        %1889 = vmatpush1.msra.mxu0 0.0
        %1890 = vmatprep.subr.mxu0 0.0
        %1891 = vmatpush1.msra.mxu0 0.0
        %1892 = vmatprep.subr.mxu0 0.0
        %1893 = vmatpush1.msra.mxu0 0.0
        %1894 = vmatprep.subr.mxu0 0.0
        %1895 = vmatpush1.msra.mxu0 0.0
        %1896 = vmatprep.subr.mxu0 0.0
        %1897 = vmatpush1.msra.mxu0 0.0
        %1898 = vmatprep.subr.mxu0 0.0
        %1899 = vmatpush1.msra.mxu0 0.0
        %1900 = vmatprep.subr.mxu0 0.0
        %1901 = vmatpush1.msra.mxu0 0.0
        %1902 = vmatprep.subr.mxu0 0.0
        %1903 = vmatpush1.msra.mxu0 0.0
        %1904 = vmatprep.subr.mxu0 0.0
        %1905 = vmatpush1.msra.mxu0 0.0
        %1906 = vmatprep.subr.mxu0 0.0
        %1907 = vmatpush1.msra.mxu0 0.0
        %1908 = vmatprep.subr.mxu0 0.0
        %1909 = vmatpush1.msra.mxu0 0.0
        %1910 = vmatprep.subr.mxu0 0.0
        %1911 = vmatpush1.msra.mxu0 0.0
        %1912 = vmatprep.subr.mxu0 0.0
        %1913 = vmatpush1.msra.mxu0 0.0
        %1914 = vmatprep.subr.mxu0 0.0
        %1915 = vmatpush1.msra.mxu0 0.0
        %1916 = vmatprep.subr.mxu0 0.0
        %1917 = vmatpush1.msra.mxu0 0.0
        %1918 = vmatprep.subr.mxu0 0.0
        %1919 = vmatpush1.msra.mxu0 0.0
        %1920 = vmatprep.subr.mxu0 0.0
        %1921 = vmatpush1.msra.mxu0 0.0
        %1922 = vmatprep.subr.mxu0 0.0
        %1923 = vmatpush1.msra.mxu0 0.0
        %1924 = vmatprep.subr.mxu0 0.0
        %1925 = vmatpush1.msra.mxu0 0.0
        %1926 = vmatprep.mubr.f32.mxu0 0.0
        %1927 = vmatmul.mubr.f32.gmra.mrb[0].mxu0 %v1860
        %v1928 = vpop.f32.mrb[0].mxu0
        %v1929 = vadd.f32 0.0, %v1928
        %v1930 = vpop.f32.mrb[0].mxu0
        %1931 = vdwg.mxu0
        %v1933 = vsel %vm1385, %v1447, 0
        %1935 = vmatprep.subr.mxu0 0.0
        %1936 = vmatpush1.msra.mxu0 %v423
        %1937 = vmatprep.subr.mxu0 0.0
        %1938 = vmatpush1.msra.mxu0 0.0
        %1939 = vmatprep.subr.mxu0 0.0
        %1940 = vmatpush1.msra.mxu0 0.0
        %1941 = vmatprep.subr.mxu0 0.0
        %1942 = vmatpush1.msra.mxu0 0.0
        %1943 = vmatprep.subr.mxu0 0.0
        %1944 = vmatpush1.msra.mxu0 0.0
        %1945 = vmatprep.subr.mxu0 0.0
        %1946 = vmatpush1.msra.mxu0 0.0
        %1947 = vmatprep.subr.mxu0 0.0
        %1948 = vmatpush1.msra.mxu0 0.0
        %1949 = vmatprep.subr.mxu0 0.0
        %1950 = vmatpush1.msra.mxu0 0.0
        %1951 = vmatprep.subr.mxu0 0.0
        %1952 = vmatpush1.msra.mxu0 0.0
        %1953 = vmatprep.subr.mxu0 0.0
        %1954 = vmatpush1.msra.mxu0 0.0
        %1955 = vmatprep.subr.mxu0 0.0
        %1956 = vmatpush1.msra.mxu0 0.0
        %1957 = vmatprep.subr.mxu0 0.0
        %1958 = vmatpush1.msra.mxu0 0.0
        %1959 = vmatprep.subr.mxu0 0.0
        %1960 = vmatpush1.msra.mxu0 0.0
        %1961 = vmatprep.subr.mxu0 0.0
        %1962 = vmatpush1.msra.mxu0 0.0
        %1963 = vmatprep.subr.mxu0 0.0
        %1964 = vmatpush1.msra.mxu0 0.0
        %1965 = vmatprep.subr.mxu0 0.0
        %1966 = vmatpush1.msra.mxu0 0.0
        %1967 = vmatprep.subr.mxu0 0.0
        %1968 = vmatpush1.msra.mxu0 0.0
        %1969 = vmatprep.subr.mxu0 0.0
        %1970 = vmatpush1.msra.mxu0 0.0
        %1971 = vmatprep.subr.mxu0 0.0
        %1972 = vmatpush1.msra.mxu0 0.0
        %1973 = vmatprep.subr.mxu0 0.0
        %1974 = vmatpush1.msra.mxu0 0.0
        %1975 = vmatprep.subr.mxu0 0.0
        %1976 = vmatpush1.msra.mxu0 0.0
        %1977 = vmatprep.subr.mxu0 0.0
        %1978 = vmatpush1.msra.mxu0 0.0
        %1979 = vmatprep.subr.mxu0 0.0
        %1980 = vmatpush1.msra.mxu0 0.0
        %1981 = vmatprep.subr.mxu0 0.0
        %1982 = vmatpush1.msra.mxu0 0.0
        %1983 = vmatprep.subr.mxu0 0.0
        %1984 = vmatpush1.msra.mxu0 0.0
        %1985 = vmatprep.subr.mxu0 0.0
        %1986 = vmatpush1.msra.mxu0 0.0
        %1987 = vmatprep.subr.mxu0 0.0
        %1988 = vmatpush1.msra.mxu0 0.0
        %1989 = vmatprep.subr.mxu0 0.0
        %1990 = vmatpush1.msra.mxu0 0.0
        %1991 = vmatprep.subr.mxu0 0.0
        %1992 = vmatpush1.msra.mxu0 0.0
        %1993 = vmatprep.subr.mxu0 0.0
        %1994 = vmatpush1.msra.mxu0 0.0
        %1995 = vmatprep.subr.mxu0 0.0
        %1996 = vmatpush1.msra.mxu0 0.0
        %1997 = vmatprep.subr.mxu0 0.0
        %1998 = vmatpush1.msra.mxu0 0.0
        %1999 = vmatprep.mubr.f32.mxu0 0.0
        %2000 = vmatmul.mubr.f32.gmra.mrb[0].mxu0 %v1933
        %v2001 = vpop.f32.mrb[0].mxu0
        %v2002 = vadd.f32 0.0, %v2001
        %v2003 = vpop.f32.mrb[0].mxu0
        %2004 = vdwg.mxu0
        %v2006 = vsel %vm1385, %v1449, 0
        %2008 = vmatprep.subr.mxu0 0.0
        %2009 = vmatpush1.msra.mxu0 %v431
        %2010 = vmatprep.subr.mxu0 0.0
        %2011 = vmatpush1.msra.mxu0 0.0
        %2012 = vmatprep.subr.mxu0 0.0
        %2013 = vmatpush1.msra.mxu0 0.0
        %2014 = vmatprep.subr.mxu0 0.0
        %2015 = vmatpush1.msra.mxu0 0.0
        %2016 = vmatprep.subr.mxu0 0.0
        %2017 = vmatpush1.msra.mxu0 0.0
        %2018 = vmatprep.subr.mxu0 0.0
        %2019 = vmatpush1.msra.mxu0 0.0
        %2020 = vmatprep.subr.mxu0 0.0
        %2021 = vmatpush1.msra.mxu0 0.0
        %2022 = vmatprep.subr.mxu0 0.0
        %2023 = vmatpush1.msra.mxu0 0.0
        %2024 = vmatprep.subr.mxu0 0.0
        %2025 = vmatpush1.msra.mxu0 0.0
        %2026 = vmatprep.subr.mxu0 0.0
        %2027 = vmatpush1.msra.mxu0 0.0
        %2028 = vmatprep.subr.mxu0 0.0
        %2029 = vmatpush1.msra.mxu0 0.0
        %2030 = vmatprep.subr.mxu0 0.0
        %2031 = vmatpush1.msra.mxu0 0.0
        %2032 = vmatprep.subr.mxu0 0.0
        %2033 = vmatpush1.msra.mxu0 0.0
        %2034 = vmatprep.subr.mxu0 0.0
        %2035 = vmatpush1.msra.mxu0 0.0
        %2036 = vmatprep.subr.mxu0 0.0
        %2037 = vmatpush1.msra.mxu0 0.0
        %2038 = vmatprep.subr.mxu0 0.0
        %2039 = vmatpush1.msra.mxu0 0.0
        %2040 = vmatprep.subr.mxu0 0.0
        %2041 = vmatpush1.msra.mxu0 0.0
        %2042 = vmatprep.subr.mxu0 0.0
        %2043 = vmatpush1.msra.mxu0 0.0
        %2044 = vmatprep.subr.mxu0 0.0
        %2045 = vmatpush1.msra.mxu0 0.0
        %2046 = vmatprep.subr.mxu0 0.0
        %2047 = vmatpush1.msra.mxu0 0.0
        %2048 = vmatprep.subr.mxu0 0.0
        %2049 = vmatpush1.msra.mxu0 0.0
        %2050 = vmatprep.subr.mxu0 0.0
        %2051 = vmatpush1.msra.mxu0 0.0
        %2052 = vmatprep.subr.mxu0 0.0
        %2053 = vmatpush1.msra.mxu0 0.0
        %2054 = vmatprep.subr.mxu0 0.0
        %2055 = vmatpush1.msra.mxu0 0.0
        %2056 = vmatprep.subr.mxu0 0.0
        %2057 = vmatpush1.msra.mxu0 0.0
        %2058 = vmatprep.subr.mxu0 0.0
        %2059 = vmatpush1.msra.mxu0 0.0
        %2060 = vmatprep.subr.mxu0 0.0
        %2061 = vmatpush1.msra.mxu0 0.0
        %2062 = vmatprep.subr.mxu0 0.0
        %2063 = vmatpush1.msra.mxu0 0.0
        %2064 = vmatprep.subr.mxu0 0.0
        %2065 = vmatpush1.msra.mxu0 0.0
        %2066 = vmatprep.subr.mxu0 0.0
        %2067 = vmatpush1.msra.mxu0 0.0
        %2068 = vmatprep.subr.mxu0 0.0
        %2069 = vmatpush1.msra.mxu0 0.0
        %2070 = vmatprep.subr.mxu0 0.0
        %2071 = vmatpush1.msra.mxu0 0.0
        %2072 = vmatprep.mubr.f32.mxu0 0.0
        %2073 = vmatmul.mubr.f32.gmra.mrb[0].mxu0 %v2006
        %v2074 = vpop.f32.mrb[0].mxu0
        %v2075 = vadd.f32 0.0, %v2074
        %v2076 = vpop.f32.mrb[0].mxu0
        %2077 = vdwg.mxu0
        %v2079 = vsel %vm1385, %v1451, 0
        %2081 = vmatprep.subr.mxu0 0.0
        %2082 = vmatpush1.msra.mxu0 %v439
        %2083 = vmatprep.subr.mxu0 0.0
        %2084 = vmatpush1.msra.mxu0 0.0
        %2085 = vmatprep.subr.mxu0 0.0
        %2086 = vmatpush1.msra.mxu0 0.0
        %2087 = vmatprep.subr.mxu0 0.0
        %2088 = vmatpush1.msra.mxu0 0.0
        %2089 = vmatprep.subr.mxu0 0.0
        %2090 = vmatpush1.msra.mxu0 0.0
        %2091 = vmatprep.subr.mxu0 0.0
        %2092 = vmatpush1.msra.mxu0 0.0
        %2093 = vmatprep.subr.mxu0 0.0
        %2094 = vmatpush1.msra.mxu0 0.0
        %2095 = vmatprep.subr.mxu0 0.0
        %2096 = vmatpush1.msra.mxu0 0.0
        %2097 = vmatprep.subr.mxu0 0.0
        %2098 = vmatpush1.msra.mxu0 0.0
        %2099 = vmatprep.subr.mxu0 0.0
        %2100 = vmatpush1.msra.mxu0 0.0
        %2101 = vmatprep.subr.mxu0 0.0
        %2102 = vmatpush1.msra.mxu0 0.0
        %2103 = vmatprep.subr.mxu0 0.0
        %2104 = vmatpush1.msra.mxu0 0.0
        %2105 = vmatprep.subr.mxu0 0.0
        %2106 = vmatpush1.msra.mxu0 0.0
        %2107 = vmatprep.subr.mxu0 0.0
        %2108 = vmatpush1.msra.mxu0 0.0
        %2109 = vmatprep.subr.mxu0 0.0
        %2110 = vmatpush1.msra.mxu0 0.0
        %2111 = vmatprep.subr.mxu0 0.0
        %2112 = vmatpush1.msra.mxu0 0.0
        %2113 = vmatprep.subr.mxu0 0.0
        %2114 = vmatpush1.msra.mxu0 0.0
        %2115 = vmatprep.subr.mxu0 0.0
        %2116 = vmatpush1.msra.mxu0 0.0
        %2117 = vmatprep.subr.mxu0 0.0
        %2118 = vmatpush1.msra.mxu0 0.0
        %2119 = vmatprep.subr.mxu0 0.0
        %2120 = vmatpush1.msra.mxu0 0.0
        %2121 = vmatprep.subr.mxu0 0.0
        %2122 = vmatpush1.msra.mxu0 0.0
        %2123 = vmatprep.subr.mxu0 0.0
        %2124 = vmatpush1.msra.mxu0 0.0
        %2125 = vmatprep.subr.mxu0 0.0
        %2126 = vmatpush1.msra.mxu0 0.0
        %2127 = vmatprep.subr.mxu0 0.0
        %2128 = vmatpush1.msra.mxu0 0.0
        %2129 = vmatprep.subr.mxu0 0.0
        %2130 = vmatpush1.msra.mxu0 0.0
        %2131 = vmatprep.subr.mxu0 0.0
        %2132 = vmatpush1.msra.mxu0 0.0
        %2133 = vmatprep.subr.mxu0 0.0
        %2134 = vmatpush1.msra.mxu0 0.0
        %2135 = vmatprep.subr.mxu0 0.0
        %2136 = vmatpush1.msra.mxu0 0.0
        %2137 = vmatprep.subr.mxu0 0.0
        %2138 = vmatpush1.msra.mxu0 0.0
        %2139 = vmatprep.subr.mxu0 0.0
        %2140 = vmatpush1.msra.mxu0 0.0
        %2141 = vmatprep.subr.mxu0 0.0
        %2142 = vmatpush1.msra.mxu0 0.0
        %2143 = vmatprep.subr.mxu0 0.0
        %2144 = vmatpush1.msra.mxu0 0.0
        %2145 = vmatprep.mubr.f32.mxu0 0.0
        %2146 = vmatmul.mubr.f32.gmra.mrb[0].mxu0 %v2079
        %v2147 = vpop.f32.mrb[0].mxu0
        %v2148 = vadd.f32 0.0, %v2147
        %v2149 = vpop.f32.mrb[0].mxu0
        %2150 = vdwg.mxu0
        %v2152 = vsel %vm1385, %v1453, 0
        %2154 = vmatprep.subr.mxu0 0.0
        %2155 = vmatpush1.msra.mxu0 %v447
        %2156 = vmatprep.subr.mxu0 0.0
        %2157 = vmatpush1.msra.mxu0 0.0
        %2158 = vmatprep.subr.mxu0 0.0
        %2159 = vmatpush1.msra.mxu0 0.0
        %2160 = vmatprep.subr.mxu0 0.0
        %2161 = vmatpush1.msra.mxu0 0.0
        %2162 = vmatprep.subr.mxu0 0.0
        %2163 = vmatpush1.msra.mxu0 0.0
        %2164 = vmatprep.subr.mxu0 0.0
        %2165 = vmatpush1.msra.mxu0 0.0
        %2166 = vmatprep.subr.mxu0 0.0
        %2167 = vmatpush1.msra.mxu0 0.0
        %2168 = vmatprep.subr.mxu0 0.0
        %2169 = vmatpush1.msra.mxu0 0.0
        %2170 = vmatprep.subr.mxu0 0.0
        %2171 = vmatpush1.msra.mxu0 0.0
        %2172 = vmatprep.subr.mxu0 0.0
        %2173 = vmatpush1.msra.mxu0 0.0
        %2174 = vmatprep.subr.mxu0 0.0
        %2175 = vmatpush1.msra.mxu0 0.0
        %2176 = vmatprep.subr.mxu0 0.0
        %2177 = vmatpush1.msra.mxu0 0.0
        %2178 = vmatprep.subr.mxu0 0.0
        %2179 = vmatpush1.msra.mxu0 0.0
        %2180 = vmatprep.subr.mxu0 0.0
        %2181 = vmatpush1.msra.mxu0 0.0
        %2182 = vmatprep.subr.mxu0 0.0
        %2183 = vmatpush1.msra.mxu0 0.0
        %2184 = vmatprep.subr.mxu0 0.0
        %2185 = vmatpush1.msra.mxu0 0.0
        %2186 = vmatprep.subr.mxu0 0.0
        %2187 = vmatpush1.msra.mxu0 0.0
        %2188 = vmatprep.subr.mxu0 0.0
        %2189 = vmatpush1.msra.mxu0 0.0
        %2190 = vmatprep.subr.mxu0 0.0
        %2191 = vmatpush1.msra.mxu0 0.0
        %2192 = vmatprep.subr.mxu0 0.0
        %2193 = vmatpush1.msra.mxu0 0.0
        %2194 = vmatprep.subr.mxu0 0.0
        %2195 = vmatpush1.msra.mxu0 0.0
        %2196 = vmatprep.subr.mxu0 0.0
        %2197 = vmatpush1.msra.mxu0 0.0
        %2198 = vmatprep.subr.mxu0 0.0
        %2199 = vmatpush1.msra.mxu0 0.0
        %2200 = vmatprep.subr.mxu0 0.0
        %2201 = vmatpush1.msra.mxu0 0.0
        %2202 = vmatprep.subr.mxu0 0.0
        %2203 = vmatpush1.msra.mxu0 0.0
        %2204 = vmatprep.subr.mxu0 0.0
        %2205 = vmatpush1.msra.mxu0 0.0
        %2206 = vmatprep.subr.mxu0 0.0
        %2207 = vmatpush1.msra.mxu0 0.0
        %2208 = vmatprep.subr.mxu0 0.0
        %2209 = vmatpush1.msra.mxu0 0.0
        %2210 = vmatprep.subr.mxu0 0.0
        %2211 = vmatpush1.msra.mxu0 0.0
        %2212 = vmatprep.subr.mxu0 0.0
        %2213 = vmatpush1.msra.mxu0 0.0
        %2214 = vmatprep.subr.mxu0 0.0
        %2215 = vmatpush1.msra.mxu0 0.0
        %2216 = vmatprep.subr.mxu0 0.0
        %2217 = vmatpush1.msra.mxu0 0.0
        %2218 = vmatprep.mubr.f32.mxu0 0.0
        %2219 = vmatmul.mubr.f32.gmra.mrb[0].mxu0 %v2152
        %v2220 = vpop.f32.mrb[0].mxu0
        %v2221 = vadd.f32 0.0, %v2220
        %v2222 = vpop.f32.mrb[0].mxu0
        %2223 = vdwg.mxu0
        %v2225 = vsel %vm1385, %v1455, 0
        %2227 = vmatprep.subr.mxu0 0.0
        %2228 = vmatpush1.msra.mxu0 %v455
        %2229 = vmatprep.subr.mxu0 0.0
        %2230 = vmatpush1.msra.mxu0 0.0
        %2231 = vmatprep.subr.mxu0 0.0
        %2232 = vmatpush1.msra.mxu0 0.0
        %2233 = vmatprep.subr.mxu0 0.0
        %2234 = vmatpush1.msra.mxu0 0.0
        %2235 = vmatprep.subr.mxu0 0.0
        %2236 = vmatpush1.msra.mxu0 0.0
        %2237 = vmatprep.subr.mxu0 0.0
        %2238 = vmatpush1.msra.mxu0 0.0
        %2239 = vmatprep.subr.mxu0 0.0
        %2240 = vmatpush1.msra.mxu0 0.0
        %2241 = vmatprep.subr.mxu0 0.0
        %2242 = vmatpush1.msra.mxu0 0.0
        %2243 = vmatprep.subr.mxu0 0.0
        %2244 = vmatpush1.msra.mxu0 0.0
        %2245 = vmatprep.subr.mxu0 0.0
        %2246 = vmatpush1.msra.mxu0 0.0
        %2247 = vmatprep.subr.mxu0 0.0
        %2248 = vmatpush1.msra.mxu0 0.0
        %2249 = vmatprep.subr.mxu0 0.0
        %2250 = vmatpush1.msra.mxu0 0.0
        %2251 = vmatprep.subr.mxu0 0.0
        %2252 = vmatpush1.msra.mxu0 0.0
        %2253 = vmatprep.subr.mxu0 0.0
        %2254 = vmatpush1.msra.mxu0 0.0
        %2255 = vmatprep.subr.mxu0 0.0
        %2256 = vmatpush1.msra.mxu0 0.0
        %2257 = vmatprep.subr.mxu0 0.0
        %2258 = vmatpush1.msra.mxu0 0.0
        %2259 = vmatprep.subr.mxu0 0.0
        %2260 = vmatpush1.msra.mxu0 0.0
        %2261 = vmatprep.subr.mxu0 0.0
        %2262 = vmatpush1.msra.mxu0 0.0
        %2263 = vmatprep.subr.mxu0 0.0
        %2264 = vmatpush1.msra.mxu0 0.0
        %2265 = vmatprep.subr.mxu0 0.0
        %2266 = vmatpush1.msra.mxu0 0.0
        %2267 = vmatprep.subr.mxu0 0.0
        %2268 = vmatpush1.msra.mxu0 0.0
        %2269 = vmatprep.subr.mxu0 0.0
        %2270 = vmatpush1.msra.mxu0 0.0
        %2271 = vmatprep.subr.mxu0 0.0
        %2272 = vmatpush1.msra.mxu0 0.0
        %2273 = vmatprep.subr.mxu0 0.0
        %2274 = vmatpush1.msra.mxu0 0.0
        %2275 = vmatprep.subr.mxu0 0.0
        %2276 = vmatpush1.msra.mxu0 0.0
        %2277 = vmatprep.subr.mxu0 0.0
        %2278 = vmatpush1.msra.mxu0 0.0
        %2279 = vmatprep.subr.mxu0 0.0
        %2280 = vmatpush1.msra.mxu0 0.0
        %2281 = vmatprep.subr.mxu0 0.0
        %2282 = vmatpush1.msra.mxu0 0.0
        %2283 = vmatprep.subr.mxu0 0.0
        %2284 = vmatpush1.msra.mxu0 0.0
        %2285 = vmatprep.subr.mxu0 0.0
        %2286 = vmatpush1.msra.mxu0 0.0
        %2287 = vmatprep.subr.mxu0 0.0
        %2288 = vmatpush1.msra.mxu0 0.0
        %2289 = vmatprep.subr.mxu0 0.0
        %2290 = vmatpush1.msra.mxu0 0.0
        %2291 = vmatprep.mubr.f32.mxu0 0.0
        %2292 = vmatmul.mubr.f32.gmra.mrb[0].mxu0 %v2225
        %v2293 = vpop.f32.mrb[0].mxu0
        %v2294 = vadd.f32 0.0, %v2293
        %v2295 = vpop.f32.mrb[0].mxu0
        %2296 = vdwg.mxu0
        %v2298 = vsel %vm1385, %v1457, 0
        %2300 = vmatprep.subr.mxu0 0.0
        %2301 = vmatpush1.msra.mxu0 %v463
        %2302 = vmatprep.subr.mxu0 0.0
        %2303 = vmatpush1.msra.mxu0 0.0
        %2304 = vmatprep.subr.mxu0 0.0
        %2305 = vmatpush1.msra.mxu0 0.0
        %2306 = vmatprep.subr.mxu0 0.0
        %2307 = vmatpush1.msra.mxu0 0.0
        %2308 = vmatprep.subr.mxu0 0.0
        %2309 = vmatpush1.msra.mxu0 0.0
        %2310 = vmatprep.subr.mxu0 0.0
        %2311 = vmatpush1.msra.mxu0 0.0
        %2312 = vmatprep.subr.mxu0 0.0
        %2313 = vmatpush1.msra.mxu0 0.0
        %2314 = vmatprep.subr.mxu0 0.0
        %2315 = vmatpush1.msra.mxu0 0.0
        %2316 = vmatprep.subr.mxu0 0.0
        %2317 = vmatpush1.msra.mxu0 0.0
        %2318 = vmatprep.subr.mxu0 0.0
        %2319 = vmatpush1.msra.mxu0 0.0
        %2320 = vmatprep.subr.mxu0 0.0
        %2321 = vmatpush1.msra.mxu0 0.0
        %2322 = vmatprep.subr.mxu0 0.0
        %2323 = vmatpush1.msra.mxu0 0.0
        %2324 = vmatprep.subr.mxu0 0.0
        %2325 = vmatpush1.msra.mxu0 0.0
        %2326 = vmatprep.subr.mxu0 0.0
        %2327 = vmatpush1.msra.mxu0 0.0
        %2328 = vmatprep.subr.mxu0 0.0
        %2329 = vmatpush1.msra.mxu0 0.0
        %2330 = vmatprep.subr.mxu0 0.0
        %2331 = vmatpush1.msra.mxu0 0.0
        %2332 = vmatprep.subr.mxu0 0.0
        %2333 = vmatpush1.msra.mxu0 0.0
        %2334 = vmatprep.subr.mxu0 0.0
        %2335 = vmatpush1.msra.mxu0 0.0
        %2336 = vmatprep.subr.mxu0 0.0
        %2337 = vmatpush1.msra.mxu0 0.0
        %2338 = vmatprep.subr.mxu0 0.0
        %2339 = vmatpush1.msra.mxu0 0.0
        %2340 = vmatprep.subr.mxu0 0.0
        %2341 = vmatpush1.msra.mxu0 0.0
        %2342 = vmatprep.subr.mxu0 0.0
        %2343 = vmatpush1.msra.mxu0 0.0
        %2344 = vmatprep.subr.mxu0 0.0
        %2345 = vmatpush1.msra.mxu0 0.0
        %2346 = vmatprep.subr.mxu0 0.0
        %2347 = vmatpush1.msra.mxu0 0.0
        %2348 = vmatprep.subr.mxu0 0.0
        %2349 = vmatpush1.msra.mxu0 0.0
        %2350 = vmatprep.subr.mxu0 0.0
        %2351 = vmatpush1.msra.mxu0 0.0
        %2352 = vmatprep.subr.mxu0 0.0
        %2353 = vmatpush1.msra.mxu0 0.0
        %2354 = vmatprep.subr.mxu0 0.0
        %2355 = vmatpush1.msra.mxu0 0.0
        %2356 = vmatprep.subr.mxu0 0.0
        %2357 = vmatpush1.msra.mxu0 0.0
        %2358 = vmatprep.subr.mxu0 0.0
        %2359 = vmatpush1.msra.mxu0 0.0
        %2360 = vmatprep.subr.mxu0 0.0
        %2361 = vmatpush1.msra.mxu0 0.0
        %2362 = vmatprep.subr.mxu0 0.0
        %2363 = vmatpush1.msra.mxu0 0.0
        %2364 = vmatprep.mubr.f32.mxu0 0.0
        %2365 = vmatmul.mubr.f32.gmra.mrb[0].mxu0 %v2298
        %v2366 = vpop.f32.mrb[0].mxu0
        %v2367 = vadd.f32 0.0, %v2366
        %v2368 = vpop.f32.mrb[0].mxu0
        %2369 = vdwg.mxu0
        %v2370 = vrcp.pop %v1460
        %v2371 = vrcp.pop %v1463
        %v2372 = vrcp.pop %v1466
        %v2373 = vrcp.pop %v1469
        %v2374 = vrcp.pop %v1472
        %v2375 = vrcp.pop %v1475
        %v2376 = vrcp.pop %v1478
        %v2377 = vrcp.pop %v1481
        %v2378 = vrcp.pop %v1484
        %v2379 = vrcp.pop %v1487
        %v2380 = vrcp.pop %v1490
        %v2381 = vrcp.pop %v1493
        %v2382 = vmul.f32 %v1564, %v2370
        %v2383 = vmul.f32 %v1637, %v2371
        %v2384 = vmul.f32 %v1710, %v2372
        %v2385 = vmul.f32 %v1783, %v2373
        %v2386 = vmul.f32 %v1856, %v2374
        %v2387 = vmul.f32 %v1929, %v2375
        %v2388 = vmul.f32 %v2002, %v2376
        %v2389 = vmul.f32 %v2075, %v2377
        %v2390 = vmul.f32 %v2148, %v2378
        %v2391 = vmul.f32 %v2221, %v2379
        %v2392 = vmul.f32 %v2294, %v2380
        %v2393 = vmul.f32 %v2367, %v2381
        %v2394 = vld [vmem:[#allocation7] sm:$0x3]
        %v2395 = vld [vmem:[#allocation7 + $0x2] sm:$0x3]
        %v2396 = vld [vmem:[#allocation7 + $0x4] sm:$0x3]
        %v2397 = vld [vmem:[#allocation7 + $0x6] sm:$0x3]
        %v2398 = vld [vmem:[#allocation7 + $0x8] sm:$0x3]
        %v2399 = vld [vmem:[#allocation7 + $0xa] sm:$0x3]
        %v2400 = vld [vmem:[#allocation7 + $0xc] sm:$0x3]
        %v2401 = vld [vmem:[#allocation7 + $0xe] sm:$0x3]
        %v2402 = vld [vmem:[#allocation7 + $0x10] sm:$0x3]
        %v2403 = vld [vmem:[#allocation7 + $0x12] sm:$0x3]
        %v2404 = vld [vmem:[#allocation7 + $0x14] sm:$0x3]
        %v2405 = vld [vmem:[#allocation7 + $0x16] sm:$0x3]
        %v2407 = vsel %vm484, %v2382, 0
        %vm2409 = vcmask 1041408
        %v2411 = vsel %vm2409, %v2394, 0
        %2413 = vmatprep.subr.mxu0 0.0
        %2414 = vmatpush1.msra.mxu0 %v2411
        %2415 = vmatprep.subr.mxu0 0.0
        %2416 = vmatpush1.msra.mxu0 0.0
        %2417 = vmatprep.subr.mxu0 0.0
        %2418 = vmatpush1.msra.mxu0 0.0
        %2419 = vmatprep.subr.mxu0 0.0
        %2420 = vmatpush1.msra.mxu0 0.0
        %2421 = vmatprep.subr.mxu0 0.0
        %2422 = vmatpush1.msra.mxu0 0.0
        %2423 = vmatprep.subr.mxu0 0.0
        %2424 = vmatpush1.msra.mxu0 0.0
        %2425 = vmatprep.subr.mxu0 0.0
        %2426 = vmatpush1.msra.mxu0 0.0
        %2427 = vmatprep.subr.mxu0 0.0
        %2428 = vmatpush1.msra.mxu0 0.0
        %2429 = vmatprep.subr.mxu0 0.0
        %2430 = vmatpush1.msra.mxu0 0.0
        %2431 = vmatprep.subr.mxu0 0.0
        %2432 = vmatpush1.msra.mxu0 0.0
        %2433 = vmatprep.subr.mxu0 0.0
        %2434 = vmatpush1.msra.mxu0 0.0
        %2435 = vmatprep.subr.mxu0 0.0
        %2436 = vmatpush1.msra.mxu0 0.0
        %2437 = vmatprep.subr.mxu0 0.0
        %2438 = vmatpush1.msra.mxu0 0.0
        %2439 = vmatprep.subr.mxu0 0.0
        %2440 = vmatpush1.msra.mxu0 0.0
        %2441 = vmatprep.subr.mxu0 0.0
        %2442 = vmatpush1.msra.mxu0 0.0
        %2443 = vmatprep.subr.mxu0 0.0
        %2444 = vmatpush1.msra.mxu0 0.0
        %2445 = vmatprep.subr.mxu0 0.0
        %2446 = vmatpush1.msra.mxu0 0.0
        %2447 = vmatprep.subr.mxu0 0.0
        %2448 = vmatpush1.msra.mxu0 0.0
        %2449 = vmatprep.subr.mxu0 0.0
        %2450 = vmatpush1.msra.mxu0 0.0
        %2451 = vmatprep.subr.mxu0 0.0
        %2452 = vmatpush1.msra.mxu0 0.0
        %2453 = vmatprep.subr.mxu0 0.0
        %2454 = vmatpush1.msra.mxu0 0.0
        %2455 = vmatprep.subr.mxu0 0.0
        %2456 = vmatpush1.msra.mxu0 0.0
        %2457 = vmatprep.subr.mxu0 0.0
        %2458 = vmatpush1.msra.mxu0 0.0
        %2459 = vmatprep.subr.mxu0 0.0
        %2460 = vmatpush1.msra.mxu0 0.0
        %2461 = vmatprep.subr.mxu0 0.0
        %2462 = vmatpush1.msra.mxu0 0.0
        %2463 = vmatprep.subr.mxu0 0.0
        %2464 = vmatpush1.msra.mxu0 0.0
        %2465 = vmatprep.subr.mxu0 0.0
        %2466 = vmatpush1.msra.mxu0 0.0
        %2467 = vmatprep.subr.mxu0 0.0
        %2468 = vmatpush1.msra.mxu0 0.0
        %2469 = vmatprep.subr.mxu0 0.0
        %2470 = vmatpush1.msra.mxu0 0.0
        %2471 = vmatprep.subr.mxu0 0.0
        %2472 = vmatpush1.msra.mxu0 0.0
        %2473 = vmatprep.subr.mxu0 0.0
        %2474 = vmatpush1.msra.mxu0 0.0
        %2475 = vmatprep.subr.mxu0 0.0
        %2476 = vmatpush1.msra.mxu0 0.0
        %2477 = vmatprep.mubr.f32.mxu0 0.0
        %2478 = vmatmul.mubr.f32.gmra.mrb[0].mxu0 %v2407
        %v2479 = vpop.f32.mrb[0].mxu0
        %v2480 = vadd.f32 0.0, %v2479
        %v2481 = vpop.f32.mrb[0].mxu0
        %2482 = vdwg.mxu0
        %v2484 = vsel %vm484, %v2383, 0
        %v2487 = vsel %vm2409, %v2395, 0
        %2489 = vmatprep.subr.mxu0 0.0
        %2490 = vmatpush1.msra.mxu0 %v2487
        %2491 = vmatprep.subr.mxu0 0.0
        %2492 = vmatpush1.msra.mxu0 0.0
        %2493 = vmatprep.subr.mxu0 0.0
        %2494 = vmatpush1.msra.mxu0 0.0
        %2495 = vmatprep.subr.mxu0 0.0
        %2496 = vmatpush1.msra.mxu0 0.0
        %2497 = vmatprep.subr.mxu0 0.0
        %2498 = vmatpush1.msra.mxu0 0.0
        %2499 = vmatprep.subr.mxu0 0.0
        %2500 = vmatpush1.msra.mxu0 0.0
        %2501 = vmatprep.subr.mxu0 0.0
        %2502 = vmatpush1.msra.mxu0 0.0
        %2503 = vmatprep.subr.mxu0 0.0
        %2504 = vmatpush1.msra.mxu0 0.0
        %2505 = vmatprep.subr.mxu0 0.0
        %2506 = vmatpush1.msra.mxu0 0.0
        %2507 = vmatprep.subr.mxu0 0.0
        %2508 = vmatpush1.msra.mxu0 0.0
        %2509 = vmatprep.subr.mxu0 0.0
        %2510 = vmatpush1.msra.mxu0 0.0
        %2511 = vmatprep.subr.mxu0 0.0
        %2512 = vmatpush1.msra.mxu0 0.0
        %2513 = vmatprep.subr.mxu0 0.0
        %2514 = vmatpush1.msra.mxu0 0.0
        %2515 = vmatprep.subr.mxu0 0.0
        %2516 = vmatpush1.msra.mxu0 0.0
        %2517 = vmatprep.subr.mxu0 0.0
        %2518 = vmatpush1.msra.mxu0 0.0
        %2519 = vmatprep.subr.mxu0 0.0
        %2520 = vmatpush1.msra.mxu0 0.0
        %2521 = vmatprep.subr.mxu0 0.0
        %2522 = vmatpush1.msra.mxu0 0.0
        %2523 = vmatprep.subr.mxu0 0.0
        %2524 = vmatpush1.msra.mxu0 0.0
        %2525 = vmatprep.subr.mxu0 0.0
        %2526 = vmatpush1.msra.mxu0 0.0
        %2527 = vmatprep.subr.mxu0 0.0
        %2528 = vmatpush1.msra.mxu0 0.0
        %2529 = vmatprep.subr.mxu0 0.0
        %2530 = vmatpush1.msra.mxu0 0.0
        %2531 = vmatprep.subr.mxu0 0.0
        %2532 = vmatpush1.msra.mxu0 0.0
        %2533 = vmatprep.subr.mxu0 0.0
        %2534 = vmatpush1.msra.mxu0 0.0
        %2535 = vmatprep.subr.mxu0 0.0
        %2536 = vmatpush1.msra.mxu0 0.0
        %2537 = vmatprep.subr.mxu0 0.0
        %2538 = vmatpush1.msra.mxu0 0.0
        %2539 = vmatprep.subr.mxu0 0.0
        %2540 = vmatpush1.msra.mxu0 0.0
        %2541 = vmatprep.subr.mxu0 0.0
        %2542 = vmatpush1.msra.mxu0 0.0
        %2543 = vmatprep.subr.mxu0 0.0
        %2544 = vmatpush1.msra.mxu0 0.0
        %2545 = vmatprep.subr.mxu0 0.0
        %2546 = vmatpush1.msra.mxu0 0.0
        %2547 = vmatprep.subr.mxu0 0.0
        %2548 = vmatpush1.msra.mxu0 0.0
        %2549 = vmatprep.subr.mxu0 0.0
        %2550 = vmatpush1.msra.mxu0 0.0
        %2551 = vmatprep.subr.mxu0 0.0
        %2552 = vmatpush1.msra.mxu0 0.0
        %2553 = vmatprep.mubr.f32.mxu0 0.0
        %2554 = vmatmul.mubr.f32.gmra.mrb[0].mxu0 %v2484
        %v2555 = vpop.f32.mrb[0].mxu0
        %v2556 = vadd.f32 0.0, %v2555
        %v2557 = vpop.f32.mrb[0].mxu0
        %2558 = vdwg.mxu0
        %v2560 = vsel %vm484, %v2384, 0
        %v2563 = vsel %vm2409, %v2396, 0
        %2565 = vmatprep.subr.mxu0 0.0
        %2566 = vmatpush1.msra.mxu0 %v2563
        %2567 = vmatprep.subr.mxu0 0.0
        %2568 = vmatpush1.msra.mxu0 0.0
        %2569 = vmatprep.subr.mxu0 0.0
        %2570 = vmatpush1.msra.mxu0 0.0
        %2571 = vmatprep.subr.mxu0 0.0
        %2572 = vmatpush1.msra.mxu0 0.0
        %2573 = vmatprep.subr.mxu0 0.0
        %2574 = vmatpush1.msra.mxu0 0.0
        %2575 = vmatprep.subr.mxu0 0.0
        %2576 = vmatpush1.msra.mxu0 0.0
        %2577 = vmatprep.subr.mxu0 0.0
        %2578 = vmatpush1.msra.mxu0 0.0
        %2579 = vmatprep.subr.mxu0 0.0
        %2580 = vmatpush1.msra.mxu0 0.0
        %2581 = vmatprep.subr.mxu0 0.0
        %2582 = vmatpush1.msra.mxu0 0.0
        %2583 = vmatprep.subr.mxu0 0.0
        %2584 = vmatpush1.msra.mxu0 0.0
        %2585 = vmatprep.subr.mxu0 0.0
        %2586 = vmatpush1.msra.mxu0 0.0
        %2587 = vmatprep.subr.mxu0 0.0
        %2588 = vmatpush1.msra.mxu0 0.0
        %2589 = vmatprep.subr.mxu0 0.0
        %2590 = vmatpush1.msra.mxu0 0.0
        %2591 = vmatprep.subr.mxu0 0.0
        %2592 = vmatpush1.msra.mxu0 0.0
        %2593 = vmatprep.subr.mxu0 0.0
        %2594 = vmatpush1.msra.mxu0 0.0
        %2595 = vmatprep.subr.mxu0 0.0
        %2596 = vmatpush1.msra.mxu0 0.0
        %2597 = vmatprep.subr.mxu0 0.0
        %2598 = vmatpush1.msra.mxu0 0.0
        %2599 = vmatprep.subr.mxu0 0.0
        %2600 = vmatpush1.msra.mxu0 0.0
        %2601 = vmatprep.subr.mxu0 0.0
        %2602 = vmatpush1.msra.mxu0 0.0
        %2603 = vmatprep.subr.mxu0 0.0
        %2604 = vmatpush1.msra.mxu0 0.0
        %2605 = vmatprep.subr.mxu0 0.0
        %2606 = vmatpush1.msra.mxu0 0.0
        %2607 = vmatprep.subr.mxu0 0.0
        %2608 = vmatpush1.msra.mxu0 0.0
        %2609 = vmatprep.subr.mxu0 0.0
        %2610 = vmatpush1.msra.mxu0 0.0
        %2611 = vmatprep.subr.mxu0 0.0
        %2612 = vmatpush1.msra.mxu0 0.0
        %2613 = vmatprep.subr.mxu0 0.0
        %2614 = vmatpush1.msra.mxu0 0.0
        %2615 = vmatprep.subr.mxu0 0.0
        %2616 = vmatpush1.msra.mxu0 0.0
        %2617 = vmatprep.subr.mxu0 0.0
        %2618 = vmatpush1.msra.mxu0 0.0
        %2619 = vmatprep.subr.mxu0 0.0
        %2620 = vmatpush1.msra.mxu0 0.0
        %2621 = vmatprep.subr.mxu0 0.0
        %2622 = vmatpush1.msra.mxu0 0.0
        %2623 = vmatprep.subr.mxu0 0.0
        %2624 = vmatpush1.msra.mxu0 0.0
        %2625 = vmatprep.subr.mxu0 0.0
        %2626 = vmatpush1.msra.mxu0 0.0
        %2627 = vmatprep.subr.mxu0 0.0
        %2628 = vmatpush1.msra.mxu0 0.0
        %2629 = vmatprep.mubr.f32.mxu0 0.0
        %2630 = vmatmul.mubr.f32.gmra.mrb[0].mxu0 %v2560
        %v2631 = vpop.f32.mrb[0].mxu0
        %v2632 = vadd.f32 0.0, %v2631
        %v2633 = vpop.f32.mrb[0].mxu0
        %2634 = vdwg.mxu0
        %v2636 = vsel %vm484, %v2385, 0
        %v2639 = vsel %vm2409, %v2397, 0
        %2641 = vmatprep.subr.mxu0 0.0
        %2642 = vmatpush1.msra.mxu0 %v2639
        %2643 = vmatprep.subr.mxu0 0.0
        %2644 = vmatpush1.msra.mxu0 0.0
        %2645 = vmatprep.subr.mxu0 0.0
        %2646 = vmatpush1.msra.mxu0 0.0
        %2647 = vmatprep.subr.mxu0 0.0
        %2648 = vmatpush1.msra.mxu0 0.0
        %2649 = vmatprep.subr.mxu0 0.0
        %2650 = vmatpush1.msra.mxu0 0.0
        %2651 = vmatprep.subr.mxu0 0.0
        %2652 = vmatpush1.msra.mxu0 0.0
        %2653 = vmatprep.subr.mxu0 0.0
        %2654 = vmatpush1.msra.mxu0 0.0
        %2655 = vmatprep.subr.mxu0 0.0
        %2656 = vmatpush1.msra.mxu0 0.0
        %2657 = vmatprep.subr.mxu0 0.0
        %2658 = vmatpush1.msra.mxu0 0.0
        %2659 = vmatprep.subr.mxu0 0.0
        %2660 = vmatpush1.msra.mxu0 0.0
        %2661 = vmatprep.subr.mxu0 0.0
        %2662 = vmatpush1.msra.mxu0 0.0
        %2663 = vmatprep.subr.mxu0 0.0
        %2664 = vmatpush1.msra.mxu0 0.0
        %2665 = vmatprep.subr.mxu0 0.0
        %2666 = vmatpush1.msra.mxu0 0.0
        %2667 = vmatprep.subr.mxu0 0.0
        %2668 = vmatpush1.msra.mxu0 0.0
        %2669 = vmatprep.subr.mxu0 0.0
        %2670 = vmatpush1.msra.mxu0 0.0
        %2671 = vmatprep.subr.mxu0 0.0
        %2672 = vmatpush1.msra.mxu0 0.0
        %2673 = vmatprep.subr.mxu0 0.0
        %2674 = vmatpush1.msra.mxu0 0.0
        %2675 = vmatprep.subr.mxu0 0.0
        %2676 = vmatpush1.msra.mxu0 0.0
        %2677 = vmatprep.subr.mxu0 0.0
        %2678 = vmatpush1.msra.mxu0 0.0
        %2679 = vmatprep.subr.mxu0 0.0
        %2680 = vmatpush1.msra.mxu0 0.0
        %2681 = vmatprep.subr.mxu0 0.0
        %2682 = vmatpush1.msra.mxu0 0.0
        %2683 = vmatprep.subr.mxu0 0.0
        %2684 = vmatpush1.msra.mxu0 0.0
        %2685 = vmatprep.subr.mxu0 0.0
        %2686 = vmatpush1.msra.mxu0 0.0
        %2687 = vmatprep.subr.mxu0 0.0
        %2688 = vmatpush1.msra.mxu0 0.0
        %2689 = vmatprep.subr.mxu0 0.0
        %2690 = vmatpush1.msra.mxu0 0.0
        %2691 = vmatprep.subr.mxu0 0.0
        %2692 = vmatpush1.msra.mxu0 0.0
        %2693 = vmatprep.subr.mxu0 0.0
        %2694 = vmatpush1.msra.mxu0 0.0
        %2695 = vmatprep.subr.mxu0 0.0
        %2696 = vmatpush1.msra.mxu0 0.0
        %2697 = vmatprep.subr.mxu0 0.0
        %2698 = vmatpush1.msra.mxu0 0.0
        %2699 = vmatprep.subr.mxu0 0.0
        %2700 = vmatpush1.msra.mxu0 0.0
        %2701 = vmatprep.subr.mxu0 0.0
        %2702 = vmatpush1.msra.mxu0 0.0
        %2703 = vmatprep.subr.mxu0 0.0
        %2704 = vmatpush1.msra.mxu0 0.0
        %2705 = vmatprep.mubr.f32.mxu0 0.0
        %2706 = vmatmul.mubr.f32.gmra.mrb[0].mxu0 %v2636
        %v2707 = vpop.f32.mrb[0].mxu0
        %v2708 = vadd.f32 0.0, %v2707
        %v2709 = vpop.f32.mrb[0].mxu0
        %2710 = vdwg.mxu0
        %v2712 = vsel %vm484, %v2386, 0
        %v2715 = vsel %vm2409, %v2398, 0
        %2717 = vmatprep.subr.mxu0 0.0
        %2718 = vmatpush1.msra.mxu0 %v2715
        %2719 = vmatprep.subr.mxu0 0.0
        %2720 = vmatpush1.msra.mxu0 0.0
        %2721 = vmatprep.subr.mxu0 0.0
        %2722 = vmatpush1.msra.mxu0 0.0
        %2723 = vmatprep.subr.mxu0 0.0
        %2724 = vmatpush1.msra.mxu0 0.0
        %2725 = vmatprep.subr.mxu0 0.0
        %2726 = vmatpush1.msra.mxu0 0.0
        %2727 = vmatprep.subr.mxu0 0.0
        %2728 = vmatpush1.msra.mxu0 0.0
        %2729 = vmatprep.subr.mxu0 0.0
        %2730 = vmatpush1.msra.mxu0 0.0
        %2731 = vmatprep.subr.mxu0 0.0
        %2732 = vmatpush1.msra.mxu0 0.0
        %2733 = vmatprep.subr.mxu0 0.0
        %2734 = vmatpush1.msra.mxu0 0.0
        %2735 = vmatprep.subr.mxu0 0.0
        %2736 = vmatpush1.msra.mxu0 0.0
        %2737 = vmatprep.subr.mxu0 0.0
        %2738 = vmatpush1.msra.mxu0 0.0
        %2739 = vmatprep.subr.mxu0 0.0
        %2740 = vmatpush1.msra.mxu0 0.0
        %2741 = vmatprep.subr.mxu0 0.0
        %2742 = vmatpush1.msra.mxu0 0.0
        %2743 = vmatprep.subr.mxu0 0.0
        %2744 = vmatpush1.msra.mxu0 0.0
        %2745 = vmatprep.subr.mxu0 0.0
        %2746 = vmatpush1.msra.mxu0 0.0
        %2747 = vmatprep.subr.mxu0 0.0
        %2748 = vmatpush1.msra.mxu0 0.0
        %2749 = vmatprep.subr.mxu0 0.0
        %2750 = vmatpush1.msra.mxu0 0.0
        %2751 = vmatprep.subr.mxu0 0.0
        %2752 = vmatpush1.msra.mxu0 0.0
        %2753 = vmatprep.subr.mxu0 0.0
        %2754 = vmatpush1.msra.mxu0 0.0
        %2755 = vmatprep.subr.mxu0 0.0
        %2756 = vmatpush1.msra.mxu0 0.0
        %2757 = vmatprep.subr.mxu0 0.0
        %2758 = vmatpush1.msra.mxu0 0.0
        %2759 = vmatprep.subr.mxu0 0.0
        %2760 = vmatpush1.msra.mxu0 0.0
        %2761 = vmatprep.subr.mxu0 0.0
        %2762 = vmatpush1.msra.mxu0 0.0
        %2763 = vmatprep.subr.mxu0 0.0
        %2764 = vmatpush1.msra.mxu0 0.0
        %2765 = vmatprep.subr.mxu0 0.0
        %2766 = vmatpush1.msra.mxu0 0.0
        %2767 = vmatprep.subr.mxu0 0.0
        %2768 = vmatpush1.msra.mxu0 0.0
        %2769 = vmatprep.subr.mxu0 0.0
        %2770 = vmatpush1.msra.mxu0 0.0
        %2771 = vmatprep.subr.mxu0 0.0
        %2772 = vmatpush1.msra.mxu0 0.0
        %2773 = vmatprep.subr.mxu0 0.0
        %2774 = vmatpush1.msra.mxu0 0.0
        %2775 = vmatprep.subr.mxu0 0.0
        %2776 = vmatpush1.msra.mxu0 0.0
        %2777 = vmatprep.subr.mxu0 0.0
        %2778 = vmatpush1.msra.mxu0 0.0
        %2779 = vmatprep.subr.mxu0 0.0
        %2780 = vmatpush1.msra.mxu0 0.0
        %2781 = vmatprep.mubr.f32.mxu0 0.0
        %2782 = vmatmul.mubr.f32.gmra.mrb[0].mxu0 %v2712
        %v2783 = vpop.f32.mrb[0].mxu0
        %v2784 = vadd.f32 0.0, %v2783
        %v2785 = vpop.f32.mrb[0].mxu0
        %2786 = vdwg.mxu0
        %v2788 = vsel %vm484, %v2387, 0
        %v2791 = vsel %vm2409, %v2399, 0
        %2793 = vmatprep.subr.mxu0 0.0
        %2794 = vmatpush1.msra.mxu0 %v2791
        %2795 = vmatprep.subr.mxu0 0.0
        %2796 = vmatpush1.msra.mxu0 0.0
        %2797 = vmatprep.subr.mxu0 0.0
        %2798 = vmatpush1.msra.mxu0 0.0
        %2799 = vmatprep.subr.mxu0 0.0
        %2800 = vmatpush1.msra.mxu0 0.0
        %2801 = vmatprep.subr.mxu0 0.0
        %2802 = vmatpush1.msra.mxu0 0.0
        %2803 = vmatprep.subr.mxu0 0.0
        %2804 = vmatpush1.msra.mxu0 0.0
        %2805 = vmatprep.subr.mxu0 0.0
        %2806 = vmatpush1.msra.mxu0 0.0
        %2807 = vmatprep.subr.mxu0 0.0
        %2808 = vmatpush1.msra.mxu0 0.0
        %2809 = vmatprep.subr.mxu0 0.0
        %2810 = vmatpush1.msra.mxu0 0.0
        %2811 = vmatprep.subr.mxu0 0.0
        %2812 = vmatpush1.msra.mxu0 0.0
        %2813 = vmatprep.subr.mxu0 0.0
        %2814 = vmatpush1.msra.mxu0 0.0
        %2815 = vmatprep.subr.mxu0 0.0
        %2816 = vmatpush1.msra.mxu0 0.0
        %2817 = vmatprep.subr.mxu0 0.0
        %2818 = vmatpush1.msra.mxu0 0.0
        %2819 = vmatprep.subr.mxu0 0.0
        %2820 = vmatpush1.msra.mxu0 0.0
        %2821 = vmatprep.subr.mxu0 0.0
        %2822 = vmatpush1.msra.mxu0 0.0
        %2823 = vmatprep.subr.mxu0 0.0
        %2824 = vmatpush1.msra.mxu0 0.0
        %2825 = vmatprep.subr.mxu0 0.0
        %2826 = vmatpush1.msra.mxu0 0.0
        %2827 = vmatprep.subr.mxu0 0.0
        %2828 = vmatpush1.msra.mxu0 0.0
        %2829 = vmatprep.subr.mxu0 0.0
        %2830 = vmatpush1.msra.mxu0 0.0
        %2831 = vmatprep.subr.mxu0 0.0
        %2832 = vmatpush1.msra.mxu0 0.0
        %2833 = vmatprep.subr.mxu0 0.0
        %2834 = vmatpush1.msra.mxu0 0.0
        %2835 = vmatprep.subr.mxu0 0.0
        %2836 = vmatpush1.msra.mxu0 0.0
        %2837 = vmatprep.subr.mxu0 0.0
        %2838 = vmatpush1.msra.mxu0 0.0
        %2839 = vmatprep.subr.mxu0 0.0
        %2840 = vmatpush1.msra.mxu0 0.0
        %2841 = vmatprep.subr.mxu0 0.0
        %2842 = vmatpush1.msra.mxu0 0.0
        %2843 = vmatprep.subr.mxu0 0.0
        %2844 = vmatpush1.msra.mxu0 0.0
        %2845 = vmatprep.subr.mxu0 0.0
        %2846 = vmatpush1.msra.mxu0 0.0
        %2847 = vmatprep.subr.mxu0 0.0
        %2848 = vmatpush1.msra.mxu0 0.0
        %2849 = vmatprep.subr.mxu0 0.0
        %2850 = vmatpush1.msra.mxu0 0.0
        %2851 = vmatprep.subr.mxu0 0.0
        %2852 = vmatpush1.msra.mxu0 0.0
        %2853 = vmatprep.subr.mxu0 0.0
        %2854 = vmatpush1.msra.mxu0 0.0
        %2855 = vmatprep.subr.mxu0 0.0
        %2856 = vmatpush1.msra.mxu0 0.0
        %2857 = vmatprep.mubr.f32.mxu0 0.0
        %2858 = vmatmul.mubr.f32.gmra.mrb[0].mxu0 %v2788
        %v2859 = vpop.f32.mrb[0].mxu0
        %v2860 = vadd.f32 0.0, %v2859
        %v2861 = vpop.f32.mrb[0].mxu0
        %2862 = vdwg.mxu0
        %v2864 = vsel %vm484, %v2388, 0
        %v2867 = vsel %vm2409, %v2400, 0
        %2869 = vmatprep.subr.mxu0 0.0
        %2870 = vmatpush1.msra.mxu0 %v2867
        %2871 = vmatprep.subr.mxu0 0.0
        %2872 = vmatpush1.msra.mxu0 0.0
        %2873 = vmatprep.subr.mxu0 0.0
        %2874 = vmatpush1.msra.mxu0 0.0
        %2875 = vmatprep.subr.mxu0 0.0
        %2876 = vmatpush1.msra.mxu0 0.0
        %2877 = vmatprep.subr.mxu0 0.0
        %2878 = vmatpush1.msra.mxu0 0.0
        %2879 = vmatprep.subr.mxu0 0.0
        %2880 = vmatpush1.msra.mxu0 0.0
        %2881 = vmatprep.subr.mxu0 0.0
        %2882 = vmatpush1.msra.mxu0 0.0
        %2883 = vmatprep.subr.mxu0 0.0
        %2884 = vmatpush1.msra.mxu0 0.0
        %2885 = vmatprep.subr.mxu0 0.0
        %2886 = vmatpush1.msra.mxu0 0.0
        %2887 = vmatprep.subr.mxu0 0.0
        %2888 = vmatpush1.msra.mxu0 0.0
        %2889 = vmatprep.subr.mxu0 0.0
        %2890 = vmatpush1.msra.mxu0 0.0
        %2891 = vmatprep.subr.mxu0 0.0
        %2892 = vmatpush1.msra.mxu0 0.0
        %2893 = vmatprep.subr.mxu0 0.0
        %2894 = vmatpush1.msra.mxu0 0.0
        %2895 = vmatprep.subr.mxu0 0.0
        %2896 = vmatpush1.msra.mxu0 0.0
        %2897 = vmatprep.subr.mxu0 0.0
        %2898 = vmatpush1.msra.mxu0 0.0
        %2899 = vmatprep.subr.mxu0 0.0
        %2900 = vmatpush1.msra.mxu0 0.0
        %2901 = vmatprep.subr.mxu0 0.0
        %2902 = vmatpush1.msra.mxu0 0.0
        %2903 = vmatprep.subr.mxu0 0.0
        %2904 = vmatpush1.msra.mxu0 0.0
        %2905 = vmatprep.subr.mxu0 0.0
        %2906 = vmatpush1.msra.mxu0 0.0
        %2907 = vmatprep.subr.mxu0 0.0
        %2908 = vmatpush1.msra.mxu0 0.0
        %2909 = vmatprep.subr.mxu0 0.0
        %2910 = vmatpush1.msra.mxu0 0.0
        %2911 = vmatprep.subr.mxu0 0.0
        %2912 = vmatpush1.msra.mxu0 0.0
        %2913 = vmatprep.subr.mxu0 0.0
        %2914 = vmatpush1.msra.mxu0 0.0
        %2915 = vmatprep.subr.mxu0 0.0
        %2916 = vmatpush1.msra.mxu0 0.0
        %2917 = vmatprep.subr.mxu0 0.0
        %2918 = vmatpush1.msra.mxu0 0.0
        %2919 = vmatprep.subr.mxu0 0.0
        %2920 = vmatpush1.msra.mxu0 0.0
        %2921 = vmatprep.subr.mxu0 0.0
        %2922 = vmatpush1.msra.mxu0 0.0
        %2923 = vmatprep.subr.mxu0 0.0
        %2924 = vmatpush1.msra.mxu0 0.0
        %2925 = vmatprep.subr.mxu0 0.0
        %2926 = vmatpush1.msra.mxu0 0.0
        %2927 = vmatprep.subr.mxu0 0.0
        %2928 = vmatpush1.msra.mxu0 0.0
        %2929 = vmatprep.subr.mxu0 0.0
        %2930 = vmatpush1.msra.mxu0 0.0
        %2931 = vmatprep.subr.mxu0 0.0
        %2932 = vmatpush1.msra.mxu0 0.0
        %2933 = vmatprep.mubr.f32.mxu0 0.0
        %2934 = vmatmul.mubr.f32.gmra.mrb[0].mxu0 %v2864
        %v2935 = vpop.f32.mrb[0].mxu0
        %v2936 = vadd.f32 0.0, %v2935
        %v2937 = vpop.f32.mrb[0].mxu0
        %2938 = vdwg.mxu0
        %v2940 = vsel %vm484, %v2389, 0
        %v2943 = vsel %vm2409, %v2401, 0
        %2945 = vmatprep.subr.mxu0 0.0
        %2946 = vmatpush1.msra.mxu0 %v2943
        %2947 = vmatprep.subr.mxu0 0.0
        %2948 = vmatpush1.msra.mxu0 0.0
        %2949 = vmatprep.subr.mxu0 0.0
        %2950 = vmatpush1.msra.mxu0 0.0
        %2951 = vmatprep.subr.mxu0 0.0
        %2952 = vmatpush1.msra.mxu0 0.0
        %2953 = vmatprep.subr.mxu0 0.0
        %2954 = vmatpush1.msra.mxu0 0.0
        %2955 = vmatprep.subr.mxu0 0.0
        %2956 = vmatpush1.msra.mxu0 0.0
        %2957 = vmatprep.subr.mxu0 0.0
        %2958 = vmatpush1.msra.mxu0 0.0
        %2959 = vmatprep.subr.mxu0 0.0
        %2960 = vmatpush1.msra.mxu0 0.0
        %2961 = vmatprep.subr.mxu0 0.0
        %2962 = vmatpush1.msra.mxu0 0.0
        %2963 = vmatprep.subr.mxu0 0.0
        %2964 = vmatpush1.msra.mxu0 0.0
        %2965 = vmatprep.subr.mxu0 0.0
        %2966 = vmatpush1.msra.mxu0 0.0
        %2967 = vmatprep.subr.mxu0 0.0
        %2968 = vmatpush1.msra.mxu0 0.0
        %2969 = vmatprep.subr.mxu0 0.0
        %2970 = vmatpush1.msra.mxu0 0.0
        %2971 = vmatprep.subr.mxu0 0.0
        %2972 = vmatpush1.msra.mxu0 0.0
        %2973 = vmatprep.subr.mxu0 0.0
        %2974 = vmatpush1.msra.mxu0 0.0
        %2975 = vmatprep.subr.mxu0 0.0
        %2976 = vmatpush1.msra.mxu0 0.0
        %2977 = vmatprep.subr.mxu0 0.0
        %2978 = vmatpush1.msra.mxu0 0.0
        %2979 = vmatprep.subr.mxu0 0.0
        %2980 = vmatpush1.msra.mxu0 0.0
        %2981 = vmatprep.subr.mxu0 0.0
        %2982 = vmatpush1.msra.mxu0 0.0
        %2983 = vmatprep.subr.mxu0 0.0
        %2984 = vmatpush1.msra.mxu0 0.0
        %2985 = vmatprep.subr.mxu0 0.0
        %2986 = vmatpush1.msra.mxu0 0.0
        %2987 = vmatprep.subr.mxu0 0.0
        %2988 = vmatpush1.msra.mxu0 0.0
        %2989 = vmatprep.subr.mxu0 0.0
        %2990 = vmatpush1.msra.mxu0 0.0
        %2991 = vmatprep.subr.mxu0 0.0
        %2992 = vmatpush1.msra.mxu0 0.0
        %2993 = vmatprep.subr.mxu0 0.0
        %2994 = vmatpush1.msra.mxu0 0.0
        %2995 = vmatprep.subr.mxu0 0.0
        %2996 = vmatpush1.msra.mxu0 0.0
        %2997 = vmatprep.subr.mxu0 0.0
        %2998 = vmatpush1.msra.mxu0 0.0
        %2999 = vmatprep.subr.mxu0 0.0
        %3000 = vmatpush1.msra.mxu0 0.0
        %3001 = vmatprep.subr.mxu0 0.0
        %3002 = vmatpush1.msra.mxu0 0.0
        %3003 = vmatprep.subr.mxu0 0.0
        %3004 = vmatpush1.msra.mxu0 0.0
        %3005 = vmatprep.subr.mxu0 0.0
        %3006 = vmatpush1.msra.mxu0 0.0
        %3007 = vmatprep.subr.mxu0 0.0
        %3008 = vmatpush1.msra.mxu0 0.0
        %3009 = vmatprep.mubr.f32.mxu0 0.0
        %3010 = vmatmul.mubr.f32.gmra.mrb[0].mxu0 %v2940
        %v3011 = vpop.f32.mrb[0].mxu0
        %v3012 = vadd.f32 0.0, %v3011
        %v3013 = vpop.f32.mrb[0].mxu0
        %3014 = vdwg.mxu0
        %v3016 = vsel %vm484, %v2390, 0
        %v3019 = vsel %vm2409, %v2402, 0
        %3021 = vmatprep.subr.mxu0 0.0
        %3022 = vmatpush1.msra.mxu0 %v3019
        %3023 = vmatprep.subr.mxu0 0.0
        %3024 = vmatpush1.msra.mxu0 0.0
        %3025 = vmatprep.subr.mxu0 0.0
        %3026 = vmatpush1.msra.mxu0 0.0
        %3027 = vmatprep.subr.mxu0 0.0
        %3028 = vmatpush1.msra.mxu0 0.0
        %3029 = vmatprep.subr.mxu0 0.0
        %3030 = vmatpush1.msra.mxu0 0.0
        %3031 = vmatprep.subr.mxu0 0.0
        %3032 = vmatpush1.msra.mxu0 0.0
        %3033 = vmatprep.subr.mxu0 0.0
        %3034 = vmatpush1.msra.mxu0 0.0
        %3035 = vmatprep.subr.mxu0 0.0
        %3036 = vmatpush1.msra.mxu0 0.0
        %3037 = vmatprep.subr.mxu0 0.0
        %3038 = vmatpush1.msra.mxu0 0.0
        %3039 = vmatprep.subr.mxu0 0.0
        %3040 = vmatpush1.msra.mxu0 0.0
        %3041 = vmatprep.subr.mxu0 0.0
        %3042 = vmatpush1.msra.mxu0 0.0
        %3043 = vmatprep.subr.mxu0 0.0
        %3044 = vmatpush1.msra.mxu0 0.0
        %3045 = vmatprep.subr.mxu0 0.0
        %3046 = vmatpush1.msra.mxu0 0.0
        %3047 = vmatprep.subr.mxu0 0.0
        %3048 = vmatpush1.msra.mxu0 0.0
        %3049 = vmatprep.subr.mxu0 0.0
        %3050 = vmatpush1.msra.mxu0 0.0
        %3051 = vmatprep.subr.mxu0 0.0
        %3052 = vmatpush1.msra.mxu0 0.0
        %3053 = vmatprep.subr.mxu0 0.0
        %3054 = vmatpush1.msra.mxu0 0.0
        %3055 = vmatprep.subr.mxu0 0.0
        %3056 = vmatpush1.msra.mxu0 0.0
        %3057 = vmatprep.subr.mxu0 0.0
        %3058 = vmatpush1.msra.mxu0 0.0
        %3059 = vmatprep.subr.mxu0 0.0
        %3060 = vmatpush1.msra.mxu0 0.0
        %3061 = vmatprep.subr.mxu0 0.0
        %3062 = vmatpush1.msra.mxu0 0.0
        %3063 = vmatprep.subr.mxu0 0.0
        %3064 = vmatpush1.msra.mxu0 0.0
        %3065 = vmatprep.subr.mxu0 0.0
        %3066 = vmatpush1.msra.mxu0 0.0
        %3067 = vmatprep.subr.mxu0 0.0
        %3068 = vmatpush1.msra.mxu0 0.0
        %3069 = vmatprep.subr.mxu0 0.0
        %3070 = vmatpush1.msra.mxu0 0.0
        %3071 = vmatprep.subr.mxu0 0.0
        %3072 = vmatpush1.msra.mxu0 0.0
        %3073 = vmatprep.subr.mxu0 0.0
        %3074 = vmatpush1.msra.mxu0 0.0
        %3075 = vmatprep.subr.mxu0 0.0
        %3076 = vmatpush1.msra.mxu0 0.0
        %3077 = vmatprep.subr.mxu0 0.0
        %3078 = vmatpush1.msra.mxu0 0.0
        %3079 = vmatprep.subr.mxu0 0.0
        %3080 = vmatpush1.msra.mxu0 0.0
        %3081 = vmatprep.subr.mxu0 0.0
        %3082 = vmatpush1.msra.mxu0 0.0
        %3083 = vmatprep.subr.mxu0 0.0
        %3084 = vmatpush1.msra.mxu0 0.0
        %3085 = vmatprep.mubr.f32.mxu0 0.0
        %3086 = vmatmul.mubr.f32.gmra.mrb[0].mxu0 %v3016
        %v3087 = vpop.f32.mrb[0].mxu0
        %v3088 = vadd.f32 0.0, %v3087
        %v3089 = vpop.f32.mrb[0].mxu0
        %3090 = vdwg.mxu0
        %v3092 = vsel %vm484, %v2391, 0
        %v3095 = vsel %vm2409, %v2403, 0
        %3097 = vmatprep.subr.mxu0 0.0
        %3098 = vmatpush1.msra.mxu0 %v3095
        %3099 = vmatprep.subr.mxu0 0.0
        %3100 = vmatpush1.msra.mxu0 0.0
        %3101 = vmatprep.subr.mxu0 0.0
        %3102 = vmatpush1.msra.mxu0 0.0
        %3103 = vmatprep.subr.mxu0 0.0
        %3104 = vmatpush1.msra.mxu0 0.0
        %3105 = vmatprep.subr.mxu0 0.0
        %3106 = vmatpush1.msra.mxu0 0.0
        %3107 = vmatprep.subr.mxu0 0.0
        %3108 = vmatpush1.msra.mxu0 0.0
        %3109 = vmatprep.subr.mxu0 0.0
        %3110 = vmatpush1.msra.mxu0 0.0
        %3111 = vmatprep.subr.mxu0 0.0
        %3112 = vmatpush1.msra.mxu0 0.0
        %3113 = vmatprep.subr.mxu0 0.0
        %3114 = vmatpush1.msra.mxu0 0.0
        %3115 = vmatprep.subr.mxu0 0.0
        %3116 = vmatpush1.msra.mxu0 0.0
        %3117 = vmatprep.subr.mxu0 0.0
        %3118 = vmatpush1.msra.mxu0 0.0
        %3119 = vmatprep.subr.mxu0 0.0
        %3120 = vmatpush1.msra.mxu0 0.0
        %3121 = vmatprep.subr.mxu0 0.0
        %3122 = vmatpush1.msra.mxu0 0.0
        %3123 = vmatprep.subr.mxu0 0.0
        %3124 = vmatpush1.msra.mxu0 0.0
        %3125 = vmatprep.subr.mxu0 0.0
        %3126 = vmatpush1.msra.mxu0 0.0
        %3127 = vmatprep.subr.mxu0 0.0
        %3128 = vmatpush1.msra.mxu0 0.0
        %3129 = vmatprep.subr.mxu0 0.0
        %3130 = vmatpush1.msra.mxu0 0.0
        %3131 = vmatprep.subr.mxu0 0.0
        %3132 = vmatpush1.msra.mxu0 0.0
        %3133 = vmatprep.subr.mxu0 0.0
        %3134 = vmatpush1.msra.mxu0 0.0
        %3135 = vmatprep.subr.mxu0 0.0
        %3136 = vmatpush1.msra.mxu0 0.0
        %3137 = vmatprep.subr.mxu0 0.0
        %3138 = vmatpush1.msra.mxu0 0.0
        %3139 = vmatprep.subr.mxu0 0.0
        %3140 = vmatpush1.msra.mxu0 0.0
        %3141 = vmatprep.subr.mxu0 0.0
        %3142 = vmatpush1.msra.mxu0 0.0
        %3143 = vmatprep.subr.mxu0 0.0
        %3144 = vmatpush1.msra.mxu0 0.0
        %3145 = vmatprep.subr.mxu0 0.0
        %3146 = vmatpush1.msra.mxu0 0.0
        %3147 = vmatprep.subr.mxu0 0.0
        %3148 = vmatpush1.msra.mxu0 0.0
        %3149 = vmatprep.subr.mxu0 0.0
        %3150 = vmatpush1.msra.mxu0 0.0
        %3151 = vmatprep.subr.mxu0 0.0
        %3152 = vmatpush1.msra.mxu0 0.0
        %3153 = vmatprep.subr.mxu0 0.0
        %3154 = vmatpush1.msra.mxu0 0.0
        %3155 = vmatprep.subr.mxu0 0.0
        %3156 = vmatpush1.msra.mxu0 0.0
        %3157 = vmatprep.subr.mxu0 0.0
        %3158 = vmatpush1.msra.mxu0 0.0
        %3159 = vmatprep.subr.mxu0 0.0
        %3160 = vmatpush1.msra.mxu0 0.0
        %3161 = vmatprep.mubr.f32.mxu0 0.0
        %3162 = vmatmul.mubr.f32.gmra.mrb[0].mxu0 %v3092
        %v3163 = vpop.f32.mrb[0].mxu0
        %v3164 = vadd.f32 0.0, %v3163
        %v3165 = vpop.f32.mrb[0].mxu0
        %3166 = vdwg.mxu0
        %v3168 = vsel %vm484, %v2392, 0
        %v3171 = vsel %vm2409, %v2404, 0
        %3173 = vmatprep.subr.mxu0 0.0
        %3174 = vmatpush1.msra.mxu0 %v3171
        %3175 = vmatprep.subr.mxu0 0.0
        %3176 = vmatpush1.msra.mxu0 0.0
        %3177 = vmatprep.subr.mxu0 0.0
        %3178 = vmatpush1.msra.mxu0 0.0
        %3179 = vmatprep.subr.mxu0 0.0
        %3180 = vmatpush1.msra.mxu0 0.0
        %3181 = vmatprep.subr.mxu0 0.0
        %3182 = vmatpush1.msra.mxu0 0.0
        %3183 = vmatprep.subr.mxu0 0.0
        %3184 = vmatpush1.msra.mxu0 0.0
        %3185 = vmatprep.subr.mxu0 0.0
        %3186 = vmatpush1.msra.mxu0 0.0
        %3187 = vmatprep.subr.mxu0 0.0
        %3188 = vmatpush1.msra.mxu0 0.0
        %3189 = vmatprep.subr.mxu0 0.0
        %3190 = vmatpush1.msra.mxu0 0.0
        %3191 = vmatprep.subr.mxu0 0.0
        %3192 = vmatpush1.msra.mxu0 0.0
        %3193 = vmatprep.subr.mxu0 0.0
        %3194 = vmatpush1.msra.mxu0 0.0
        %3195 = vmatprep.subr.mxu0 0.0
        %3196 = vmatpush1.msra.mxu0 0.0
        %3197 = vmatprep.subr.mxu0 0.0
        %3198 = vmatpush1.msra.mxu0 0.0
        %3199 = vmatprep.subr.mxu0 0.0
        %3200 = vmatpush1.msra.mxu0 0.0
        %3201 = vmatprep.subr.mxu0 0.0
        %3202 = vmatpush1.msra.mxu0 0.0
        %3203 = vmatprep.subr.mxu0 0.0
        %3204 = vmatpush1.msra.mxu0 0.0
        %3205 = vmatprep.subr.mxu0 0.0
        %3206 = vmatpush1.msra.mxu0 0.0
        %3207 = vmatprep.subr.mxu0 0.0
        %3208 = vmatpush1.msra.mxu0 0.0
        %3209 = vmatprep.subr.mxu0 0.0
        %3210 = vmatpush1.msra.mxu0 0.0
        %3211 = vmatprep.subr.mxu0 0.0
        %3212 = vmatpush1.msra.mxu0 0.0
        %3213 = vmatprep.subr.mxu0 0.0
        %3214 = vmatpush1.msra.mxu0 0.0
        %3215 = vmatprep.subr.mxu0 0.0
        %3216 = vmatpush1.msra.mxu0 0.0
        %3217 = vmatprep.subr.mxu0 0.0
        %3218 = vmatpush1.msra.mxu0 0.0
        %3219 = vmatprep.subr.mxu0 0.0
        %3220 = vmatpush1.msra.mxu0 0.0
        %3221 = vmatprep.subr.mxu0 0.0
        %3222 = vmatpush1.msra.mxu0 0.0
        %3223 = vmatprep.subr.mxu0 0.0
        %3224 = vmatpush1.msra.mxu0 0.0
        %3225 = vmatprep.subr.mxu0 0.0
        %3226 = vmatpush1.msra.mxu0 0.0
        %3227 = vmatprep.subr.mxu0 0.0
        %3228 = vmatpush1.msra.mxu0 0.0
        %3229 = vmatprep.subr.mxu0 0.0
        %3230 = vmatpush1.msra.mxu0 0.0
        %3231 = vmatprep.subr.mxu0 0.0
        %3232 = vmatpush1.msra.mxu0 0.0
        %3233 = vmatprep.subr.mxu0 0.0
        %3234 = vmatpush1.msra.mxu0 0.0
        %3235 = vmatprep.subr.mxu0 0.0
        %3236 = vmatpush1.msra.mxu0 0.0
        %3237 = vmatprep.mubr.f32.mxu0 0.0
        %3238 = vmatmul.mubr.f32.gmra.mrb[0].mxu0 %v3168
        %v3239 = vpop.f32.mrb[0].mxu0
        %v3240 = vadd.f32 0.0, %v3239
        %v3241 = vpop.f32.mrb[0].mxu0
        %3242 = vdwg.mxu0
        %v3244 = vsel %vm484, %v2393, 0
        %v3247 = vsel %vm2409, %v2405, 0
        %3249 = vmatprep.subr.mxu0 0.0
        %3250 = vmatpush1.msra.mxu0 %v3247
        %3251 = vmatprep.subr.mxu0 0.0
        %3252 = vmatpush1.msra.mxu0 0.0
        %3253 = vmatprep.subr.mxu0 0.0
        %3254 = vmatpush1.msra.mxu0 0.0
        %3255 = vmatprep.subr.mxu0 0.0
        %3256 = vmatpush1.msra.mxu0 0.0
        %3257 = vmatprep.subr.mxu0 0.0
        %3258 = vmatpush1.msra.mxu0 0.0
        %3259 = vmatprep.subr.mxu0 0.0
        %3260 = vmatpush1.msra.mxu0 0.0
        %3261 = vmatprep.subr.mxu0 0.0
        %3262 = vmatpush1.msra.mxu0 0.0
        %3263 = vmatprep.subr.mxu0 0.0
        %3264 = vmatpush1.msra.mxu0 0.0
        %3265 = vmatprep.subr.mxu0 0.0
        %3266 = vmatpush1.msra.mxu0 0.0
        %3267 = vmatprep.subr.mxu0 0.0
        %3268 = vmatpush1.msra.mxu0 0.0
        %3269 = vmatprep.subr.mxu0 0.0
        %3270 = vmatpush1.msra.mxu0 0.0
        %3271 = vmatprep.subr.mxu0 0.0
        %3272 = vmatpush1.msra.mxu0 0.0
        %3273 = vmatprep.subr.mxu0 0.0
        %3274 = vmatpush1.msra.mxu0 0.0
        %3275 = vmatprep.subr.mxu0 0.0
        %3276 = vmatpush1.msra.mxu0 0.0
        %3277 = vmatprep.subr.mxu0 0.0
        %3278 = vmatpush1.msra.mxu0 0.0
        %3279 = vmatprep.subr.mxu0 0.0
        %3280 = vmatpush1.msra.mxu0 0.0
        %3281 = vmatprep.subr.mxu0 0.0
        %3282 = vmatpush1.msra.mxu0 0.0
        %3283 = vmatprep.subr.mxu0 0.0
        %3284 = vmatpush1.msra.mxu0 0.0
        %3285 = vmatprep.subr.mxu0 0.0
        %3286 = vmatpush1.msra.mxu0 0.0
        %3287 = vmatprep.subr.mxu0 0.0
        %3288 = vmatpush1.msra.mxu0 0.0
        %3289 = vmatprep.subr.mxu0 0.0
        %3290 = vmatpush1.msra.mxu0 0.0
        %3291 = vmatprep.subr.mxu0 0.0
        %3292 = vmatpush1.msra.mxu0 0.0
        %3293 = vmatprep.subr.mxu0 0.0
        %3294 = vmatpush1.msra.mxu0 0.0
        %3295 = vmatprep.subr.mxu0 0.0
        %3296 = vmatpush1.msra.mxu0 0.0
        %3297 = vmatprep.subr.mxu0 0.0
        %3298 = vmatpush1.msra.mxu0 0.0
        %3299 = vmatprep.subr.mxu0 0.0
        %3300 = vmatpush1.msra.mxu0 0.0
        %3301 = vmatprep.subr.mxu0 0.0
        %3302 = vmatpush1.msra.mxu0 0.0
        %3303 = vmatprep.subr.mxu0 0.0
        %3304 = vmatpush1.msra.mxu0 0.0
        %3305 = vmatprep.subr.mxu0 0.0
        %3306 = vmatpush1.msra.mxu0 0.0
        %3307 = vmatprep.subr.mxu0 0.0
        %3308 = vmatpush1.msra.mxu0 0.0
        %3309 = vmatprep.subr.mxu0 0.0
        %3310 = vmatpush1.msra.mxu0 0.0
        %3311 = vmatprep.subr.mxu0 0.0
        %3312 = vmatpush1.msra.mxu0 0.0
        %3313 = vmatprep.mubr.f32.mxu0 0.0
        %3314 = vmatmul.mubr.f32.gmra.mrb[0].mxu0 %v3244
        %v3315 = vpop.f32.mrb[0].mxu0
        %v3316 = vadd.f32 0.0, %v3315
        %v3317 = vpop.f32.mrb[0].mxu0
        %3318 = vdwg.mxu0
        %v3319 = vsel %vm285, %v2480, 0.0
        %v3320 = vsel %vm285, %v2556, 0.0
        %v3321 = vadd.f32 %v3319, %v3320
        %v3322 = vsel %vm285, %v2632, 0.0
        %v3323 = vadd.f32 %v3321, %v3322
        %v3324 = vsel %vm285, %v2708, 0.0
        %v3325 = vadd.f32 %v3323, %v3324
        %v3326 = vsel %vm285, %v2784, 0.0
        %v3327 = vadd.f32 %v3325, %v3326
        %v3328 = vsel %vm285, %v2860, 0.0
        %v3329 = vadd.f32 %v3327, %v3328
        %v3330 = vsel %vm285, %v2936, 0.0
        %v3331 = vadd.f32 %v3329, %v3330
        %v3332 = vsel %vm285, %v3012, 0.0
        %v3333 = vadd.f32 %v3331, %v3332
        %v3334 = vsel %vm285, %v3088, 0.0
        %v3335 = vadd.f32 %v3333, %v3334
        %v3336 = vsel %vm285, %v3164, 0.0
        %v3337 = vadd.f32 %v3335, %v3336
        %v3338 = vsel %vm285, %v3240, 0.0
        %v3339 = vadd.f32 %v3337, %v3338
        %v3340 = vsel %vm285, %v3316, 0.0
        %v3341 = vadd.f32 %v3339, %v3340
        %v3342 = vld [vmem:[%s4] sm:$0x1]
        %v3344 = vlaneseq
        %v3345 = vshrl.u32 %v3344, 7
        %v3346 = vsub.s32 0, %v3345
        %v3347 = vrot.slane %v3342, %v3346
        %v3349 = vadd.f32 %v3341, %v3347
        %3350 = vst.msk [vmem:[%s271] sm:$0xff] %vm285, %v3349
        %s3351 = sand.u32 %s141, 1
        %s3352 = scalar_lea.sflag [#allocation4], %s3351
        %s3353 = sand.u32 %s141, 1
        %s3354 = smul.addr %s3353, 8
        %s3355 = scalar_lea.vmem [#allocation8], %s3354
        // Predicated region
        $region53: #{tpu_custom_call.1} parent=39 // pred_check
          %p3356 = pneg %p151
        $region54: #{tpu_custom_call.1} parent=39 // pred_check_branch
          %3358 = sbr.rel (%p3356) target = $region56
        $region55: #{tpu_custom_call.1} parent=39 // pred_region
          %s3360 = ssub.s32 128, 128
          %3361 = vsyncadd %s3352, %s3360
          %s3362 = smul.addr %s23, 128
          %s3363 = scalar_lea.hbm %s5, %s3362
          %s3365 = sshll.u32 %s3355, 4
          %s3366 = int_to_ptr.vmem [resolvable:$true] %s3365
          %3368 = dma.vmem_to_hbm [thread:$0]  %s3366, 128, %s3363, %s3352
        $region56: #{tpu_custom_call.1} parent=39 // pred_fallthru
          _
      $region40: #{tpu_custom_call.1} parent=5 // pred_fallthru
        _
      %p3369 = scmp.le.s32.totalorder 2, %s18
      // Predicated region
      $region57: #{tpu_custom_call.1} parent=5 // pred_check
        %p3370 = pneg %p3369
      $region58: #{tpu_custom_call.1} parent=5 // pred_check_branch
        %3372 = sbr.rel (%p3370) target = $region60
      $region59: #{tpu_custom_call.1} parent=5 // pred_region
        %s3373 = ssub.s32 %s18, 2
        // Predicated region
        $region61: #{tpu_custom_call.1} parent=59 // pred_check
          %p3374 = pneg %p157
        $region62: #{tpu_custom_call.1} parent=59 // pred_check_branch
          %3376 = sbr.rel (%p3374) target = $region64
        $region63: #{tpu_custom_call.1} parent=59 // pred_region
          %s3377 = sand.u32 %s142, 1
          %s3378 = scalar_lea.sflag [#allocation4], %s3377
          %s3379 = sand.u32 %s142, 1
          %s3380 = smul.addr %s3379, 8
          %s3381 = scalar_lea.vmem [#allocation8], %s3380
          %3382 = dma.done %s3378, 128
        $region64: #{tpu_custom_call.1} parent=59 // pred_fallthru
          _
      $region60: #{tpu_custom_call.1} parent=5 // pred_fallthru
        _
    $region6: #{tpu_custom_call.1} parent=1 // loop_footer
      %s22 = sadd.s32 1, %s18
    $region7: #{tpu_custom_call.1} parent=1 // loop_footer_branch
      %17 = sbr.rel target = $region3
    $region8: #{tpu_custom_call.1} parent=1 // loop_exit
      _
    %3383 = vsyncpa [#allocation3], 1
    %s3384 = scalar_lea.sflag [#allocation3], 1
    %3385 = vsyncpa %s3384, 1
    %3386 = vsyncpa [#allocation6], 1
    %3387 = vsyncpa [#allocation4], 1
    %s3388 = scalar_lea.sflag [#allocation4], 1
    %3389 = vsyncpa %s3388, 1

</llo_original>
